<compile_context>
chip_gen: v7x
topology: tpu7x:2x2x1
jax: 0.10.0
libtpu: 0.0.40
codegen_flags: <defaults>
</compile_context>

<pallas_src>
import jax
import jax.numpy as jnp
import numpy as np
from jax.experimental import pallas as pl
from jax.experimental.pallas import tpu as pltpu

LANE = 128                      # channel padding target (lane width)
VMEM_LIMIT = 32 * 1024 * 1024   # safe on all generations, > v5e 16 MiB default


# ----------------------------------------------------------------------------
# Kernel 1: 3x3 conv as 9 accumulated MXU dots over an in-VMEM tap gather,
#           fused per-image per-channel sum / sum-of-squares, channel-major
#           output write (in-kernel transpose rides the XLU slot).
#   x_ref:   (1, H+2, W+2, Cin)   padded NHWC image (whole image per step)
#   w_ref:   (9, Cin, TILE_CO)    per-tap conv weights (lane-padded Cout tile)
#   y_ref:   (1, TILE_CO, H*W)    channel-major conv output
#   sum_ref: (1, 1, TILE_CO)      per-image per-channel sum
#   ssq_ref: (1, 1, TILE_CO)      per-image per-channel sum of squares
# ----------------------------------------------------------------------------
def conv_stats_kernel(x_ref, w_ref, y_ref, sum_ref, ssq_ref):
    _, hp, wp, cin = x_ref.shape
    h, w = hp - 2, wp - 2

    acc = None
    for kh in range(3):
        for kw in range(3):
            # Static tap slice gathered in VMEM (no 9x HBM patch blow-up).
            tap = x_ref[0, kh:kh + h, kw:kw + w, :].reshape(h * w, cin)
            part = jnp.dot(tap, w_ref[kh * 3 + kw],
                           preferred_element_type=jnp.float32)
            acc = part if acc is None else acc + part

    # Exact per-image stats (no padded rows -> no mask needed).
    sum_ref[0] = jnp.sum(acc, axis=0, keepdims=True)
    ssq_ref[0] = jnp.sum(acc * acc, axis=0, keepdims=True)

    # Channel-major write so the NCHW epilogue needs no extra HBM transpose.
    y_ref[0] = acc.T.astype(y_ref.dtype)


def conv_with_stats(x_pad, w9, *, tile_co):
    """x_pad: (N, H+2, W+2, Cin) NHWC padded; w9: (9, Cin, Cpad)."""
    n, hp, wp, cin = x_pad.shape
    h, w = hp - 2, wp - 2
    hw = h * w
    cpad = w9.shape[2]
    n_co = cpad // tile_co

    return pl.pallas_call(
        conv_stats_kernel,
        out_shape=(
            jax.ShapeDtypeStruct((n, cpad, hw), jnp.float32),   # y (channel-major)
            jax.ShapeDtypeStruct((n, 1, cpad), jnp.float32),    # per-image sums
            jax.ShapeDtypeStruct((n, 1, cpad), jnp.float32),    # per-image sumsq
        ),
        grid_spec=pltpu.PrefetchScalarGridSpec(
            num_scalar_prefetch=0,
            grid=(n, n_co),
            in_specs=[
                pl.BlockSpec((1, hp, wp, cin), lambda i, j: (i, 0, 0, 0)),
                pl.BlockSpec((9, cin, tile_co), lambda i, j: (0, 0, j)),
            ],
            out_specs=[
                pl.BlockSpec((1, tile_co, hw), lambda i, j: (i, j, 0)),
                pl.BlockSpec((1, 1, tile_co), lambda i, j: (i, 0, j)),
                pl.BlockSpec((1, 1, tile_co), lambda i, j: (i, 0, j)),
            ],
        ),
        compiler_params=pltpu.CompilerParams(
            dimension_semantics=("parallel", "parallel"),
            vmem_limit_bytes=VMEM_LIMIT),
    )(x_pad, w9)


# ----------------------------------------------------------------------------
# Kernel 2: fused BatchNorm (per-channel scale/shift) + ReLU, elementwise in
# channel-major layout, in place over y.
#   y_ref:     (1, TILE_CO, H*W)
#   scale_ref: (TILE_CO, 1)
#   shift_ref: (TILE_CO, 1)
# ----------------------------------------------------------------------------
def bn_relu_kernel(y_ref, scale_ref, shift_ref, o_ref):
    y = y_ref[0]
    o_ref[0] = jnp.maximum(
        y * scale_ref[...] + shift_ref[...], 0.0).astype(o_ref.dtype)


def bn_relu(y_cm, scale_p, shift_p, *, tile_co):
    n, cpad, hw = y_cm.shape
    n_co = cpad // tile_co
    return pl.pallas_call(
        bn_relu_kernel,
        out_shape=jax.ShapeDtypeStruct((n, cpad, hw), jnp.float32),
        grid_spec=pltpu.PrefetchScalarGridSpec(
            num_scalar_prefetch=0,
            grid=(n, n_co),
            in_specs=[
                pl.BlockSpec((1, tile_co, hw), lambda i, j: (i, j, 0)),
                pl.BlockSpec((tile_co, 1), lambda i, j: (j, 0)),
                pl.BlockSpec((tile_co, 1), lambda i, j: (j, 0)),
            ],
            out_specs=pl.BlockSpec((1, tile_co, hw), lambda i, j: (i, j, 0)),
        ),
        input_output_aliases={0: 0},   # write in place over y (last consumer)
        compiler_params=pltpu.CompilerParams(
            dimension_semantics=("parallel", "parallel"),
            vmem_limit_bytes=VMEM_LIMIT),
    )(y_cm, scale_p, shift_p)


# ----------------------------------------------------------------------------
# Full Unit.forward: conv -> batchnorm (training-mode batch stats) -> relu
# ----------------------------------------------------------------------------
@jax.jit
def unit_forward(x_nchw, conv_w, conv_b, gamma, beta, eps=1e-5):
    del conv_b  # a per-channel constant before BatchNorm cancels exactly
    n, cin, h, w = x_nchw.shape
    cout = conv_w.shape[0]
    hw = h * w
    cpad = pl.cdiv(cout, LANE) * LANE
    tile_co = 256 if cpad % 256 == 0 else 128

    # --- cheap layout prep in the wrapper (single read of x) ----------------
    x_nhwc = jnp.transpose(x_nchw, (0, 2, 3, 1))                 # (N,H,W,Cin)
    x_pad = jnp.pad(x_nhwc, ((0, 0), (1, 1), (1, 1), (0, 0)))    # (N,H+2,W+2,Cin)

    # PyTorch conv weight (Cout, Cin, kH, kW) -> (9, Cin, Cpad), tap-major.
    w9 = jnp.transpose(conv_w, (2, 3, 1, 0)).reshape(9, cin, cout)
    w9 = jnp.pad(w9, ((0, 0), (0, 0), (0, cpad - cout)))

    # --- kernel 1: conv + fused per-image per-channel stats ------------------
    y_cm, sums, ssq = conv_with_stats(x_pad, w9, tile_co=tile_co)

    # --- tiny JAX glue: batch mean / biased variance -> scale & shift --------
    cnt = jnp.float32(n * hw)
    tot = jnp.sum(sums[:, 0, :cout], axis=0)
    tot2 = jnp.sum(ssq[:, 0, :cout], axis=0)
    mean = tot / cnt
    var = jnp.maximum(tot2 / cnt - mean * mean, 0.0)
    inv_std = jax.lax.rsqrt(var + eps)
    scale = gamma * inv_std
    shift = beta - mean * scale
    scale_p = jnp.zeros((cpad, 1), jnp.float32).at[:cout, 0].set(scale)
    shift_p = jnp.zeros((cpad, 1), jnp.float32).at[:cout, 0].set(shift)

    # --- kernel 2: normalize + affine + ReLU, in place ------------------------
    out_cm = bn_relu(y_cm, scale_p, shift_p, tile_co=tile_co)

    # Channel-major output -> NCHW is just a channel slice + reshape.
    return out_cm[:, :cout, :].reshape(n, cout, h, w)


def reference_forward(x_nchw, conv_w, conv_b, gamma, beta, eps=1e-5):
    """Pure-JAX reference (XLA conv) for correctness checking."""
    y = jax.lax.conv_general_dilated(
        x_nchw, conv_w, window_strides=(1, 1), padding=((1, 1), (1, 1)),
        dimension_numbers=("NCHW", "OIHW", "NCHW"),
    ) + conv_b[None, :, None, None]
    mean = jnp.mean(y, axis=(0, 2, 3), keepdims=True)
    var = jnp.mean(jnp.square(y - mean), axis=(0, 2, 3), keepdims=True)
    yn = (y - mean) / jnp.sqrt(var + eps)
    yn = yn * gamma[None, :, None, None] + beta[None, :, None, None]
    return jnp.maximum(yn, 0.0)


if __name__ == "__main__":
    key = jax.random.PRNGKey(0)
    k_x, k_w, k_b = jax.random.split(key, 3)

    N, Cin, H, W = 2, 4, 16, 16
    Cout = 8

    x = jax.random.normal(k_x, (N, Cin, H, W), dtype=jnp.float32)
    conv_w = 0.1 * jax.random.normal(k_w, (Cout, Cin, 3, 3), dtype=jnp.float32)
    conv_b = 0.05 * jax.random.normal(k_b, (Cout,), dtype=jnp.float32)
    gamma = 1.0 + 0.1 * jnp.arange(Cout, dtype=jnp.float32)
    beta = 0.01 * jnp.arange(Cout, dtype=jnp.float32)

    out = unit_forward(x, conv_w, conv_b, gamma, beta)
    out = jax.block_until_ready(out)

    ref = reference_forward(x, conv_w, conv_b, gamma, beta)
    np.testing.assert_allclose(np.asarray(out), np.asarray(ref),
                               rtol=1e-4, atol=1e-4)
    print("KERNEL_OK")
</pallas_src>

<mosaic_0001>
module attributes {stable_mosaic.version = 11 : i64} {
  func.func @conv_stats_kernel(%arg0: i32, %arg1: i32, %arg2: memref<1x18x18x4xf32, #tpu.memory_space<vmem>>, %arg3: memref<9x4x128xf32, #tpu.memory_space<vmem>>, %arg4: memref<1x128x256xf32, #tpu.memory_space<vmem>>, %arg5: memref<1x1x128xf32, #tpu.memory_space<vmem>>, %arg6: memref<1x1x128xf32, #tpu.memory_space<vmem>>) attributes {dimension_semantics = [#tpu.dimension_semantics<parallel>, #tpu.dimension_semantics<parallel>], iteration_bounds = array<i64: 2, 1>, scalar_prefetch = 0 : i64, scratch_operands = 0 : i64, tpu.core_type = #tpu.core_type<tc>, window_params = [{transform_indices = @transform_0, window_bounds = array<i64: 1, 18, 18, 4>}, {transform_indices = @transform_1, window_bounds = array<i64: 9, 4, 128>}, {transform_indices = @transform_2, window_bounds = array<i64: 1, 128, 256>}, {transform_indices = @transform_3, window_bounds = array<i64: 1, 1, 128>}, {transform_indices = @transform_4, window_bounds = array<i64: 1, 1, 128>}]} {
    %c0 = arith.constant 0 : index
    %c0_0 = arith.constant 0 : index
    %c0_1 = arith.constant 0 : index
    %c0_2 = arith.constant 0 : index
    %0 = vector.load %arg2[%c0, %c0_0, %c0_1, %c0_2] : memref<1x18x18x4xf32, #tpu.memory_space<vmem>>, vector<1x16x16x4xf32>
    %1 = vector.shape_cast %0 : vector<1x16x16x4xf32> to vector<16x16x4xf32>
    %2 = vector.shape_cast %1 : vector<16x16x4xf32> to vector<256x4xf32>
    %c0_3 = arith.constant 0 : index
    %c0_4 = arith.constant 0 : index
    %c0_5 = arith.constant 0 : index
    %3 = vector.load %arg3[%c0_3, %c0_4, %c0_5] : memref<9x4x128xf32, #tpu.memory_space<vmem>>, vector<1x4x128xf32>
    %4 = vector.shape_cast %3 : vector<1x4x128xf32> to vector<4x128xf32>
    %cst = arith.constant dense<0.000000e+00> : vector<256x128xf32>
    %5 = tpu.matmul %2, %4, %cst {dimension_numbers = #tpu.dot_dimension_numbers<[1], [0], [0], [1], [0, 0, 1, 1], [], []>} : vector<256x4xf32>, vector<4x128xf32>, vector<256x128xf32> -> vector<256x128xf32>
    %c0_6 = arith.constant 0 : index
    %c0_7 = arith.constant 0 : index
    %c1 = arith.constant 1 : index
    %c0_8 = arith.constant 0 : index
    %6 = vector.load %arg2[%c0_6, %c0_7, %c1, %c0_8] : memref<1x18x18x4xf32, #tpu.memory_space<vmem>>, vector<1x16x16x4xf32>
    %7 = vector.shape_cast %6 : vector<1x16x16x4xf32> to vector<16x16x4xf32>
    %8 = vector.shape_cast %7 : vector<16x16x4xf32> to vector<256x4xf32>
    %c1_9 = arith.constant 1 : index
    %c0_10 = arith.constant 0 : index
    %c0_11 = arith.constant 0 : index
    %9 = vector.load %arg3[%c1_9, %c0_10, %c0_11] : memref<9x4x128xf32, #tpu.memory_space<vmem>>, vector<1x4x128xf32>
    %10 = vector.shape_cast %9 : vector<1x4x128xf32> to vector<4x128xf32>
    %cst_12 = arith.constant dense<0.000000e+00> : vector<256x128xf32>
    %11 = tpu.matmul %8, %10, %cst_12 {dimension_numbers = #tpu.dot_dimension_numbers<[1], [0], [0], [1], [0, 0, 1, 1], [], []>} : vector<256x4xf32>, vector<4x128xf32>, vector<256x128xf32> -> vector<256x128xf32>
    %12 = arith.addf %5, %11 : vector<256x128xf32>
    %c0_13 = arith.constant 0 : index
    %c0_14 = arith.constant 0 : index
    %c2 = arith.constant 2 : index
    %c0_15 = arith.constant 0 : index
    %13 = vector.load %arg2[%c0_13, %c0_14, %c2, %c0_15] : memref<1x18x18x4xf32, #tpu.memory_space<vmem>>, vector<1x16x16x4xf32>
    %14 = vector.shape_cast %13 : vector<1x16x16x4xf32> to vector<16x16x4xf32>
    %15 = vector.shape_cast %14 : vector<16x16x4xf32> to vector<256x4xf32>
    %c2_16 = arith.constant 2 : index
    %c0_17 = arith.constant 0 : index
    %c0_18 = arith.constant 0 : index
    %16 = vector.load %arg3[%c2_16, %c0_17, %c0_18] : memref<9x4x128xf32, #tpu.memory_space<vmem>>, vector<1x4x128xf32>
    %17 = vector.shape_cast %16 : vector<1x4x128xf32> to vector<4x128xf32>
    %cst_19 = arith.constant dense<0.000000e+00> : vector<256x128xf32>
    %18 = tpu.matmul %15, %17, %cst_19 {dimension_numbers = #tpu.dot_dimension_numbers<[1], [0], [0], [1], [0, 0, 1, 1], [], []>} : vector<256x4xf32>, vector<4x128xf32>, vector<256x128xf32> -> vector<256x128xf32>
    %19 = arith.addf %12, %18 : vector<256x128xf32>
    %c0_20 = arith.constant 0 : index
    %c1_21 = arith.constant 1 : index
    %c0_22 = arith.constant 0 : index
    %c0_23 = arith.constant 0 : index
    %20 = vector.load %arg2[%c0_20, %c1_21, %c0_22, %c0_23] : memref<1x18x18x4xf32, #tpu.memory_space<vmem>>, vector<1x16x16x4xf32>
    %21 = vector.shape_cast %20 : vector<1x16x16x4xf32> to vector<16x16x4xf32>
    %22 = vector.shape_cast %21 : vector<16x16x4xf32> to vector<256x4xf32>
    %c3 = arith.constant 3 : index
    %c0_24 = arith.constant 0 : index
    %c0_25 = arith.constant 0 : index
    %23 = vector.load %arg3[%c3, %c0_24, %c0_25] : memref<9x4x128xf32, #tpu.memory_space<vmem>>, vector<1x4x128xf32>
    %24 = vector.shape_cast %23 : vector<1x4x128xf32> to vector<4x128xf32>
    %cst_26 = arith.constant dense<0.000000e+00> : vector<256x128xf32>
    %25 = tpu.matmul %22, %24, %cst_26 {dimension_numbers = #tpu.dot_dimension_numbers<[1], [0], [0], [1], [0, 0, 1, 1], [], []>} : vector<256x4xf32>, vector<4x128xf32>, vector<256x128xf32> -> vector<256x128xf32>
    %26 = arith.addf %19, %25 : vector<256x128xf32>
    %c0_27 = arith.constant 0 : index
    %c1_28 = arith.constant 1 : index
    %c1_29 = arith.constant 1 : index
    %c0_30 = arith.constant 0 : index
    %27 = vector.load %arg2[%c0_27, %c1_28, %c1_29, %c0_30] : memref<1x18x18x4xf32, #tpu.memory_space<vmem>>, vector<1x16x16x4xf32>
    %28 = vector.shape_cast %27 : vector<1x16x16x4xf32> to vector<16x16x4xf32>
    %29 = vector.shape_cast %28 : vector<16x16x4xf32> to vector<256x4xf32>
    %c4 = arith.constant 4 : index
    %c0_31 = arith.constant 0 : index
    %c0_32 = arith.constant 0 : index
    %30 = vector.load %arg3[%c4, %c0_31, %c0_32] : memref<9x4x128xf32, #tpu.memory_space<vmem>>, vector<1x4x128xf32>
    %31 = vector.shape_cast %30 : vector<1x4x128xf32> to vector<4x128xf32>
    %cst_33 = arith.constant dense<0.000000e+00> : vector<256x128xf32>
    %32 = tpu.matmul %29, %31, %cst_33 {dimension_numbers = #tpu.dot_dimension_numbers<[1], [0], [0], [1], [0, 0, 1, 1], [], []>} : vector<256x4xf32>, vector<4x128xf32>, vector<256x128xf32> -> vector<256x128xf32>
    %33 = arith.addf %26, %32 : vector<256x128xf32>
    %c0_34 = arith.constant 0 : index
    %c1_35 = arith.constant 1 : index
    %c2_36 = arith.constant 2 : index
    %c0_37 = arith.constant 0 : index
    %34 = vector.load %arg2[%c0_34, %c1_35, %c2_36, %c0_37] : memref<1x18x18x4xf32, #tpu.memory_space<vmem>>, vector<1x16x16x4xf32>
    %35 = vector.shape_cast %34 : vector<1x16x16x4xf32> to vector<16x16x4xf32>
    %36 = vector.shape_cast %35 : vector<16x16x4xf32> to vector<256x4xf32>
    %c5 = arith.constant 5 : index
    %c0_38 = arith.constant 0 : index
    %c0_39 = arith.constant 0 : index
    %37 = vector.load %arg3[%c5, %c0_38, %c0_39] : memref<9x4x128xf32, #tpu.memory_space<vmem>>, vector<1x4x128xf32>
    %38 = vector.shape_cast %37 : vector<1x4x128xf32> to vector<4x128xf32>
    %cst_40 = arith.constant dense<0.000000e+00> : vector<256x128xf32>
    %39 = tpu.matmul %36, %38, %cst_40 {dimension_numbers = #tpu.dot_dimension_numbers<[1], [0], [0], [1], [0, 0, 1, 1], [], []>} : vector<256x4xf32>, vector<4x128xf32>, vector<256x128xf32> -> vector<256x128xf32>
    %40 = arith.addf %33, %39 : vector<256x128xf32>
    %c0_41 = arith.constant 0 : index
    %c2_42 = arith.constant 2 : index
    %c0_43 = arith.constant 0 : index
    %c0_44 = arith.constant 0 : index
    %41 = vector.load %arg2[%c0_41, %c2_42, %c0_43, %c0_44] : memref<1x18x18x4xf32, #tpu.memory_space<vmem>>, vector<1x16x16x4xf32>
    %42 = vector.shape_cast %41 : vector<1x16x16x4xf32> to vector<16x16x4xf32>
    %43 = vector.shape_cast %42 : vector<16x16x4xf32> to vector<256x4xf32>
    %c6 = arith.constant 6 : index
    %c0_45 = arith.constant 0 : index
    %c0_46 = arith.constant 0 : index
    %44 = vector.load %arg3[%c6, %c0_45, %c0_46] : memref<9x4x128xf32, #tpu.memory_space<vmem>>, vector<1x4x128xf32>
    %45 = vector.shape_cast %44 : vector<1x4x128xf32> to vector<4x128xf32>
    %cst_47 = arith.constant dense<0.000000e+00> : vector<256x128xf32>
    %46 = tpu.matmul %43, %45, %cst_47 {dimension_numbers = #tpu.dot_dimension_numbers<[1], [0], [0], [1], [0, 0, 1, 1], [], []>} : vector<256x4xf32>, vector<4x128xf32>, vector<256x128xf32> -> vector<256x128xf32>
    %47 = arith.addf %40, %46 : vector<256x128xf32>
    %c0_48 = arith.constant 0 : index
    %c2_49 = arith.constant 2 : index
    %c1_50 = arith.constant 1 : index
    %c0_51 = arith.constant 0 : index
    %48 = vector.load %arg2[%c0_48, %c2_49, %c1_50, %c0_51] : memref<1x18x18x4xf32, #tpu.memory_space<vmem>>, vector<1x16x16x4xf32>
    %49 = vector.shape_cast %48 : vector<1x16x16x4xf32> to vector<16x16x4xf32>
    %50 = vector.shape_cast %49 : vector<16x16x4xf32> to vector<256x4xf32>
    %c7 = arith.constant 7 : index
    %c0_52 = arith.constant 0 : index
    %c0_53 = arith.constant 0 : index
    %51 = vector.load %arg3[%c7, %c0_52, %c0_53] : memref<9x4x128xf32, #tpu.memory_space<vmem>>, vector<1x4x128xf32>
    %52 = vector.shape_cast %51 : vector<1x4x128xf32> to vector<4x128xf32>
    %cst_54 = arith.constant dense<0.000000e+00> : vector<256x128xf32>
    %53 = tpu.matmul %50, %52, %cst_54 {dimension_numbers = #tpu.dot_dimension_numbers<[1], [0], [0], [1], [0, 0, 1, 1], [], []>} : vector<256x4xf32>, vector<4x128xf32>, vector<256x128xf32> -> vector<256x128xf32>
    %54 = arith.addf %47, %53 : vector<256x128xf32>
    %c0_55 = arith.constant 0 : index
    %c2_56 = arith.constant 2 : index
    %c2_57 = arith.constant 2 : index
    %c0_58 = arith.constant 0 : index
    %55 = vector.load %arg2[%c0_55, %c2_56, %c2_57, %c0_58] : memref<1x18x18x4xf32, #tpu.memory_space<vmem>>, vector<1x16x16x4xf32>
    %56 = vector.shape_cast %55 : vector<1x16x16x4xf32> to vector<16x16x4xf32>
    %57 = vector.shape_cast %56 : vector<16x16x4xf32> to vector<256x4xf32>
    %c8 = arith.constant 8 : index
    %c0_59 = arith.constant 0 : index
    %c0_60 = arith.constant 0 : index
    %58 = vector.load %arg3[%c8, %c0_59, %c0_60] : memref<9x4x128xf32, #tpu.memory_space<vmem>>, vector<1x4x128xf32>
    %59 = vector.shape_cast %58 : vector<1x4x128xf32> to vector<4x128xf32>
    %cst_61 = arith.constant dense<0.000000e+00> : vector<256x128xf32>
    %60 = tpu.matmul %57, %59, %cst_61 {dimension_numbers = #tpu.dot_dimension_numbers<[1], [0], [0], [1], [0, 0, 1, 1], [], []>} : vector<256x4xf32>, vector<4x128xf32>, vector<256x128xf32> -> vector<256x128xf32>
    %61 = arith.addf %54, %60 : vector<256x128xf32>
    %cst_62 = arith.constant dense<0.000000e+00> : vector<128xf32>
    %62 = vector.multi_reduction <add>, %61, %cst_62 [0] : vector<256x128xf32> to vector<128xf32>
    %63 = vector.shape_cast %62 : vector<128xf32> to vector<1x128xf32>
    %c0_63 = arith.constant 0 : index
    %c0_64 = arith.constant 0 : index
    %c0_65 = arith.constant 0 : index
    %64 = vector.load %arg5[%c0_63, %c0_64, %c0_65] : memref<1x1x128xf32, #tpu.memory_space<vmem>>, vector<1x1x128xf32>
    %65 = vector.shape_cast %64 : vector<1x1x128xf32> to vector<1x128xf32>
    %66 = vector.shape_cast %63 : vector<1x128xf32> to vector<1x1x128xf32>
    tpu.vector_store %arg5[%c0_63, %c0_64, %c0_65], %66 {strides = array<i32>} : memref<1x1x128xf32, #tpu.memory_space<vmem>>, vector<1x1x128xf32>,
    %67 = arith.mulf %61, %61 : vector<256x128xf32>
    %cst_66 = arith.constant dense<0.000000e+00> : vector<128xf32>
    %68 = vector.multi_reduction <add>, %67, %cst_66 [0] : vector<256x128xf32> to vector<128xf32>
    %69 = vector.shape_cast %68 : vector<128xf32> to vector<1x128xf32>
    %c0_67 = arith.constant 0 : index
    %c0_68 = arith.constant 0 : index
    %c0_69 = arith.constant 0 : index
    %70 = vector.load %arg6[%c0_67, %c0_68, %c0_69] : memref<1x1x128xf32, #tpu.memory_space<vmem>>, vector<1x1x128xf32>
    %71 = vector.shape_cast %70 : vector<1x1x128xf32> to vector<1x128xf32>
    %72 = vector.shape_cast %69 : vector<1x128xf32> to vector<1x1x128xf32>
    tpu.vector_store %arg6[%c0_67, %c0_68, %c0_69], %72 {strides = array<i32>} : memref<1x1x128xf32, #tpu.memory_space<vmem>>, vector<1x1x128xf32>,
    %73 = tpu.transpose %61, [1, 0] : vector<256x128xf32> -> vector<128x256xf32>
    %c0_70 = arith.constant 0 : index
    %c0_71 = arith.constant 0 : index
    %c0_72 = arith.constant 0 : index
    %74 = vector.load %arg4[%c0_70, %c0_71, %c0_72] : memref<1x128x256xf32, #tpu.memory_space<vmem>>, vector<1x128x256xf32>
    %75 = vector.shape_cast %74 : vector<1x128x256xf32> to vector<128x256xf32>
    %76 = vector.shape_cast %73 : vector<128x256xf32> to vector<1x128x256xf32>
    tpu.vector_store %arg4[%c0_70, %c0_71, %c0_72], %76 {strides = array<i32>} : memref<1x128x256xf32, #tpu.memory_space<vmem>>, vector<1x128x256xf32>,
    return
  }
  func.func @transform_0(%arg0: i32, %arg1: i32) -> (i32, i32, i32, i32) {
    %c0_i32 = arith.constant 0 : i32
    %c0_i32_0 = arith.constant 0 : i32
    %c0_i32_1 = arith.constant 0 : i32
    %c0_i32_2 = arith.constant 0 : i32
    return %arg0, %c0_i32, %c0_i32_0, %c0_i32_1 : i32, i32, i32, i32
  }
  func.func @transform_1(%arg0: i32, %arg1: i32) -> (i32, i32, i32) {
    %c0_i32 = arith.constant 0 : i32
    %c0_i32_0 = arith.constant 0 : i32
    %c0_i32_1 = arith.constant 0 : i32
    return %c0_i32, %c0_i32_0, %arg1 : i32, i32, i32
  }
  func.func @transform_2(%arg0: i32, %arg1: i32) -> (i32, i32, i32) {
    %c0_i32 = arith.constant 0 : i32
    %c0_i32_0 = arith.constant 0 : i32
    return %arg0, %arg1, %c0_i32 : i32, i32, i32
  }
  func.func @transform_3(%arg0: i32, %arg1: i32) -> (i32, i32, i32) {
    %c0_i32 = arith.constant 0 : i32
    %c0_i32_0 = arith.constant 0 : i32
    return %arg0, %c0_i32, %arg1 : i32, i32, i32
  }
  func.func @transform_4(%arg0: i32, %arg1: i32) -> (i32, i32, i32) {
    %c0_i32 = arith.constant 0 : i32
    %c0_i32_0 = arith.constant 0 : i32
    return %arg0, %c0_i32, %arg1 : i32, i32, i32
  }
}

module attributes {stable_mosaic.version = 11 : i64} {
  func.func @bn_relu_kernel(%arg0: i32, %arg1: i32, %arg2: memref<1x128x256xf32, #tpu.memory_space<vmem>>, %arg3: memref<128x1xf32, #tpu.memory_space<vmem>>, %arg4: memref<128x1xf32, #tpu.memory_space<vmem>>, %arg5: memref<1x128x256xf32, #tpu.memory_space<vmem>>) attributes {dimension_semantics = [#tpu.dimension_semantics<parallel>, #tpu.dimension_semantics<parallel>], iteration_bounds = array<i64: 2, 1>, scalar_prefetch = 0 : i64, scratch_operands = 0 : i64, tpu.core_type = #tpu.core_type<tc>, window_params = [{transform_indices = @transform_0, window_bounds = array<i64: 1, 128, 256>}, {transform_indices = @transform_1, window_bounds = array<i64: 128, 1>}, {transform_indices = @transform_2, window_bounds = array<i64: 128, 1>}, {transform_indices = @transform_3, window_bounds = array<i64: 1, 128, 256>}]} {
    %c0 = arith.constant 0 : index
    %c0_0 = arith.constant 0 : index
    %c0_1 = arith.constant 0 : index
    %0 = vector.load %arg2[%c0, %c0_0, %c0_1] : memref<1x128x256xf32, #tpu.memory_space<vmem>>, vector<1x128x256xf32>
    %1 = vector.shape_cast %0 : vector<1x128x256xf32> to vector<128x256xf32>
    %c0_2 = arith.constant 0 : index
    %c0_3 = arith.constant 0 : index
    %2 = vector.load %arg3[%c0_2, %c0_3] : memref<128x1xf32, #tpu.memory_space<vmem>>, vector<128x1xf32>
    %3 = vector.broadcast %2 : vector<128x1xf32> to vector<128x256xf32>
    %4 = arith.mulf %1, %3 : vector<128x256xf32>
    %c0_4 = arith.constant 0 : index
    %c0_5 = arith.constant 0 : index
    %5 = vector.load %arg4[%c0_4, %c0_5] : memref<128x1xf32, #tpu.memory_space<vmem>>, vector<128x1xf32>
    %6 = vector.broadcast %5 : vector<128x1xf32> to vector<128x256xf32>
    %7 = arith.addf %4, %6 : vector<128x256xf32>
    %cst = arith.constant 0.000000e+00 : f32
    %8 = vector.broadcast %cst : f32 to vector<128x256xf32>
    %9 = arith.maximumf %7, %8 : vector<128x256xf32>
    %c0_6 = arith.constant 0 : index
    %c0_7 = arith.constant 0 : index
    %c0_8 = arith.constant 0 : index
    %10 = vector.load %arg5[%c0_6, %c0_7, %c0_8] : memref<1x128x256xf32, #tpu.memory_space<vmem>>, vector<1x128x256xf32>
    %11 = vector.shape_cast %10 : vector<1x128x256xf32> to vector<128x256xf32>
    %12 = vector.shape_cast %9 : vector<128x256xf32> to vector<1x128x256xf32>
    tpu.vector_store %arg5[%c0_6, %c0_7, %c0_8], %12 {strides = array<i32>} : memref<1x128x256xf32, #tpu.memory_space<vmem>>, vector<1x128x256xf32>,
    return
  }
  func.func @transform_0(%arg0: i32, %arg1: i32) -> (i32, i32, i32) {
    %c0_i32 = arith.constant 0 : i32
    %c0_i32_0 = arith.constant 0 : i32
    return %arg0, %arg1, %c0_i32 : i32, i32, i32
  }
  func.func @transform_1(%arg0: i32, %arg1: i32) -> (i32, i32) {
    %c0_i32 = arith.constant 0 : i32
    %c0_i32_0 = arith.constant 0 : i32
    return %arg1, %c0_i32 : i32, i32
  }
  func.func @transform_2(%arg0: i32, %arg1: i32) -> (i32, i32) {
    %c0_i32 = arith.constant 0 : i32
    %c0_i32_0 = arith.constant 0 : i32
    return %arg1, %c0_i32 : i32, i32
  }
  func.func @transform_3(%arg0: i32, %arg1: i32) -> (i32, i32, i32) {
    %c0_i32 = arith.constant 0 : i32
    %c0_i32_0 = arith.constant 0 : i32
    return %arg0, %arg1, %c0_i32 : i32, i32, i32
  }
}

</mosaic_0001>

<llo_original>
// kernel: unit_forward.3
$region0: #{unit_forward.3}
  #allocation0 [shape = 'u32[]', space=smem, size = 0x4, offset = 0x4, fixed_abs, tag = 'smem constant byte address 0x4 - core index']
  #allocation1 [shape = 'u32[144,128]{1,0:T(1,128)}', space=vmem, size = 0x12000, scoped, tag = 'internal scratch']
  %s0 = inlined_call_operand.vmem [shape: f32[2,128,256], index: 0, kind: input, shape index: {}, may-alias: {0,3}]
  %s1 = inlined_call_operand.vmem [shape: f32[128,1], index: 1, kind: input, shape index: {}]
  %s2 = inlined_call_operand.vmem [shape: f32[128,1], index: 2, kind: input, shape index: {}]
  %s3 = inlined_call_operand.vmem [shape: f32[2,128,256], index: 3, kind: output, shape index: {}, may-alias: {0,3}]
  %s4 = sld [smem:[#allocation0]]
  $region45: #{unit_forward.3} parent=0
    _
  %s6 = ssub.s32 1, %s4
  %s7 = scalar_select 0, %s6, %s4
  loop: start=0, step=1, limit=4
  $region2: #{unit_forward.3} parent=0 // loop_pre_header
    _
  $region3: #{unit_forward.3} parent=0 // loop_header
    %s9 = sphi 0, %s13
    %p10 = scmp.ge.s32.totalorder %s9, 4
    %s16 = sphi 0, %s28
    %s17 = sphi 0, %s24
    %s18 = sphi 0, %s16
    %s19 = sphi 0, %s17
    %s20 = sphi 0, %s18
    %s21 = sphi 0, %s19
    %s33 = sphi 0, %s35
    %s36 = sphi 0, %s33
    %s37 = sphi 0, %s36
    %s53 = sphi 0, %s37
    %s59 = sphi 0, %s61
    %s62 = sphi 0, %s59
    %s63 = sphi 0, %s62
    %s79 = sphi 0, %s63
    %s85 = sphi 0, %s87
    %s88 = sphi 0, %s85
    %s89 = sphi 0, %s88
    %s105 = sphi 0, %s89
    %s113 = sphi 0, %s115
    %s116 = sphi 0, %s113
    %s117 = sphi 0, %s116
    %s133 = sphi 0, %s117
  $region4: #{unit_forward.3} parent=0 // loop_header_branch
    %12 = sbr.rel (%p10) target = $region8
  $region5: #{unit_forward.3} parent=0 // loop_body
    %s14 = ssub.s32 %s9, 1
    %s15 = ssub.s32 %s9, 2
    %s22 = sadd.s32 1, %s17
    %p23 = scmp.ge.s32.totalorder %s22, 1
    %s24 = scalar_select %p23, 0, %s22
    %s25 = sadd.s32 1, %s16
    %s26 = scalar_select %p23, %s25, %s16
    %p27 = scmp.ge.s32.totalorder %s26, 2
    %s28 = scalar_select %p27, 0, %s26
    %s29 = ssub.s32 %s16, %s28
    %s30 = ssub.s32 %s17, %s24
    %s31 = sor.u32 %s29, %s30
    %p32 = scmp.eq.s32.totalorder %s31, 0
    %s34 = sadd.s32 %s33, 1
    %s35 = scalar_select %p32, %s33, %s34
    %p38 = pneg %p32
    %p39 = scmp.eq.s32.totalorder %s9, 1
    %p40 = por %p38, %p39
    %p41 = scmp.ne.s32.totalorder %s33, %s36
    %p42 = scmp.eq.s32.totalorder %s9, 0
    %p43 = por %p41, %p42
    %p44 = scmp.ne.s32.totalorder %s33, %s36
    %p45 = scmp.eq.s32.totalorder %s14, 1
    %p46 = por %p44, %p45
    %p47 = scmp.ne.s32.totalorder %s36, %s37
    %p48 = scmp.eq.s32.totalorder %s14, 0
    %p49 = por %p47, %p48
    %p50 = scmp.ne.s32.totalorder %s36, %s37
    %p51 = scmp.eq.s32.totalorder %s15, 1
    %p52 = por %p50, %p51
    %p54 = scmp.ne.s32.totalorder %s37, %s53
    %p55 = scmp.eq.s32.totalorder %s15, 0
    %p56 = por %p54, %p55
    %s57 = ssub.s32 %s17, %s24
    %p58 = scmp.eq.s32.totalorder %s57, 0
    %s60 = sadd.s32 %s59, 1
    %s61 = scalar_select %p58, %s59, %s60
    %p64 = pneg %p58
    %p65 = scmp.eq.s32.totalorder %s9, 1
    %p66 = por %p64, %p65
    %p67 = scmp.ne.s32.totalorder %s59, %s62
    %p68 = scmp.eq.s32.totalorder %s9, 0
    %p69 = por %p67, %p68
    %p70 = scmp.ne.s32.totalorder %s59, %s62
    %p71 = scmp.eq.s32.totalorder %s14, 1
    %p72 = por %p70, %p71
    %p73 = scmp.ne.s32.totalorder %s62, %s63
    %p74 = scmp.eq.s32.totalorder %s14, 0
    %p75 = por %p73, %p74
    %p76 = scmp.ne.s32.totalorder %s62, %s63
    %p77 = scmp.eq.s32.totalorder %s15, 1
    %p78 = por %p76, %p77
    %p80 = scmp.ne.s32.totalorder %s63, %s79
    %p81 = scmp.eq.s32.totalorder %s15, 0
    %p82 = por %p80, %p81
    %s83 = ssub.s32 %s17, %s24
    %p84 = scmp.eq.s32.totalorder %s83, 0
    %s86 = sadd.s32 %s85, 1
    %s87 = scalar_select %p84, %s85, %s86
    %p90 = pneg %p84
    %p91 = scmp.eq.s32.totalorder %s9, 1
    %p92 = por %p90, %p91
    %p93 = scmp.ne.s32.totalorder %s85, %s88
    %p94 = scmp.eq.s32.totalorder %s9, 0
    %p95 = por %p93, %p94
    %p96 = scmp.ne.s32.totalorder %s85, %s88
    %p97 = scmp.eq.s32.totalorder %s14, 1
    %p98 = por %p96, %p97
    %p99 = scmp.ne.s32.totalorder %s88, %s89
    %p100 = scmp.eq.s32.totalorder %s14, 0
    %p101 = por %p99, %p100
    %p102 = scmp.ne.s32.totalorder %s88, %s89
    %p103 = scmp.eq.s32.totalorder %s15, 1
    %p104 = por %p102, %p103
    %p106 = scmp.ne.s32.totalorder %s89, %s105
    %p107 = scmp.eq.s32.totalorder %s15, 0
    %p108 = por %p106, %p107
    %s109 = ssub.s32 %s16, %s28
    %s110 = ssub.s32 %s17, %s24
    %s111 = sor.u32 %s109, %s110
    %p112 = scmp.eq.s32.totalorder %s111, 0
    %s114 = sadd.s32 %s113, 1
    %s115 = scalar_select %p112, %s113, %s114
    %p118 = pneg %p112
    %p119 = scmp.eq.s32.totalorder %s9, 1
    %p120 = por %p118, %p119
    %p121 = scmp.ne.s32.totalorder %s113, %s116
    %p122 = scmp.eq.s32.totalorder %s9, 0
    %p123 = por %p121, %p122
    %p124 = scmp.ne.s32.totalorder %s113, %s116
    %p125 = scmp.eq.s32.totalorder %s14, 1
    %p126 = por %p124, %p125
    %p127 = scmp.ne.s32.totalorder %s116, %s117
    %p128 = scmp.eq.s32.totalorder %s14, 0
    %p129 = por %p127, %p128
    %p130 = scmp.ne.s32.totalorder %s116, %s117
    %p131 = scmp.eq.s32.totalorder %s15, 1
    %p132 = por %p130, %p131
    %p134 = scmp.ne.s32.totalorder %s117, %s133
    %p135 = scmp.eq.s32.totalorder %s15, 0
    %p136 = por %p134, %p135
    %p137 = scmp.le.s32.totalorder 1, %s9
    %p138 = scmp.lt.s32.totalorder %s9, 3
    %p139 = pnand %p137, %p138
    %p140 = pneg %p139
    // Predicated region
    $region9: #{unit_forward.3} parent=5 // pred_check
      _
    $region10: #{unit_forward.3} parent=5 // pred_check_branch
      %142 = sbr.rel (%p139) target = $region12
    $region11: #{unit_forward.3} parent=5 // pred_region
      %s143 = ssub.s32 %s9, 1
      // Predicated region
      $region13: #{unit_forward.3} parent=11 // pred_check
        %p144 = pneg %p75
      $region14: #{unit_forward.3} parent=11 // pred_check_branch
        %146 = sbr.rel (%p144) target = $region16
      $region15: #{unit_forward.3} parent=11 // pred_region
        %s147 = smul.u32 16, %s19
        %p148 = scmp.lt.s32.totalorder %s147, 15
        %s149 = scalar_select %p148, %s147, 15
        %s150 = smul.addr %s149, 8
        %s151 = scalar_lea.vmem %s1, %s150
        %s152 = smul.u32 16, %s19
      $region16: #{unit_forward.3} parent=11 // pred_fallthru
        _
      // Predicated region
      $region17: #{unit_forward.3} parent=11 // pred_check
        %p153 = pneg %p101
      $region18: #{unit_forward.3} parent=11 // pred_check_branch
        %155 = sbr.rel (%p153) target = $region20
      $region19: #{unit_forward.3} parent=11 // pred_region
        %s156 = smul.u32 16, %s19
        %p157 = scmp.lt.s32.totalorder %s156, 15
        %s158 = scalar_select %p157, %s156, 15
        %s159 = smul.addr %s158, 8
        %s160 = scalar_lea.vmem %s2, %s159
        %s161 = smul.u32 16, %s19
      $region20: #{unit_forward.3} parent=11 // pred_fallthru
        _
    $region12: #{unit_forward.3} parent=5 // pred_fallthru
      _
    %p162 = scmp.lt.s32.totalorder %s9, 2
    // Predicated region
    $region21: #{unit_forward.3} parent=5 // pred_check
      %p163 = pneg %p162
    $region22: #{unit_forward.3} parent=5 // pred_check_branch
      %165 = sbr.rel (%p163) target = $region24
    $region23: #{unit_forward.3} parent=5 // pred_region
      // Predicated region
      $region25: #{unit_forward.3} parent=23 // pred_check
        %p166 = pneg %p43
      $region26: #{unit_forward.3} parent=23 // pred_check_branch
        %168 = sbr.rel (%p166) target = $region28
      $region27: #{unit_forward.3} parent=23 // pred_region
        %s169 = smul.u32 16, %s17
        %p170 = scmp.lt.s32.totalorder %s16, 1
        %s171 = scalar_select %p170, %s16, 1
        %p172 = scmp.lt.s32.totalorder %s169, 15
        %s173 = scalar_select %p172, %s169, 15
        %s174 = smul.addr %s173, 2
        %s175 = smul.addr %s171, 32
        %s176 = sadd.s32 %s174, %s175
        %s177 = smul.addr %s176, 8
        %s178 = scalar_lea.vmem %s0, %s177
        %s179 = smul.u32 16, %s17
      $region28: #{unit_forward.3} parent=23 // pred_fallthru
        _
    $region24: #{unit_forward.3} parent=5 // pred_fallthru
      _
    %p180 = scmp.le.s32.totalorder 1, %s9
    %p181 = scmp.lt.s32.totalorder %s9, 3
    %p182 = pnand %p180, %p181
    %p183 = pneg %p182
    // Predicated region
    $region29: #{unit_forward.3} parent=5 // pred_check
      _
    $region30: #{unit_forward.3} parent=5 // pred_check_branch
      %185 = sbr.rel (%p182) target = $region32
    $region31: #{unit_forward.3} parent=5 // pred_region
      %s186 = ssub.s32 %s9, 1
      %s187 = smul.u32 16, %s19
      %p188 = scmp.lt.s32.totalorder %s18, 1
      %s189 = scalar_select %p188, %s18, 1
      %p190 = scmp.lt.s32.totalorder %s187, 15
      %s191 = scalar_select %p190, %s187, 15
      %s192 = smul.addr %s191, 2
      %s193 = smul.addr %s189, 32
      %s194 = sadd.s32 %s192, %s193
      %s195 = smul.addr %s194, 8
      %s196 = scalar_lea.vmem %s0, %s195
      %p197 = pneg %p49
      %p198 = pneg %p46
      %s199 = smul.u32 16, %s19
      %p200 = scmp.lt.s32.totalorder %s199, 15
      %s201 = scalar_select %p200, %s199, 15
      %s202 = smul.addr %s201, 8
      %s203 = scalar_lea.vmem %s1, %s202
      %p204 = pneg %p75
      %p205 = pneg %p72
      %s206 = smul.u32 16, %s19
      %p207 = scmp.lt.s32.totalorder %s206, 15
      %s208 = scalar_select %p207, %s206, 15
      %s209 = smul.addr %s208, 8
      %s210 = scalar_lea.vmem %s2, %s209
      %p211 = pneg %p101
      %p212 = pneg %p98
      %p213 = pneg %p129
      %p214 = pneg %p126
      %s215 = smul.u32 16, %s19
      %p216 = scmp.lt.s32.totalorder %s18, 1
      %s217 = scalar_select %p216, %s18, 1
      %p218 = scmp.lt.s32.totalorder %s215, 15
      %s219 = scalar_select %p218, %s215, 15
      %s220 = smul.addr %s219, 2
      %s221 = smul.addr %s217, 32
      %s222 = sadd.s32 %s220, %s221
      %s223 = smul.addr %s222, 8
      %s224 = scalar_lea.vmem %s3, %s223
      %s225 = smul.u32 16, %s19
      %p226 = scmp.lt.s32.totalorder %s18, 1
      %s227 = scalar_select %p226, %s18, 1
      %p228 = scmp.lt.s32.totalorder %s225, 15
      %s229 = scalar_select %p228, %s225, 15
      %s230 = smul.addr %s229, 2
      %s231 = smul.addr %s227, 32
      %s232 = sadd.s32 %s230, %s231
      %s233 = smul.addr %s232, 8
      %s234 = scalar_lea.vmem %s0, %s233
      %s235 = smul.u32 16, %s19
      %s236 = smul.u32 16, %s19
      %p237 = scmp.lt.s32.totalorder %s236, 15
      %s238 = scalar_select %p237, %s236, 15
      %s239 = smul.addr %s238, 8
      %s240 = scalar_lea.vmem %s1, %s239
      %s241 = smul.u32 16, %s19
      %s242 = smul.u32 16, %s19
      %p243 = scmp.lt.s32.totalorder %s242, 15
      %s244 = scalar_select %p243, %s242, 15
      %s245 = smul.addr %s244, 8
      %s246 = scalar_lea.vmem %s2, %s245
      %s247 = smul.u32 16, %s19
      %s248 = smul.u32 16, %s19
      %p249 = scmp.lt.s32.totalorder %s18, 1
      %s250 = scalar_select %p249, %s18, 1
      %p251 = scmp.lt.s32.totalorder %s248, 15
      %s252 = scalar_select %p251, %s248, 15
      %s253 = smul.addr %s252, 2
      %s254 = smul.addr %s250, 32
      %s255 = sadd.s32 %s253, %s254
      %s256 = smul.addr %s255, 8
      %s257 = scalar_lea.vmem %s3, %s256
      %s258 = smul.u32 16, %s19
      %v259 = vld [vmem:[%s234] sm:$0xff]
      %v260 = vld [vmem:[%s234 + $0x8] sm:$0xff]
      %v261 = vld [vmem:[%s234 + $0x10] sm:$0xff]
      %v262 = vld [vmem:[%s234 + $0x18] sm:$0xff]
      %v263 = vld [vmem:[%s234 + $0x20] sm:$0xff]
      %v264 = vld [vmem:[%s234 + $0x28] sm:$0xff]
      %v265 = vld [vmem:[%s234 + $0x30] sm:$0xff]
      %v266 = vld [vmem:[%s234 + $0x38] sm:$0xff]
      %v267 = vld [vmem:[%s234 + $0x40] sm:$0xff]
      %v268 = vld [vmem:[%s234 + $0x48] sm:$0xff]
      %v269 = vld [vmem:[%s234 + $0x50] sm:$0xff]
      %v270 = vld [vmem:[%s234 + $0x58] sm:$0xff]
      %v271 = vld [vmem:[%s234 + $0x60] sm:$0xff]
      %v272 = vld [vmem:[%s234 + $0x68] sm:$0xff]
      %v273 = vld [vmem:[%s234 + $0x70] sm:$0xff]
      %v274 = vld [vmem:[%s234 + $0x78] sm:$0xff]
      %v275 = vld [vmem:[%s234 + $0x80] sm:$0xff]
      %v276 = vld [vmem:[%s234 + $0x88] sm:$0xff]
      %v277 = vld [vmem:[%s234 + $0x90] sm:$0xff]
      %v278 = vld [vmem:[%s234 + $0x98] sm:$0xff]
      %v279 = vld [vmem:[%s234 + $0xa0] sm:$0xff]
      %v280 = vld [vmem:[%s234 + $0xa8] sm:$0xff]
      %v281 = vld [vmem:[%s234 + $0xb0] sm:$0xff]
      %v282 = vld [vmem:[%s234 + $0xb8] sm:$0xff]
      %v283 = vld [vmem:[%s234 + $0xc0] sm:$0xff]
      %v284 = vld [vmem:[%s234 + $0xc8] sm:$0xff]
      %v285 = vld [vmem:[%s234 + $0xd0] sm:$0xff]
      %v286 = vld [vmem:[%s234 + $0xd8] sm:$0xff]
      %v287 = vld [vmem:[%s234 + $0xe0] sm:$0xff]
      %v288 = vld [vmem:[%s234 + $0xe8] sm:$0xff]
      %v289 = vld [vmem:[%s234 + $0xf0] sm:$0xff]
      %v290 = vld [vmem:[%s234 + $0xf8] sm:$0xff]
      %v291 = vld [vmem:[%s240] sm:$0xff]
      %v292 = vld [vmem:[%s240 + $0x8] sm:$0xff]
      %v293 = vld [vmem:[%s240 + $0x10] sm:$0xff]
      %v294 = vld [vmem:[%s240 + $0x18] sm:$0xff]
      %v295 = vld [vmem:[%s240 + $0x20] sm:$0xff]
      %v296 = vld [vmem:[%s240 + $0x28] sm:$0xff]
      %v297 = vld [vmem:[%s240 + $0x30] sm:$0xff]
      %v298 = vld [vmem:[%s240 + $0x38] sm:$0xff]
      %v299 = vld [vmem:[%s240 + $0x40] sm:$0xff]
      %v300 = vld [vmem:[%s240 + $0x48] sm:$0xff]
      %v301 = vld [vmem:[%s240 + $0x50] sm:$0xff]
      %v302 = vld [vmem:[%s240 + $0x58] sm:$0xff]
      %v303 = vld [vmem:[%s240 + $0x60] sm:$0xff]
      %v304 = vld [vmem:[%s240 + $0x68] sm:$0xff]
      %v305 = vld [vmem:[%s240 + $0x70] sm:$0xff]
      %v306 = vld [vmem:[%s240 + $0x78] sm:$0xff]
      %308 = vset.pattern.permute.xlu0 0
      %309 = vperm.xlu0 %308, %v291
      %v310 = vpop.permute.xlu0 %309
      %313 = vset.pattern.permute.xlu0 0
      %314 = vperm.xlu0 %313, %v292
      %v315 = vpop.permute.xlu0 %314
      %318 = vset.pattern.permute.xlu0 0
      %319 = vperm.xlu0 %318, %v293
      %v320 = vpop.permute.xlu0 %319
      %323 = vset.pattern.permute.xlu0 0
      %324 = vperm.xlu0 %323, %v294
      %v325 = vpop.permute.xlu0 %324
      %328 = vset.pattern.permute.xlu0 0
      %329 = vperm.xlu0 %328, %v295
      %v330 = vpop.permute.xlu0 %329
      %333 = vset.pattern.permute.xlu0 0
      %334 = vperm.xlu0 %333, %v296
      %v335 = vpop.permute.xlu0 %334
      %338 = vset.pattern.permute.xlu0 0
      %339 = vperm.xlu0 %338, %v297
      %v340 = vpop.permute.xlu0 %339
      %343 = vset.pattern.permute.xlu0 0
      %344 = vperm.xlu0 %343, %v298
      %v345 = vpop.permute.xlu0 %344
      %348 = vset.pattern.permute.xlu0 0
      %349 = vperm.xlu0 %348, %v299
      %v350 = vpop.permute.xlu0 %349
      %353 = vset.pattern.permute.xlu0 0
      %354 = vperm.xlu0 %353, %v300
      %v355 = vpop.permute.xlu0 %354
      %358 = vset.pattern.permute.xlu0 0
      %359 = vperm.xlu0 %358, %v301
      %v360 = vpop.permute.xlu0 %359
      %363 = vset.pattern.permute.xlu0 0
      %364 = vperm.xlu0 %363, %v302
      %v365 = vpop.permute.xlu0 %364
      %368 = vset.pattern.permute.xlu0 0
      %369 = vperm.xlu0 %368, %v303
      %v370 = vpop.permute.xlu0 %369
      %373 = vset.pattern.permute.xlu0 0
      %374 = vperm.xlu0 %373, %v304
      %v375 = vpop.permute.xlu0 %374
      %378 = vset.pattern.permute.xlu0 0
      %379 = vperm.xlu0 %378, %v305
      %v380 = vpop.permute.xlu0 %379
      %383 = vset.pattern.permute.xlu0 0
      %384 = vperm.xlu0 %383, %v306
      %v385 = vpop.permute.xlu0 %384
      %v387 = vmul.f32 %v259, %v310
      %v388 = vmul.f32 %v260, %v310
      %v389 = vmul.f32 %v261, %v315
      %v390 = vmul.f32 %v262, %v315
      %v391 = vmul.f32 %v263, %v320
      %v392 = vmul.f32 %v264, %v320
      %v393 = vmul.f32 %v265, %v325
      %v394 = vmul.f32 %v266, %v325
      %v395 = vmul.f32 %v267, %v330
      %v396 = vmul.f32 %v268, %v330
      %v397 = vmul.f32 %v269, %v335
      %v398 = vmul.f32 %v270, %v335
      %v399 = vmul.f32 %v271, %v340
      %v400 = vmul.f32 %v272, %v340
      %v401 = vmul.f32 %v273, %v345
      %v402 = vmul.f32 %v274, %v345
      %v403 = vmul.f32 %v275, %v350
      %v404 = vmul.f32 %v276, %v350
      %v405 = vmul.f32 %v277, %v355
      %v406 = vmul.f32 %v278, %v355
      %v407 = vmul.f32 %v279, %v360
      %v408 = vmul.f32 %v280, %v360
      %v409 = vmul.f32 %v281, %v365
      %v410 = vmul.f32 %v282, %v365
      %v411 = vmul.f32 %v283, %v370
      %v412 = vmul.f32 %v284, %v370
      %v413 = vmul.f32 %v285, %v375
      %v414 = vmul.f32 %v286, %v375
      %v415 = vmul.f32 %v287, %v380
      %v416 = vmul.f32 %v288, %v380
      %v417 = vmul.f32 %v289, %v385
      %v418 = vmul.f32 %v290, %v385
      %v419 = vld [vmem:[%s246] sm:$0xff]
      %v420 = vld [vmem:[%s246 + $0x8] sm:$0xff]
      %v421 = vld [vmem:[%s246 + $0x10] sm:$0xff]
      %v422 = vld [vmem:[%s246 + $0x18] sm:$0xff]
      %v423 = vld [vmem:[%s246 + $0x20] sm:$0xff]
      %v424 = vld [vmem:[%s246 + $0x28] sm:$0xff]
      %v425 = vld [vmem:[%s246 + $0x30] sm:$0xff]
      %v426 = vld [vmem:[%s246 + $0x38] sm:$0xff]
      %v427 = vld [vmem:[%s246 + $0x40] sm:$0xff]
      %v428 = vld [vmem:[%s246 + $0x48] sm:$0xff]
      %v429 = vld [vmem:[%s246 + $0x50] sm:$0xff]
      %v430 = vld [vmem:[%s246 + $0x58] sm:$0xff]
      %v431 = vld [vmem:[%s246 + $0x60] sm:$0xff]
      %v432 = vld [vmem:[%s246 + $0x68] sm:$0xff]
      %v433 = vld [vmem:[%s246 + $0x70] sm:$0xff]
      %v434 = vld [vmem:[%s246 + $0x78] sm:$0xff]
      %436 = vset.pattern.permute.xlu0 0
      %437 = vperm.xlu0 %436, %v419
      %v438 = vpop.permute.xlu0 %437
      %441 = vset.pattern.permute.xlu0 0
      %442 = vperm.xlu0 %441, %v420
      %v443 = vpop.permute.xlu0 %442
      %446 = vset.pattern.permute.xlu0 0
      %447 = vperm.xlu0 %446, %v421
      %v448 = vpop.permute.xlu0 %447
      %451 = vset.pattern.permute.xlu0 0
      %452 = vperm.xlu0 %451, %v422
      %v453 = vpop.permute.xlu0 %452
      %456 = vset.pattern.permute.xlu0 0
      %457 = vperm.xlu0 %456, %v423
      %v458 = vpop.permute.xlu0 %457
      %461 = vset.pattern.permute.xlu0 0
      %462 = vperm.xlu0 %461, %v424
      %v463 = vpop.permute.xlu0 %462
      %466 = vset.pattern.permute.xlu0 0
      %467 = vperm.xlu0 %466, %v425
      %v468 = vpop.permute.xlu0 %467
      %471 = vset.pattern.permute.xlu0 0
      %472 = vperm.xlu0 %471, %v426
      %v473 = vpop.permute.xlu0 %472
      %476 = vset.pattern.permute.xlu0 0
      %477 = vperm.xlu0 %476, %v427
      %v478 = vpop.permute.xlu0 %477
      %481 = vset.pattern.permute.xlu0 0
      %482 = vperm.xlu0 %481, %v428
      %v483 = vpop.permute.xlu0 %482
      %486 = vset.pattern.permute.xlu0 0
      %487 = vperm.xlu0 %486, %v429
      %v488 = vpop.permute.xlu0 %487
      %491 = vset.pattern.permute.xlu0 0
      %492 = vperm.xlu0 %491, %v430
      %v493 = vpop.permute.xlu0 %492
      %496 = vset.pattern.permute.xlu0 0
      %497 = vperm.xlu0 %496, %v431
      %v498 = vpop.permute.xlu0 %497
      %501 = vset.pattern.permute.xlu0 0
      %502 = vperm.xlu0 %501, %v432
      %v503 = vpop.permute.xlu0 %502
      %506 = vset.pattern.permute.xlu0 0
      %507 = vperm.xlu0 %506, %v433
      %v508 = vpop.permute.xlu0 %507
      %511 = vset.pattern.permute.xlu0 0
      %512 = vperm.xlu0 %511, %v434
      %v513 = vpop.permute.xlu0 %512
      %v515 = vadd.f32 %v387, %v438
      %v516 = vadd.f32 %v388, %v438
      %v517 = vadd.f32 %v389, %v443
      %v518 = vadd.f32 %v390, %v443
      %v519 = vadd.f32 %v391, %v448
      %v520 = vadd.f32 %v392, %v448
      %v521 = vadd.f32 %v393, %v453
      %v522 = vadd.f32 %v394, %v453
      %v523 = vadd.f32 %v395, %v458
      %v524 = vadd.f32 %v396, %v458
      %v525 = vadd.f32 %v397, %v463
      %v526 = vadd.f32 %v398, %v463
      %v527 = vadd.f32 %v399, %v468
      %v528 = vadd.f32 %v400, %v468
      %v529 = vadd.f32 %v401, %v473
      %v530 = vadd.f32 %v402, %v473
      %v531 = vadd.f32 %v403, %v478
      %v532 = vadd.f32 %v404, %v478
      %v533 = vadd.f32 %v405, %v483
      %v534 = vadd.f32 %v406, %v483
      %v535 = vadd.f32 %v407, %v488
      %v536 = vadd.f32 %v408, %v488
      %v537 = vadd.f32 %v409, %v493
      %v538 = vadd.f32 %v410, %v493
      %v539 = vadd.f32 %v411, %v498
      %v540 = vadd.f32 %v412, %v498
      %v541 = vadd.f32 %v413, %v503
      %v542 = vadd.f32 %v414, %v503
      %v543 = vadd.f32 %v415, %v508
      %v544 = vadd.f32 %v416, %v508
      %v545 = vadd.f32 %v417, %v513
      %v546 = vadd.f32 %v418, %v513
      %v547 = vmax.f32 %v515, 0.0
      %v548 = vmax.f32 %v516, 0.0
      %v549 = vmax.f32 %v517, 0.0
      %v550 = vmax.f32 %v518, 0.0
      %v551 = vmax.f32 %v519, 0.0
      %v552 = vmax.f32 %v520, 0.0
      %v553 = vmax.f32 %v521, 0.0
      %v554 = vmax.f32 %v522, 0.0
      %v555 = vmax.f32 %v523, 0.0
      %v556 = vmax.f32 %v524, 0.0
      %v557 = vmax.f32 %v525, 0.0
      %v558 = vmax.f32 %v526, 0.0
      %v559 = vmax.f32 %v527, 0.0
      %v560 = vmax.f32 %v528, 0.0
      %v561 = vmax.f32 %v529, 0.0
      %v562 = vmax.f32 %v530, 0.0
      %v563 = vmax.f32 %v531, 0.0
      %v564 = vmax.f32 %v532, 0.0
      %v565 = vmax.f32 %v533, 0.0
      %v566 = vmax.f32 %v534, 0.0
      %v567 = vmax.f32 %v535, 0.0
      %v568 = vmax.f32 %v536, 0.0
      %v569 = vmax.f32 %v537, 0.0
      %v570 = vmax.f32 %v538, 0.0
      %v571 = vmax.f32 %v539, 0.0
      %v572 = vmax.f32 %v540, 0.0
      %v573 = vmax.f32 %v541, 0.0
      %v574 = vmax.f32 %v542, 0.0
      %v575 = vmax.f32 %v543, 0.0
      %v576 = vmax.f32 %v544, 0.0
      %v577 = vmax.f32 %v545, 0.0
      %v578 = vmax.f32 %v546, 0.0
      %579 = vst [vmem:[%s257] sm:$0xff] %v547
      %580 = vst [vmem:[%s257 + $0x8] sm:$0xff] %v548
      %581 = vst [vmem:[%s257 + $0x10] sm:$0xff] %v549
      %582 = vst [vmem:[%s257 + $0x18] sm:$0xff] %v550
      %583 = vst [vmem:[%s257 + $0x20] sm:$0xff] %v551
      %584 = vst [vmem:[%s257 + $0x28] sm:$0xff] %v552
      %585 = vst [vmem:[%s257 + $0x30] sm:$0xff] %v553
      %586 = vst [vmem:[%s257 + $0x38] sm:$0xff] %v554
      %587 = vst [vmem:[%s257 + $0x40] sm:$0xff] %v555
      %588 = vst [vmem:[%s257 + $0x48] sm:$0xff] %v556
      %589 = vst [vmem:[%s257 + $0x50] sm:$0xff] %v557
      %590 = vst [vmem:[%s257 + $0x58] sm:$0xff] %v558
      %591 = vst [vmem:[%s257 + $0x60] sm:$0xff] %v559
      %592 = vst [vmem:[%s257 + $0x68] sm:$0xff] %v560
      %593 = vst [vmem:[%s257 + $0x70] sm:$0xff] %v561
      %594 = vst [vmem:[%s257 + $0x78] sm:$0xff] %v562
      %595 = vst [vmem:[%s257 + $0x80] sm:$0xff] %v563
      %596 = vst [vmem:[%s257 + $0x88] sm:$0xff] %v564
      %597 = vst [vmem:[%s257 + $0x90] sm:$0xff] %v565
      %598 = vst [vmem:[%s257 + $0x98] sm:$0xff] %v566
      %599 = vst [vmem:[%s257 + $0xa0] sm:$0xff] %v567
      %600 = vst [vmem:[%s257 + $0xa8] sm:$0xff] %v568
      %601 = vst [vmem:[%s257 + $0xb0] sm:$0xff] %v569
      %602 = vst [vmem:[%s257 + $0xb8] sm:$0xff] %v570
      %603 = vst [vmem:[%s257 + $0xc0] sm:$0xff] %v571
      %604 = vst [vmem:[%s257 + $0xc8] sm:$0xff] %v572
      %605 = vst [vmem:[%s257 + $0xd0] sm:$0xff] %v573
      %606 = vst [vmem:[%s257 + $0xd8] sm:$0xff] %v574
      %607 = vst [vmem:[%s257 + $0xe0] sm:$0xff] %v575
      %608 = vst [vmem:[%s257 + $0xe8] sm:$0xff] %v576
      %609 = vst [vmem:[%s257 + $0xf0] sm:$0xff] %v577
      %610 = vst [vmem:[%s257 + $0xf8] sm:$0xff] %v578
      %s611 = smul.u32 16, %s19
      %p612 = scmp.lt.s32.totalorder %s18, 1
      %s613 = scalar_select %p612, %s18, 1
      %p614 = scmp.lt.s32.totalorder %s611, 15
      %s615 = scalar_select %p614, %s611, 15
      %s616 = smul.addr %s615, 2
      %s617 = smul.addr %s613, 32
      %s618 = sadd.s32 %s616, %s617
      %s619 = smul.addr %s618, 8
      %s620 = scalar_lea.vmem %s3, %s619
      // Predicated region
      $region33: #{unit_forward.3} parent=31 // pred_check
        %p621 = pneg %p126
      $region34: #{unit_forward.3} parent=31 // pred_check_branch
        %623 = sbr.rel (%p621) target = $region36
      $region35: #{unit_forward.3} parent=31 // pred_region
        %s624 = smul.u32 16, %s19
      $region36: #{unit_forward.3} parent=31 // pred_fallthru
        _
    $region32: #{unit_forward.3} parent=5 // pred_fallthru
      _
    %p625 = scmp.le.s32.totalorder 2, %s9
    // Predicated region
    $region37: #{unit_forward.3} parent=5 // pred_check
      %p626 = pneg %p625
    $region38: #{unit_forward.3} parent=5 // pred_check_branch
      %628 = sbr.rel (%p626) target = $region40
    $region39: #{unit_forward.3} parent=5 // pred_region
      %s629 = ssub.s32 %s9, 2
      // Predicated region
      $region41: #{unit_forward.3} parent=39 // pred_check
        %p630 = pneg %p132
      $region42: #{unit_forward.3} parent=39 // pred_check_branch
        %632 = sbr.rel (%p630) target = $region44
      $region43: #{unit_forward.3} parent=39 // pred_region
        %s633 = smul.u32 16, %s21
        %p634 = scmp.lt.s32.totalorder %s20, 1
        %s635 = scalar_select %p634, %s20, 1
        %p636 = scmp.lt.s32.totalorder %s633, 15
        %s637 = scalar_select %p636, %s633, 15
        %s638 = smul.addr %s637, 2
        %s639 = smul.addr %s635, 32
        %s640 = sadd.s32 %s638, %s639
        %s641 = smul.addr %s640, 8
        %s642 = scalar_lea.vmem %s3, %s641
      $region44: #{unit_forward.3} parent=39 // pred_fallthru
        _
    $region40: #{unit_forward.3} parent=5 // pred_fallthru
      _
  $region6: #{unit_forward.3} parent=0 // loop_footer
    %s13 = sadd.s32 1, %s9
  $region7: #{unit_forward.3} parent=0 // loop_footer_branch
    %8 = sbr.rel target = $region3
  $region8: #{unit_forward.3} parent=0 // loop_exit
    _

// kernel: unit_forward.2
$region0: #{unit_forward.2}
  #allocation0 [shape = 'u32[]', space=smem, size = 0x4, offset = 0x4, fixed_abs, tag = 'smem constant byte address 0x4 - core index']
  #allocation1 [shape = 'u32[144,128]{1,0:T(1,128)}', space=vmem, size = 0x12000, scoped, tag = 'internal scratch']
  %s0 = inlined_call_operand.vmem [shape: f32[2,18,18,4], index: 0, kind: input, shape index: {}]
  %s1 = inlined_call_operand.vmem [shape: f32[9,4,128], index: 1, kind: input, shape index: {}]
  %s2 = inlined_call_operand.vmem [shape: f32[2,128,256], index: 2, kind: output, shape index: {0}]
  %s3 = inlined_call_operand.vmem [shape: f32[2,1,128], index: 3, kind: output, shape index: {1}]
  %s4 = inlined_call_operand.vmem [shape: f32[2,1,128], index: 4, kind: output, shape index: {2}]
  %5 = xla_tuple %s2, %s3, %s4
  %s6 = sld [smem:[#allocation0]]
  $region57: #{unit_forward.2} parent=0
    _
  %s8 = ssub.s32 1, %s6
  %s9 = scalar_select 0, %s8, %s6
  loop: start=0, step=1, limit=4
  $region2: #{unit_forward.2} parent=0 // loop_pre_header
    _
  $region3: #{unit_forward.2} parent=0 // loop_header
    %s11 = sphi 0, %s15
    %p12 = scmp.ge.s32.totalorder %s11, 4
    %s18 = sphi 0, %s30
    %s19 = sphi 0, %s26
    %s20 = sphi 0, %s18
    %s21 = sphi 0, %s19
    %s22 = sphi 0, %s20
    %s23 = sphi 0, %s21
    %s33 = sphi 0, %s35
    %s36 = sphi 0, %s33
    %s37 = sphi 0, %s36
    %s53 = sphi 0, %s37
    %s59 = sphi 0, %s61
    %s62 = sphi 0, %s59
    %s63 = sphi 0, %s62
    %s79 = sphi 0, %s63
    %s87 = sphi 0, %s89
    %s90 = sphi 0, %s87
    %s91 = sphi 0, %s90
    %s107 = sphi 0, %s91
    %s115 = sphi 0, %s117
    %s118 = sphi 0, %s115
    %s119 = sphi 0, %s118
    %s135 = sphi 0, %s119
    %s143 = sphi 0, %s145
    %s146 = sphi 0, %s143
    %s147 = sphi 0, %s146
    %s163 = sphi 0, %s147
  $region4: #{unit_forward.2} parent=0 // loop_header_branch
    %14 = sbr.rel (%p12) target = $region8
  $region5: #{unit_forward.2} parent=0 // loop_body
    %s16 = ssub.s32 %s11, 1
    %s17 = ssub.s32 %s11, 2
    %s24 = sadd.s32 1, %s19
    %p25 = scmp.ge.s32.totalorder %s24, 1
    %s26 = scalar_select %p25, 0, %s24
    %s27 = sadd.s32 1, %s18
    %s28 = scalar_select %p25, %s27, %s18
    %p29 = scmp.ge.s32.totalorder %s28, 2
    %s30 = scalar_select %p29, 0, %s28
    %s31 = ssub.s32 %s18, %s30
    %p32 = scmp.eq.s32.totalorder %s31, 0
    %s34 = sadd.s32 %s33, 1
    %s35 = scalar_select %p32, %s33, %s34
    %p38 = pneg %p32
    %p39 = scmp.eq.s32.totalorder %s11, 1
    %p40 = por %p38, %p39
    %p41 = scmp.ne.s32.totalorder %s33, %s36
    %p42 = scmp.eq.s32.totalorder %s11, 0
    %p43 = por %p41, %p42
    %p44 = scmp.ne.s32.totalorder %s33, %s36
    %p45 = scmp.eq.s32.totalorder %s16, 1
    %p46 = por %p44, %p45
    %p47 = scmp.ne.s32.totalorder %s36, %s37
    %p48 = scmp.eq.s32.totalorder %s16, 0
    %p49 = por %p47, %p48
    %p50 = scmp.ne.s32.totalorder %s36, %s37
    %p51 = scmp.eq.s32.totalorder %s17, 1
    %p52 = por %p50, %p51
    %p54 = scmp.ne.s32.totalorder %s37, %s53
    %p55 = scmp.eq.s32.totalorder %s17, 0
    %p56 = por %p54, %p55
    %s57 = ssub.s32 %s19, %s26
    %p58 = scmp.eq.s32.totalorder %s57, 0
    %s60 = sadd.s32 %s59, 1
    %s61 = scalar_select %p58, %s59, %s60
    %p64 = pneg %p58
    %p65 = scmp.eq.s32.totalorder %s11, 1
    %p66 = por %p64, %p65
    %p67 = scmp.ne.s32.totalorder %s59, %s62
    %p68 = scmp.eq.s32.totalorder %s11, 0
    %p69 = por %p67, %p68
    %p70 = scmp.ne.s32.totalorder %s59, %s62
    %p71 = scmp.eq.s32.totalorder %s16, 1
    %p72 = por %p70, %p71
    %p73 = scmp.ne.s32.totalorder %s62, %s63
    %p74 = scmp.eq.s32.totalorder %s16, 0
    %p75 = por %p73, %p74
    %p76 = scmp.ne.s32.totalorder %s62, %s63
    %p77 = scmp.eq.s32.totalorder %s17, 1
    %p78 = por %p76, %p77
    %p80 = scmp.ne.s32.totalorder %s63, %s79
    %p81 = scmp.eq.s32.totalorder %s17, 0
    %p82 = por %p80, %p81
    %s83 = ssub.s32 %s18, %s30
    %s84 = ssub.s32 %s19, %s26
    %s85 = sor.u32 %s83, %s84
    %p86 = scmp.eq.s32.totalorder %s85, 0
    %s88 = sadd.s32 %s87, 1
    %s89 = scalar_select %p86, %s87, %s88
    %p92 = pneg %p86
    %p93 = scmp.eq.s32.totalorder %s11, 1
    %p94 = por %p92, %p93
    %p95 = scmp.ne.s32.totalorder %s87, %s90
    %p96 = scmp.eq.s32.totalorder %s11, 0
    %p97 = por %p95, %p96
    %p98 = scmp.ne.s32.totalorder %s87, %s90
    %p99 = scmp.eq.s32.totalorder %s16, 1
    %p100 = por %p98, %p99
    %p101 = scmp.ne.s32.totalorder %s90, %s91
    %p102 = scmp.eq.s32.totalorder %s16, 0
    %p103 = por %p101, %p102
    %p104 = scmp.ne.s32.totalorder %s90, %s91
    %p105 = scmp.eq.s32.totalorder %s17, 1
    %p106 = por %p104, %p105
    %p108 = scmp.ne.s32.totalorder %s91, %s107
    %p109 = scmp.eq.s32.totalorder %s17, 0
    %p110 = por %p108, %p109
    %s111 = ssub.s32 %s18, %s30
    %s112 = ssub.s32 %s19, %s26
    %s113 = sor.u32 %s111, %s112
    %p114 = scmp.eq.s32.totalorder %s113, 0
    %s116 = sadd.s32 %s115, 1
    %s117 = scalar_select %p114, %s115, %s116
    %p120 = pneg %p114
    %p121 = scmp.eq.s32.totalorder %s11, 1
    %p122 = por %p120, %p121
    %p123 = scmp.ne.s32.totalorder %s115, %s118
    %p124 = scmp.eq.s32.totalorder %s11, 0
    %p125 = por %p123, %p124
    %p126 = scmp.ne.s32.totalorder %s115, %s118
    %p127 = scmp.eq.s32.totalorder %s16, 1
    %p128 = por %p126, %p127
    %p129 = scmp.ne.s32.totalorder %s118, %s119
    %p130 = scmp.eq.s32.totalorder %s16, 0
    %p131 = por %p129, %p130
    %p132 = scmp.ne.s32.totalorder %s118, %s119
    %p133 = scmp.eq.s32.totalorder %s17, 1
    %p134 = por %p132, %p133
    %p136 = scmp.ne.s32.totalorder %s119, %s135
    %p137 = scmp.eq.s32.totalorder %s17, 0
    %p138 = por %p136, %p137
    %s139 = ssub.s32 %s18, %s30
    %s140 = ssub.s32 %s19, %s26
    %s141 = sor.u32 %s139, %s140
    %p142 = scmp.eq.s32.totalorder %s141, 0
    %s144 = sadd.s32 %s143, 1
    %s145 = scalar_select %p142, %s143, %s144
    %p148 = pneg %p142
    %p149 = scmp.eq.s32.totalorder %s11, 1
    %p150 = por %p148, %p149
    %p151 = scmp.ne.s32.totalorder %s143, %s146
    %p152 = scmp.eq.s32.totalorder %s11, 0
    %p153 = por %p151, %p152
    %p154 = scmp.ne.s32.totalorder %s143, %s146
    %p155 = scmp.eq.s32.totalorder %s16, 1
    %p156 = por %p154, %p155
    %p157 = scmp.ne.s32.totalorder %s146, %s147
    %p158 = scmp.eq.s32.totalorder %s16, 0
    %p159 = por %p157, %p158
    %p160 = scmp.ne.s32.totalorder %s146, %s147
    %p161 = scmp.eq.s32.totalorder %s17, 1
    %p162 = por %p160, %p161
    %p164 = scmp.ne.s32.totalorder %s147, %s163
    %p165 = scmp.eq.s32.totalorder %s17, 0
    %p166 = por %p164, %p165
    %p167 = scmp.le.s32.totalorder 1, %s11
    %p168 = scmp.lt.s32.totalorder %s11, 3
    %p169 = pnand %p167, %p168
    %p170 = pneg %p169
    // Predicated region
    $region9: #{unit_forward.2} parent=5 // pred_check
      _
    $region10: #{unit_forward.2} parent=5 // pred_check_branch
      %172 = sbr.rel (%p169) target = $region12
    $region11: #{unit_forward.2} parent=5 // pred_region
      %s173 = ssub.s32 %s11, 1
      // Predicated region
      $region13: #{unit_forward.2} parent=11 // pred_check
        %p174 = pneg %p75
      $region14: #{unit_forward.2} parent=11 // pred_check_branch
        %176 = sbr.rel (%p174) target = $region16
      $region15: #{unit_forward.2} parent=11 // pred_region
        %p177 = scmp.lt.s32.totalorder %s21, 0
        %s178 = scalar_select %p177, %s21, 0
        %s179 = smul.addr %s178, 4
        %s180 = scalar_lea.vmem %s1, %s179
      $region16: #{unit_forward.2} parent=11 // pred_fallthru
        _
    $region12: #{unit_forward.2} parent=5 // pred_fallthru
      _
    %p181 = scmp.lt.s32.totalorder %s11, 2
    // Predicated region
    $region17: #{unit_forward.2} parent=5 // pred_check
      %p182 = pneg %p181
    $region18: #{unit_forward.2} parent=5 // pred_check_branch
      %184 = sbr.rel (%p182) target = $region20
    $region19: #{unit_forward.2} parent=5 // pred_region
      // Predicated region
      $region21: #{unit_forward.2} parent=19 // pred_check
        %p185 = pneg %p43
      $region22: #{unit_forward.2} parent=19 // pred_check_branch
        %187 = sbr.rel (%p185) target = $region24
      $region23: #{unit_forward.2} parent=19 // pred_region
        %p188 = scmp.lt.s32.totalorder %s18, 1
        %s189 = scalar_select %p188, %s18, 1
        %s190 = smul.addr %s189, 54
        %s191 = smul.addr %s190, 8
        %s192 = scalar_lea.vmem %s0, %s191
      $region24: #{unit_forward.2} parent=19 // pred_fallthru
        _
    $region20: #{unit_forward.2} parent=5 // pred_fallthru
      _
    %p193 = scmp.le.s32.totalorder 1, %s11
    %p194 = scmp.lt.s32.totalorder %s11, 3
    %p195 = pnand %p193, %p194
    %p196 = pneg %p195
    // Predicated region
    $region25: #{unit_forward.2} parent=5 // pred_check
      _
    $region26: #{unit_forward.2} parent=5 // pred_check_branch
      %198 = sbr.rel (%p195) target = $region28
    $region27: #{unit_forward.2} parent=5 // pred_region
      %s199 = ssub.s32 %s11, 1
      %p200 = scmp.lt.s32.totalorder %s20, 1
      %s201 = scalar_select %p200, %s20, 1
      %s202 = smul.addr %s201, 54
      %s203 = smul.addr %s202, 8
      %s204 = scalar_lea.vmem %s0, %s203
      %p205 = pneg %p49
      %p206 = pneg %p46
      %p207 = scmp.lt.s32.totalorder %s21, 0
      %s208 = scalar_select %p207, %s21, 0
      %s209 = smul.addr %s208, 4
      %s210 = scalar_lea.vmem %s1, %s209
      %p211 = pneg %p75
      %p212 = pneg %p72
      %p213 = pneg %p103
      %p214 = pneg %p100
      %s215 = smul.u32 16, %s21
      %p216 = scmp.lt.s32.totalorder %s20, 1
      %s217 = scalar_select %p216, %s20, 1
      %p218 = scmp.lt.s32.totalorder %s215, 15
      %s219 = scalar_select %p218, %s215, 15
      %s220 = smul.addr %s219, 2
      %s221 = smul.addr %s217, 32
      %s222 = sadd.s32 %s220, %s221
      %s223 = smul.addr %s222, 8
      %s224 = scalar_lea.vmem %s2, %s223
      %p225 = pneg %p131
      %p226 = pneg %p128
      %p227 = scmp.lt.s32.totalorder %s20, 1
      %s228 = scalar_select %p227, %s20, 1
      %p229 = scmp.lt.s32.totalorder %s21, 0
      %s230 = scalar_select %p229, %s21, 0
      %s231 = sadd.s32 %s230, %s228
      %s232 = scalar_lea.vmem %s3, %s231
      %p233 = pneg %p159
      %p234 = pneg %p156
      %p235 = scmp.lt.s32.totalorder %s20, 1
      %s236 = scalar_select %p235, %s20, 1
      %p237 = scmp.lt.s32.totalorder %s21, 0
      %s238 = scalar_select %p237, %s21, 0
      %s239 = sadd.s32 %s238, %s236
      %s240 = scalar_lea.vmem %s4, %s239
      %p241 = scmp.lt.s32.totalorder %s20, 1
      %s242 = scalar_select %p241, %s20, 1
      %s243 = smul.addr %s242, 54
      %s244 = smul.addr %s243, 8
      %s245 = scalar_lea.vmem %s0, %s244
      %p246 = scmp.lt.s32.totalorder %s21, 0
      %s247 = scalar_select %p246, %s21, 0
      %s248 = smul.addr %s247, 4
      %s249 = scalar_lea.vmem %s1, %s248
      %s250 = smul.u32 16, %s21
      %p251 = scmp.lt.s32.totalorder %s20, 1
      %s252 = scalar_select %p251, %s20, 1
      %p253 = scmp.lt.s32.totalorder %s250, 15
      %s254 = scalar_select %p253, %s250, 15
      %s255 = smul.addr %s254, 2
      %s256 = smul.addr %s252, 32
      %s257 = sadd.s32 %s255, %s256
      %s258 = smul.addr %s257, 8
      %s259 = scalar_lea.vmem %s2, %s258
      %s260 = smul.u32 16, %s21
      %p261 = scmp.lt.s32.totalorder %s20, 1
      %s262 = scalar_select %p261, %s20, 1
      %p263 = scmp.lt.s32.totalorder %s21, 0
      %s264 = scalar_select %p263, %s21, 0
      %s265 = sadd.s32 %s264, %s262
      %s266 = scalar_lea.vmem %s3, %s265
      %p267 = scmp.lt.s32.totalorder %s20, 1
      %s268 = scalar_select %p267, %s20, 1
      %p269 = scmp.lt.s32.totalorder %s21, 0
      %s270 = scalar_select %p269, %s21, 0
      %s271 = sadd.s32 %s270, %s268
      %s272 = scalar_lea.vmem %s4, %s271
      %v273 = vld [vmem:[%s245] sm:$0xff]
      %v274 = vld [vmem:[%s245 + $0x8] sm:$0xff]
      %v275 = vld [vmem:[%s245 + $0x18] sm:$0xff]
      %v276 = vld [vmem:[%s245 + $0x20] sm:$0xff]
      %v277 = vld [vmem:[%s245 + $0x30] sm:$0xff]
      %v278 = vld [vmem:[%s245 + $0x38] sm:$0xff]
      %v279 = vld [vmem:[%s245 + $0x48] sm:$0xff]
      %v280 = vld [vmem:[%s245 + $0x50] sm:$0xff]
      %v281 = vld [vmem:[%s245 + $0x60] sm:$0xff]
      %v282 = vld [vmem:[%s245 + $0x68] sm:$0xff]
      %v283 = vld [vmem:[%s245 + $0x78] sm:$0xff]
      %v284 = vld [vmem:[%s245 + $0x80] sm:$0xff]
      %v285 = vld [vmem:[%s245 + $0x90] sm:$0xff]
      %v286 = vld [vmem:[%s245 + $0x98] sm:$0xff]
      %v287 = vld [vmem:[%s245 + $0xa8] sm:$0xff]
      %v288 = vld [vmem:[%s245 + $0xb0] sm:$0xff]
      %v289 = vld [vmem:[%s245 + $0xc0] sm:$0xff]
      %v290 = vld [vmem:[%s245 + $0xc8] sm:$0xff]
      %v291 = vld [vmem:[%s245 + $0xd8] sm:$0xff]
      %v292 = vld [vmem:[%s245 + $0xe0] sm:$0xff]
      %v293 = vld [vmem:[%s245 + $0xf0] sm:$0xff]
      %v294 = vld [vmem:[%s245 + $0xf8] sm:$0xff]
      %v295 = vld [vmem:[%s245 + $0x108] sm:$0xff]
      %v296 = vld [vmem:[%s245 + $0x110] sm:$0xff]
      %v297 = vld [vmem:[%s245 + $0x120] sm:$0xff]
      %v298 = vld [vmem:[%s245 + $0x128] sm:$0xff]
      %v299 = vld [vmem:[%s245 + $0x138] sm:$0xff]
      %v300 = vld [vmem:[%s245 + $0x140] sm:$0xff]
      %v301 = vld [vmem:[%s245 + $0x150] sm:$0xff]
      %v302 = vld [vmem:[%s245 + $0x158] sm:$0xff]
      %v303 = vld [vmem:[%s245 + $0x168] sm:$0xff]
      %v304 = vld [vmem:[%s245 + $0x170] sm:$0xff]
      %v305 = vld [vmem:[%s249] sm:$0xf]
      %v306 = vld [vmem:[%s245 + $0x1] sm:$0xff]
      %v307 = vld [vmem:[%s245 + $0x9] sm:$0xff]
      %v308 = vld [vmem:[%s245 + $0x19] sm:$0xff]
      %v309 = vld [vmem:[%s245 + $0x21] sm:$0xff]
      %v310 = vld [vmem:[%s245 + $0x31] sm:$0xff]
      %v311 = vld [vmem:[%s245 + $0x39] sm:$0xff]
      %v312 = vld [vmem:[%s245 + $0x49] sm:$0xff]
      %v313 = vld [vmem:[%s245 + $0x51] sm:$0xff]
      %v314 = vld [vmem:[%s245 + $0x61] sm:$0xff]
      %v315 = vld [vmem:[%s245 + $0x69] sm:$0xff]
      %v316 = vld [vmem:[%s245 + $0x79] sm:$0xff]
      %v317 = vld [vmem:[%s245 + $0x81] sm:$0xff]
      %v318 = vld [vmem:[%s245 + $0x91] sm:$0xff]
      %v319 = vld [vmem:[%s245 + $0x99] sm:$0xff]
      %v320 = vld [vmem:[%s245 + $0xa9] sm:$0xff]
      %v321 = vld [vmem:[%s245 + $0xb1] sm:$0xff]
      %v322 = vld [vmem:[%s245 + $0xc1] sm:$0xff]
      %v323 = vld [vmem:[%s245 + $0xc9] sm:$0xff]
      %v324 = vld [vmem:[%s245 + $0xd9] sm:$0xff]
      %v325 = vld [vmem:[%s245 + $0xe1] sm:$0xff]
      %v326 = vld [vmem:[%s245 + $0xf1] sm:$0xff]
      %v327 = vld [vmem:[%s245 + $0xf9] sm:$0xff]
      %v328 = vld [vmem:[%s245 + $0x109] sm:$0xff]
      %v329 = vld [vmem:[%s245 + $0x111] sm:$0xff]
      %v330 = vld [vmem:[%s245 + $0x121] sm:$0xff]
      %v331 = vld [vmem:[%s245 + $0x129] sm:$0xff]
      %v332 = vld [vmem:[%s245 + $0x139] sm:$0xff]
      %v333 = vld [vmem:[%s245 + $0x141] sm:$0xff]
      %v334 = vld [vmem:[%s245 + $0x151] sm:$0xff]
      %v335 = vld [vmem:[%s245 + $0x159] sm:$0xff]
      %v336 = vld [vmem:[%s245 + $0x169] sm:$0xff]
      %v337 = vld [vmem:[%s245 + $0x171] sm:$0xff]
      %s338 = scalar_lea.vmem %s249, 4
      %v339 = vld [vmem:[%s338] sm:$0xf]
      %vm340 = vcmask 31744
      %v342 = vsel %vm340, %v306, 0
      %v345 = vsel %vm340, %v307, 0
      %v348 = vsel %vm340, %v308, 0
      %v351 = vsel %vm340, %v309, 0
      %v354 = vsel %vm340, %v310, 0
      %v357 = vsel %vm340, %v311, 0
      %v360 = vsel %vm340, %v312, 0
      %v363 = vsel %vm340, %v313, 0
      %v366 = vsel %vm340, %v314, 0
      %v369 = vsel %vm340, %v315, 0
      %v372 = vsel %vm340, %v316, 0
      %v375 = vsel %vm340, %v317, 0
      %v378 = vsel %vm340, %v318, 0
      %v381 = vsel %vm340, %v319, 0
      %v384 = vsel %vm340, %v320, 0
      %v387 = vsel %vm340, %v321, 0
      %v390 = vsel %vm340, %v322, 0
      %v393 = vsel %vm340, %v323, 0
      %v396 = vsel %vm340, %v324, 0
      %v399 = vsel %vm340, %v325, 0
      %v402 = vsel %vm340, %v326, 0
      %v405 = vsel %vm340, %v327, 0
      %v408 = vsel %vm340, %v328, 0
      %v411 = vsel %vm340, %v329, 0
      %v414 = vsel %vm340, %v330, 0
      %v417 = vsel %vm340, %v331, 0
      %v420 = vsel %vm340, %v332, 0
      %v423 = vsel %vm340, %v333, 0
      %v426 = vsel %vm340, %v334, 0
      %v429 = vsel %vm340, %v335, 0
      %v432 = vsel %vm340, %v336, 0
      %v435 = vsel %vm340, %v337, 0
      %vm437 = vcmask 1043456
      %v439 = vsel %vm437, %v339, 0
      %441 = vmatprep.subr.mxu0 0.0
      %442 = vmatpush1.msra.mxu0 %v439
      %443 = vmatprep.subr.mxu0 0.0
      %444 = vmatpush1.msra.mxu0 0.0
      %445 = vmatprep.subr.mxu0 0.0
      %446 = vmatpush1.msra.mxu0 0.0
      %447 = vmatprep.subr.mxu0 0.0
      %448 = vmatpush1.msra.mxu0 0.0
      %449 = vmatprep.subr.mxu0 0.0
      %450 = vmatpush1.msra.mxu0 0.0
      %451 = vmatprep.subr.mxu0 0.0
      %452 = vmatpush1.msra.mxu0 0.0
      %453 = vmatprep.subr.mxu0 0.0
      %454 = vmatpush1.msra.mxu0 0.0
      %455 = vmatprep.subr.mxu0 0.0
      %456 = vmatpush1.msra.mxu0 0.0
      %457 = vmatprep.subr.mxu0 0.0
      %458 = vmatpush1.msra.mxu0 0.0
      %459 = vmatprep.subr.mxu0 0.0
      %460 = vmatpush1.msra.mxu0 0.0
      %461 = vmatprep.subr.mxu0 0.0
      %462 = vmatpush1.msra.mxu0 0.0
      %463 = vmatprep.subr.mxu0 0.0
      %464 = vmatpush1.msra.mxu0 0.0
      %465 = vmatprep.subr.mxu0 0.0
      %466 = vmatpush1.msra.mxu0 0.0
      %467 = vmatprep.subr.mxu0 0.0
      %468 = vmatpush1.msra.mxu0 0.0
      %469 = vmatprep.subr.mxu0 0.0
      %470 = vmatpush1.msra.mxu0 0.0
      %471 = vmatprep.subr.mxu0 0.0
      %472 = vmatpush1.msra.mxu0 0.0
      %473 = vmatprep.subr.mxu0 0.0
      %474 = vmatpush1.msra.mxu0 0.0
      %475 = vmatprep.subr.mxu0 0.0
      %476 = vmatpush1.msra.mxu0 0.0
      %477 = vmatprep.subr.mxu0 0.0
      %478 = vmatpush1.msra.mxu0 0.0
      %479 = vmatprep.subr.mxu0 0.0
      %480 = vmatpush1.msra.mxu0 0.0
      %481 = vmatprep.subr.mxu0 0.0
      %482 = vmatpush1.msra.mxu0 0.0
      %483 = vmatprep.subr.mxu0 0.0
      %484 = vmatpush1.msra.mxu0 0.0
      %485 = vmatprep.subr.mxu0 0.0
      %486 = vmatpush1.msra.mxu0 0.0
      %487 = vmatprep.subr.mxu0 0.0
      %488 = vmatpush1.msra.mxu0 0.0
      %489 = vmatprep.subr.mxu0 0.0
      %490 = vmatpush1.msra.mxu0 0.0
      %491 = vmatprep.subr.mxu0 0.0
      %492 = vmatpush1.msra.mxu0 0.0
      %493 = vmatprep.subr.mxu0 0.0
      %494 = vmatpush1.msra.mxu0 0.0
      %495 = vmatprep.subr.mxu0 0.0
      %496 = vmatpush1.msra.mxu0 0.0
      %497 = vmatprep.subr.mxu0 0.0
      %498 = vmatpush1.msra.mxu0 0.0
      %499 = vmatprep.subr.mxu0 0.0
      %500 = vmatpush1.msra.mxu0 0.0
      %501 = vmatprep.subr.mxu0 0.0
      %502 = vmatpush1.msra.mxu0 0.0
      %503 = vmatprep.subr.mxu0 0.0
      %504 = vmatpush1.msra.mxu0 0.0
      %505 = vmatprep.mubr.f32.mxu0 0.0
      %506 = vmatmul.mubr.f32.gmra.mrb[0].mxu0 %v342
      %v507 = vpop.f32.mrb[0].mxu0
      %v508 = vadd.f32 0.0, %v507
      %v509 = vpop.f32.mrb[0].mxu0
      %510 = vmatprep.mubr.f32.mxu0 0.0
      %511 = vmatmul.mubr.f32.gmra.mrb[0].mxu0 %v345
      %v512 = vpop.f32.mrb[0].mxu0
      %v513 = vadd.f32 0.0, %v512
      %v514 = vpop.f32.mrb[0].mxu0
      %515 = vmatprep.mubr.f32.mxu0 0.0
      %516 = vmatmul.mubr.f32.gmra.mrb[0].mxu0 %v348
      %v517 = vpop.f32.mrb[0].mxu0
      %v518 = vadd.f32 0.0, %v517
      %v519 = vpop.f32.mrb[0].mxu0
      %520 = vmatprep.mubr.f32.mxu0 0.0
      %521 = vmatmul.mubr.f32.gmra.mrb[0].mxu0 %v351
      %v522 = vpop.f32.mrb[0].mxu0
      %v523 = vadd.f32 0.0, %v522
      %v524 = vpop.f32.mrb[0].mxu0
      %525 = vmatprep.mubr.f32.mxu0 0.0
      %526 = vmatmul.mubr.f32.gmra.mrb[0].mxu0 %v354
      %v527 = vpop.f32.mrb[0].mxu0
      %v528 = vadd.f32 0.0, %v527
      %v529 = vpop.f32.mrb[0].mxu0
      %530 = vmatprep.mubr.f32.mxu0 0.0
      %531 = vmatmul.mubr.f32.gmra.mrb[0].mxu0 %v357
      %v532 = vpop.f32.mrb[0].mxu0
      %v533 = vadd.f32 0.0, %v532
      %v534 = vpop.f32.mrb[0].mxu0
      %535 = vmatprep.mubr.f32.mxu0 0.0
      %536 = vmatmul.mubr.f32.gmra.mrb[0].mxu0 %v360
      %v537 = vpop.f32.mrb[0].mxu0
      %v538 = vadd.f32 0.0, %v537
      %v539 = vpop.f32.mrb[0].mxu0
      %540 = vmatprep.mubr.f32.mxu0 0.0
      %541 = vmatmul.mubr.f32.gmra.mrb[0].mxu0 %v363
      %v542 = vpop.f32.mrb[0].mxu0
      %v543 = vadd.f32 0.0, %v542
      %v544 = vpop.f32.mrb[0].mxu0
      %545 = vmatprep.mubr.f32.mxu0 0.0
      %546 = vmatmul.mubr.f32.gmra.mrb[0].mxu0 %v366
      %v547 = vpop.f32.mrb[0].mxu0
      %v548 = vadd.f32 0.0, %v547
      %v549 = vpop.f32.mrb[0].mxu0
      %550 = vmatprep.mubr.f32.mxu0 0.0
      %551 = vmatmul.mubr.f32.gmra.mrb[0].mxu0 %v369
      %v552 = vpop.f32.mrb[0].mxu0
      %v553 = vadd.f32 0.0, %v552
      %v554 = vpop.f32.mrb[0].mxu0
      %555 = vmatprep.mubr.f32.mxu0 0.0
      %556 = vmatmul.mubr.f32.gmra.mrb[0].mxu0 %v372
      %v557 = vpop.f32.mrb[0].mxu0
      %v558 = vadd.f32 0.0, %v557
      %v559 = vpop.f32.mrb[0].mxu0
      %560 = vmatprep.mubr.f32.mxu0 0.0
      %561 = vmatmul.mubr.f32.gmra.mrb[0].mxu0 %v375
      %v562 = vpop.f32.mrb[0].mxu0
      %v563 = vadd.f32 0.0, %v562
      %v564 = vpop.f32.mrb[0].mxu0
      %565 = vmatprep.mubr.f32.mxu0 0.0
      %566 = vmatmul.mubr.f32.gmra.mrb[0].mxu0 %v378
      %v567 = vpop.f32.mrb[0].mxu0
      %v568 = vadd.f32 0.0, %v567
      %v569 = vpop.f32.mrb[0].mxu0
      %570 = vmatprep.mubr.f32.mxu0 0.0
      %571 = vmatmul.mubr.f32.gmra.mrb[0].mxu0 %v381
      %v572 = vpop.f32.mrb[0].mxu0
      %v573 = vadd.f32 0.0, %v572
      %v574 = vpop.f32.mrb[0].mxu0
      %575 = vmatprep.mubr.f32.mxu0 0.0
      %576 = vmatmul.mubr.f32.gmra.mrb[0].mxu0 %v384
      %v577 = vpop.f32.mrb[0].mxu0
      %v578 = vadd.f32 0.0, %v577
      %v579 = vpop.f32.mrb[0].mxu0
      %580 = vmatprep.mubr.f32.mxu0 0.0
      %581 = vmatmul.mubr.f32.gmra.mrb[0].mxu0 %v387
      %v582 = vpop.f32.mrb[0].mxu0
      %v583 = vadd.f32 0.0, %v582
      %v584 = vpop.f32.mrb[0].mxu0
      %585 = vmatprep.mubr.f32.mxu0 0.0
      %586 = vmatmul.mubr.f32.gmra.mrb[0].mxu0 %v390
      %v587 = vpop.f32.mrb[0].mxu0
      %v588 = vadd.f32 0.0, %v587
      %v589 = vpop.f32.mrb[0].mxu0
      %590 = vmatprep.mubr.f32.mxu0 0.0
      %591 = vmatmul.mubr.f32.gmra.mrb[0].mxu0 %v393
      %v592 = vpop.f32.mrb[0].mxu0
      %v593 = vadd.f32 0.0, %v592
      %v594 = vpop.f32.mrb[0].mxu0
      %595 = vmatprep.mubr.f32.mxu0 0.0
      %596 = vmatmul.mubr.f32.gmra.mrb[0].mxu0 %v396
      %v597 = vpop.f32.mrb[0].mxu0
      %v598 = vadd.f32 0.0, %v597
      %v599 = vpop.f32.mrb[0].mxu0
      %600 = vmatprep.mubr.f32.mxu0 0.0
      %601 = vmatmul.mubr.f32.gmra.mrb[0].mxu0 %v399
      %v602 = vpop.f32.mrb[0].mxu0
      %v603 = vadd.f32 0.0, %v602
      %v604 = vpop.f32.mrb[0].mxu0
      %605 = vmatprep.mubr.f32.mxu0 0.0
      %606 = vmatmul.mubr.f32.gmra.mrb[0].mxu0 %v402
      %v607 = vpop.f32.mrb[0].mxu0
      %v608 = vadd.f32 0.0, %v607
      %v609 = vpop.f32.mrb[0].mxu0
      %610 = vmatprep.mubr.f32.mxu0 0.0
      %611 = vmatmul.mubr.f32.gmra.mrb[0].mxu0 %v405
      %v612 = vpop.f32.mrb[0].mxu0
      %v613 = vadd.f32 0.0, %v612
      %v614 = vpop.f32.mrb[0].mxu0
      %615 = vmatprep.mubr.f32.mxu0 0.0
      %616 = vmatmul.mubr.f32.gmra.mrb[0].mxu0 %v408
      %v617 = vpop.f32.mrb[0].mxu0
      %v618 = vadd.f32 0.0, %v617
      %v619 = vpop.f32.mrb[0].mxu0
      %620 = vmatprep.mubr.f32.mxu0 0.0
      %621 = vmatmul.mubr.f32.gmra.mrb[0].mxu0 %v411
      %v622 = vpop.f32.mrb[0].mxu0
      %v623 = vadd.f32 0.0, %v622
      %v624 = vpop.f32.mrb[0].mxu0
      %625 = vmatprep.mubr.f32.mxu0 0.0
      %626 = vmatmul.mubr.f32.gmra.mrb[0].mxu0 %v414
      %v627 = vpop.f32.mrb[0].mxu0
      %v628 = vadd.f32 0.0, %v627
      %v629 = vpop.f32.mrb[0].mxu0
      %630 = vmatprep.mubr.f32.mxu0 0.0
      %631 = vmatmul.mubr.f32.gmra.mrb[0].mxu0 %v417
      %v632 = vpop.f32.mrb[0].mxu0
      %v633 = vadd.f32 0.0, %v632
      %v634 = vpop.f32.mrb[0].mxu0
      %635 = vmatprep.mubr.f32.mxu0 0.0
      %636 = vmatmul.mubr.f32.gmra.mrb[0].mxu0 %v420
      %v637 = vpop.f32.mrb[0].mxu0
      %v638 = vadd.f32 0.0, %v637
      %v639 = vpop.f32.mrb[0].mxu0
      %640 = vmatprep.mubr.f32.mxu0 0.0
      %641 = vmatmul.mubr.f32.gmra.mrb[0].mxu0 %v423
      %v642 = vpop.f32.mrb[0].mxu0
      %v643 = vadd.f32 0.0, %v642
      %v644 = vpop.f32.mrb[0].mxu0
      %645 = vmatprep.mubr.f32.mxu0 0.0
      %646 = vmatmul.mubr.f32.gmra.mrb[0].mxu0 %v426
      %v647 = vpop.f32.mrb[0].mxu0
      %v648 = vadd.f32 0.0, %v647
      %v649 = vpop.f32.mrb[0].mxu0
      %650 = vmatprep.mubr.f32.mxu0 0.0
      %651 = vmatmul.mubr.f32.gmra.mrb[0].mxu0 %v429
      %v652 = vpop.f32.mrb[0].mxu0
      %v653 = vadd.f32 0.0, %v652
      %v654 = vpop.f32.mrb[0].mxu0
      %655 = vmatprep.mubr.f32.mxu0 0.0
      %656 = vmatmul.mubr.f32.gmra.mrb[0].mxu0 %v432
      %v657 = vpop.f32.mrb[0].mxu0
      %v658 = vadd.f32 0.0, %v657
      %v659 = vpop.f32.mrb[0].mxu0
      %660 = vmatprep.mubr.f32.mxu0 0.0
      %661 = vmatmul.mubr.f32.gmra.mrb[0].mxu0 %v435
      %v662 = vpop.f32.mrb[0].mxu0
      %v663 = vadd.f32 0.0, %v662
      %v664 = vpop.f32.mrb[0].mxu0
      %665 = vdwg.mxu0
      %v667 = vsel %vm340, %v273, 0
      %v670 = vsel %vm340, %v274, 0
      %v673 = vsel %vm340, %v275, 0
      %v676 = vsel %vm340, %v276, 0
      %v679 = vsel %vm340, %v277, 0
      %v682 = vsel %vm340, %v278, 0
      %v685 = vsel %vm340, %v279, 0
      %v688 = vsel %vm340, %v280, 0
      %v691 = vsel %vm340, %v281, 0
      %v694 = vsel %vm340, %v282, 0
      %v697 = vsel %vm340, %v283, 0
      %v700 = vsel %vm340, %v284, 0
      %v703 = vsel %vm340, %v285, 0
      %v706 = vsel %vm340, %v286, 0
      %v709 = vsel %vm340, %v287, 0
      %v712 = vsel %vm340, %v288, 0
      %v715 = vsel %vm340, %v289, 0
      %v718 = vsel %vm340, %v290, 0
      %v721 = vsel %vm340, %v291, 0
      %v724 = vsel %vm340, %v292, 0
      %v727 = vsel %vm340, %v293, 0
      %v730 = vsel %vm340, %v294, 0
      %v733 = vsel %vm340, %v295, 0
      %v736 = vsel %vm340, %v296, 0
      %v739 = vsel %vm340, %v297, 0
      %v742 = vsel %vm340, %v298, 0
      %v745 = vsel %vm340, %v299, 0
      %v748 = vsel %vm340, %v300, 0
      %v751 = vsel %vm340, %v301, 0
      %v754 = vsel %vm340, %v302, 0
      %v757 = vsel %vm340, %v303, 0
      %v760 = vsel %vm340, %v304, 0
      %v763 = vsel %vm437, %v305, 0
      %765 = vmatprep.subr.mxu0 0.0
      %766 = vmatpush1.msra.mxu0 %v763
      %767 = vmatprep.subr.mxu0 0.0
      %768 = vmatpush1.msra.mxu0 0.0
      %769 = vmatprep.subr.mxu0 0.0
      %770 = vmatpush1.msra.mxu0 0.0
      %771 = vmatprep.subr.mxu0 0.0
      %772 = vmatpush1.msra.mxu0 0.0
      %773 = vmatprep.subr.mxu0 0.0
      %774 = vmatpush1.msra.mxu0 0.0
      %775 = vmatprep.subr.mxu0 0.0
      %776 = vmatpush1.msra.mxu0 0.0
      %777 = vmatprep.subr.mxu0 0.0
      %778 = vmatpush1.msra.mxu0 0.0
      %779 = vmatprep.subr.mxu0 0.0
      %780 = vmatpush1.msra.mxu0 0.0
      %781 = vmatprep.subr.mxu0 0.0
      %782 = vmatpush1.msra.mxu0 0.0
      %783 = vmatprep.subr.mxu0 0.0
      %784 = vmatpush1.msra.mxu0 0.0
      %785 = vmatprep.subr.mxu0 0.0
      %786 = vmatpush1.msra.mxu0 0.0
      %787 = vmatprep.subr.mxu0 0.0
      %788 = vmatpush1.msra.mxu0 0.0
      %789 = vmatprep.subr.mxu0 0.0
      %790 = vmatpush1.msra.mxu0 0.0
      %791 = vmatprep.subr.mxu0 0.0
      %792 = vmatpush1.msra.mxu0 0.0
      %793 = vmatprep.subr.mxu0 0.0
      %794 = vmatpush1.msra.mxu0 0.0
      %795 = vmatprep.subr.mxu0 0.0
      %796 = vmatpush1.msra.mxu0 0.0
      %797 = vmatprep.subr.mxu0 0.0
      %798 = vmatpush1.msra.mxu0 0.0
      %799 = vmatprep.subr.mxu0 0.0
      %800 = vmatpush1.msra.mxu0 0.0
      %801 = vmatprep.subr.mxu0 0.0
      %802 = vmatpush1.msra.mxu0 0.0
      %803 = vmatprep.subr.mxu0 0.0
      %804 = vmatpush1.msra.mxu0 0.0
      %805 = vmatprep.subr.mxu0 0.0
      %806 = vmatpush1.msra.mxu0 0.0
      %807 = vmatprep.subr.mxu0 0.0
      %808 = vmatpush1.msra.mxu0 0.0
      %809 = vmatprep.subr.mxu0 0.0
      %810 = vmatpush1.msra.mxu0 0.0
      %811 = vmatprep.subr.mxu0 0.0
      %812 = vmatpush1.msra.mxu0 0.0
      %813 = vmatprep.subr.mxu0 0.0
      %814 = vmatpush1.msra.mxu0 0.0
      %815 = vmatprep.subr.mxu0 0.0
      %816 = vmatpush1.msra.mxu0 0.0
      %817 = vmatprep.subr.mxu0 0.0
      %818 = vmatpush1.msra.mxu0 0.0
      %819 = vmatprep.subr.mxu0 0.0
      %820 = vmatpush1.msra.mxu0 0.0
      %821 = vmatprep.subr.mxu0 0.0
      %822 = vmatpush1.msra.mxu0 0.0
      %823 = vmatprep.subr.mxu0 0.0
      %824 = vmatpush1.msra.mxu0 0.0
      %825 = vmatprep.subr.mxu0 0.0
      %826 = vmatpush1.msra.mxu0 0.0
      %827 = vmatprep.subr.mxu0 0.0
      %828 = vmatpush1.msra.mxu0 0.0
      %829 = vmatprep.mubr.f32.mxu0 0.0
      %830 = vmatmul.mubr.f32.gmra.mrb[0].mxu0 %v667
      %v831 = vpop.f32.mrb[0].mxu0
      %v832 = vadd.f32 %v508, %v831
      %v833 = vpop.f32.mrb[0].mxu0
      %834 = vmatprep.mubr.f32.mxu0 0.0
      %835 = vmatmul.mubr.f32.gmra.mrb[0].mxu0 %v670
      %v836 = vpop.f32.mrb[0].mxu0
      %v837 = vadd.f32 %v513, %v836
      %v838 = vpop.f32.mrb[0].mxu0
      %839 = vmatprep.mubr.f32.mxu0 0.0
      %840 = vmatmul.mubr.f32.gmra.mrb[0].mxu0 %v673
      %v841 = vpop.f32.mrb[0].mxu0
      %v842 = vadd.f32 %v518, %v841
      %v843 = vpop.f32.mrb[0].mxu0
      %844 = vmatprep.mubr.f32.mxu0 0.0
      %845 = vmatmul.mubr.f32.gmra.mrb[0].mxu0 %v676
      %v846 = vpop.f32.mrb[0].mxu0
      %v847 = vadd.f32 %v523, %v846
      %v848 = vpop.f32.mrb[0].mxu0
      %849 = vmatprep.mubr.f32.mxu0 0.0
      %850 = vmatmul.mubr.f32.gmra.mrb[0].mxu0 %v679
      %v851 = vpop.f32.mrb[0].mxu0
      %v852 = vadd.f32 %v528, %v851
      %v853 = vpop.f32.mrb[0].mxu0
      %854 = vmatprep.mubr.f32.mxu0 0.0
      %855 = vmatmul.mubr.f32.gmra.mrb[0].mxu0 %v682
      %v856 = vpop.f32.mrb[0].mxu0
      %v857 = vadd.f32 %v533, %v856
      %v858 = vpop.f32.mrb[0].mxu0
      %859 = vmatprep.mubr.f32.mxu0 0.0
      %860 = vmatmul.mubr.f32.gmra.mrb[0].mxu0 %v685
      %v861 = vpop.f32.mrb[0].mxu0
      %v862 = vadd.f32 %v538, %v861
      %v863 = vpop.f32.mrb[0].mxu0
      %864 = vmatprep.mubr.f32.mxu0 0.0
      %865 = vmatmul.mubr.f32.gmra.mrb[0].mxu0 %v688
      %v866 = vpop.f32.mrb[0].mxu0
      %v867 = vadd.f32 %v543, %v866
      %v868 = vpop.f32.mrb[0].mxu0
      %869 = vmatprep.mubr.f32.mxu0 0.0
      %870 = vmatmul.mubr.f32.gmra.mrb[0].mxu0 %v691
      %v871 = vpop.f32.mrb[0].mxu0
      %v872 = vadd.f32 %v548, %v871
      %v873 = vpop.f32.mrb[0].mxu0
      %874 = vmatprep.mubr.f32.mxu0 0.0
      %875 = vmatmul.mubr.f32.gmra.mrb[0].mxu0 %v694
      %v876 = vpop.f32.mrb[0].mxu0
      %v877 = vadd.f32 %v553, %v876
      %v878 = vpop.f32.mrb[0].mxu0
      %879 = vmatprep.mubr.f32.mxu0 0.0
      %880 = vmatmul.mubr.f32.gmra.mrb[0].mxu0 %v697
      %v881 = vpop.f32.mrb[0].mxu0
      %v882 = vadd.f32 %v558, %v881
      %v883 = vpop.f32.mrb[0].mxu0
      %884 = vmatprep.mubr.f32.mxu0 0.0
      %885 = vmatmul.mubr.f32.gmra.mrb[0].mxu0 %v700
      %v886 = vpop.f32.mrb[0].mxu0
      %v887 = vadd.f32 %v563, %v886
      %v888 = vpop.f32.mrb[0].mxu0
      %889 = vmatprep.mubr.f32.mxu0 0.0
      %890 = vmatmul.mubr.f32.gmra.mrb[0].mxu0 %v703
      %v891 = vpop.f32.mrb[0].mxu0
      %v892 = vadd.f32 %v568, %v891
      %v893 = vpop.f32.mrb[0].mxu0
      %894 = vmatprep.mubr.f32.mxu0 0.0
      %895 = vmatmul.mubr.f32.gmra.mrb[0].mxu0 %v706
      %v896 = vpop.f32.mrb[0].mxu0
      %v897 = vadd.f32 %v573, %v896
      %v898 = vpop.f32.mrb[0].mxu0
      %899 = vmatprep.mubr.f32.mxu0 0.0
      %900 = vmatmul.mubr.f32.gmra.mrb[0].mxu0 %v709
      %v901 = vpop.f32.mrb[0].mxu0
      %v902 = vadd.f32 %v578, %v901
      %v903 = vpop.f32.mrb[0].mxu0
      %904 = vmatprep.mubr.f32.mxu0 0.0
      %905 = vmatmul.mubr.f32.gmra.mrb[0].mxu0 %v712
      %v906 = vpop.f32.mrb[0].mxu0
      %v907 = vadd.f32 %v583, %v906
      %v908 = vpop.f32.mrb[0].mxu0
      %909 = vmatprep.mubr.f32.mxu0 0.0
      %910 = vmatmul.mubr.f32.gmra.mrb[0].mxu0 %v715
      %v911 = vpop.f32.mrb[0].mxu0
      %v912 = vadd.f32 %v588, %v911
      %v913 = vpop.f32.mrb[0].mxu0
      %914 = vmatprep.mubr.f32.mxu0 0.0
      %915 = vmatmul.mubr.f32.gmra.mrb[0].mxu0 %v718
      %v916 = vpop.f32.mrb[0].mxu0
      %v917 = vadd.f32 %v593, %v916
      %v918 = vpop.f32.mrb[0].mxu0
      %919 = vmatprep.mubr.f32.mxu0 0.0
      %920 = vmatmul.mubr.f32.gmra.mrb[0].mxu0 %v721
      %v921 = vpop.f32.mrb[0].mxu0
      %v922 = vadd.f32 %v598, %v921
      %v923 = vpop.f32.mrb[0].mxu0
      %924 = vmatprep.mubr.f32.mxu0 0.0
      %925 = vmatmul.mubr.f32.gmra.mrb[0].mxu0 %v724
      %v926 = vpop.f32.mrb[0].mxu0
      %v927 = vadd.f32 %v603, %v926
      %v928 = vpop.f32.mrb[0].mxu0
      %929 = vmatprep.mubr.f32.mxu0 0.0
      %930 = vmatmul.mubr.f32.gmra.mrb[0].mxu0 %v727
      %v931 = vpop.f32.mrb[0].mxu0
      %v932 = vadd.f32 %v608, %v931
      %v933 = vpop.f32.mrb[0].mxu0
      %934 = vmatprep.mubr.f32.mxu0 0.0
      %935 = vmatmul.mubr.f32.gmra.mrb[0].mxu0 %v730
      %v936 = vpop.f32.mrb[0].mxu0
      %v937 = vadd.f32 %v613, %v936
      %v938 = vpop.f32.mrb[0].mxu0
      %939 = vmatprep.mubr.f32.mxu0 0.0
      %940 = vmatmul.mubr.f32.gmra.mrb[0].mxu0 %v733
      %v941 = vpop.f32.mrb[0].mxu0
      %v942 = vadd.f32 %v618, %v941
      %v943 = vpop.f32.mrb[0].mxu0
      %944 = vmatprep.mubr.f32.mxu0 0.0
      %945 = vmatmul.mubr.f32.gmra.mrb[0].mxu0 %v736
      %v946 = vpop.f32.mrb[0].mxu0
      %v947 = vadd.f32 %v623, %v946
      %v948 = vpop.f32.mrb[0].mxu0
      %949 = vmatprep.mubr.f32.mxu0 0.0
      %950 = vmatmul.mubr.f32.gmra.mrb[0].mxu0 %v739
      %v951 = vpop.f32.mrb[0].mxu0
      %v952 = vadd.f32 %v628, %v951
      %v953 = vpop.f32.mrb[0].mxu0
      %954 = vmatprep.mubr.f32.mxu0 0.0
      %955 = vmatmul.mubr.f32.gmra.mrb[0].mxu0 %v742
      %v956 = vpop.f32.mrb[0].mxu0
      %v957 = vadd.f32 %v633, %v956
      %v958 = vpop.f32.mrb[0].mxu0
      %959 = vmatprep.mubr.f32.mxu0 0.0
      %960 = vmatmul.mubr.f32.gmra.mrb[0].mxu0 %v745
      %v961 = vpop.f32.mrb[0].mxu0
      %v962 = vadd.f32 %v638, %v961
      %v963 = vpop.f32.mrb[0].mxu0
      %964 = vmatprep.mubr.f32.mxu0 0.0
      %965 = vmatmul.mubr.f32.gmra.mrb[0].mxu0 %v748
      %v966 = vpop.f32.mrb[0].mxu0
      %v967 = vadd.f32 %v643, %v966
      %v968 = vpop.f32.mrb[0].mxu0
      %969 = vmatprep.mubr.f32.mxu0 0.0
      %970 = vmatmul.mubr.f32.gmra.mrb[0].mxu0 %v751
      %v971 = vpop.f32.mrb[0].mxu0
      %v972 = vadd.f32 %v648, %v971
      %v973 = vpop.f32.mrb[0].mxu0
      %974 = vmatprep.mubr.f32.mxu0 0.0
      %975 = vmatmul.mubr.f32.gmra.mrb[0].mxu0 %v754
      %v976 = vpop.f32.mrb[0].mxu0
      %v977 = vadd.f32 %v653, %v976
      %v978 = vpop.f32.mrb[0].mxu0
      %979 = vmatprep.mubr.f32.mxu0 0.0
      %980 = vmatmul.mubr.f32.gmra.mrb[0].mxu0 %v757
      %v981 = vpop.f32.mrb[0].mxu0
      %v982 = vadd.f32 %v658, %v981
      %v983 = vpop.f32.mrb[0].mxu0
      %984 = vmatprep.mubr.f32.mxu0 0.0
      %985 = vmatmul.mubr.f32.gmra.mrb[0].mxu0 %v760
      %v986 = vpop.f32.mrb[0].mxu0
      %v987 = vadd.f32 %v663, %v986
      %v988 = vpop.f32.mrb[0].mxu0
      %989 = vdwg.mxu0
      %v990 = vld [vmem:[%s245 + $0x2] sm:$0xff]
      %v991 = vld [vmem:[%s245 + $0xa] sm:$0xff]
      %v992 = vld [vmem:[%s245 + $0x1a] sm:$0xff]
      %v993 = vld [vmem:[%s245 + $0x22] sm:$0xff]
      %v994 = vld [vmem:[%s245 + $0x32] sm:$0xff]
      %v995 = vld [vmem:[%s245 + $0x3a] sm:$0xff]
      %v996 = vld [vmem:[%s245 + $0x4a] sm:$0xff]
      %v997 = vld [vmem:[%s245 + $0x52] sm:$0xff]
      %v998 = vld [vmem:[%s245 + $0x62] sm:$0xff]
      %v999 = vld [vmem:[%s245 + $0x6a] sm:$0xff]
      %v1000 = vld [vmem:[%s245 + $0x7a] sm:$0xff]
      %v1001 = vld [vmem:[%s245 + $0x82] sm:$0xff]
      %v1002 = vld [vmem:[%s245 + $0x92] sm:$0xff]
      %v1003 = vld [vmem:[%s245 + $0x9a] sm:$0xff]
      %v1004 = vld [vmem:[%s245 + $0xaa] sm:$0xff]
      %v1005 = vld [vmem:[%s245 + $0xb2] sm:$0xff]
      %v1006 = vld [vmem:[%s245 + $0xc2] sm:$0xff]
      %v1007 = vld [vmem:[%s245 + $0xca] sm:$0xff]
      %v1008 = vld [vmem:[%s245 + $0xda] sm:$0xff]
      %v1009 = vld [vmem:[%s245 + $0xe2] sm:$0xff]
      %v1010 = vld [vmem:[%s245 + $0xf2] sm:$0xff]
      %v1011 = vld [vmem:[%s245 + $0xfa] sm:$0xff]
      %v1012 = vld [vmem:[%s245 + $0x10a] sm:$0xff]
      %v1013 = vld [vmem:[%s245 + $0x112] sm:$0xff]
      %v1014 = vld [vmem:[%s245 + $0x122] sm:$0xff]
      %v1015 = vld [vmem:[%s245 + $0x12a] sm:$0xff]
      %v1016 = vld [vmem:[%s245 + $0x13a] sm:$0xff]
      %v1017 = vld [vmem:[%s245 + $0x142] sm:$0xff]
      %v1018 = vld [vmem:[%s245 + $0x152] sm:$0xff]
      %v1019 = vld [vmem:[%s245 + $0x15a] sm:$0xff]
      %v1020 = vld [vmem:[%s245 + $0x16a] sm:$0xff]
      %v1021 = vld [vmem:[%s245 + $0x172] sm:$0xff]
      %s1022 = scalar_lea.vmem %s249, 8
      %v1023 = vld [vmem:[%s1022] sm:$0xf]
      %v1025 = vsel %vm340, %v990, 0
      %v1028 = vsel %vm340, %v991, 0
      %v1031 = vsel %vm340, %v992, 0
      %v1034 = vsel %vm340, %v993, 0
      %v1037 = vsel %vm340, %v994, 0
      %v1040 = vsel %vm340, %v995, 0
      %v1043 = vsel %vm340, %v996, 0
      %v1046 = vsel %vm340, %v997, 0
      %v1049 = vsel %vm340, %v998, 0
      %v1052 = vsel %vm340, %v999, 0
      %v1055 = vsel %vm340, %v1000, 0
      %v1058 = vsel %vm340, %v1001, 0
      %v1061 = vsel %vm340, %v1002, 0
      %v1064 = vsel %vm340, %v1003, 0
      %v1067 = vsel %vm340, %v1004, 0
      %v1070 = vsel %vm340, %v1005, 0
      %v1073 = vsel %vm340, %v1006, 0
      %v1076 = vsel %vm340, %v1007, 0
      %v1079 = vsel %vm340, %v1008, 0
      %v1082 = vsel %vm340, %v1009, 0
      %v1085 = vsel %vm340, %v1010, 0
      %v1088 = vsel %vm340, %v1011, 0
      %v1091 = vsel %vm340, %v1012, 0
      %v1094 = vsel %vm340, %v1013, 0
      %v1097 = vsel %vm340, %v1014, 0
      %v1100 = vsel %vm340, %v1015, 0
      %v1103 = vsel %vm340, %v1016, 0
      %v1106 = vsel %vm340, %v1017, 0
      %v1109 = vsel %vm340, %v1018, 0
      %v1112 = vsel %vm340, %v1019, 0
      %v1115 = vsel %vm340, %v1020, 0
      %v1118 = vsel %vm340, %v1021, 0
      %v1121 = vsel %vm437, %v1023, 0
      %1123 = vmatprep.subr.mxu0 0.0
      %1124 = vmatpush1.msra.mxu0 %v1121
      %1125 = vmatprep.subr.mxu0 0.0
      %1126 = vmatpush1.msra.mxu0 0.0
      %1127 = vmatprep.subr.mxu0 0.0
      %1128 = vmatpush1.msra.mxu0 0.0
      %1129 = vmatprep.subr.mxu0 0.0
      %1130 = vmatpush1.msra.mxu0 0.0
      %1131 = vmatprep.subr.mxu0 0.0
      %1132 = vmatpush1.msra.mxu0 0.0
      %1133 = vmatprep.subr.mxu0 0.0
      %1134 = vmatpush1.msra.mxu0 0.0
      %1135 = vmatprep.subr.mxu0 0.0
      %1136 = vmatpush1.msra.mxu0 0.0
      %1137 = vmatprep.subr.mxu0 0.0
      %1138 = vmatpush1.msra.mxu0 0.0
      %1139 = vmatprep.subr.mxu0 0.0
      %1140 = vmatpush1.msra.mxu0 0.0
      %1141 = vmatprep.subr.mxu0 0.0
      %1142 = vmatpush1.msra.mxu0 0.0
      %1143 = vmatprep.subr.mxu0 0.0
      %1144 = vmatpush1.msra.mxu0 0.0
      %1145 = vmatprep.subr.mxu0 0.0
      %1146 = vmatpush1.msra.mxu0 0.0
      %1147 = vmatprep.subr.mxu0 0.0
      %1148 = vmatpush1.msra.mxu0 0.0
      %1149 = vmatprep.subr.mxu0 0.0
      %1150 = vmatpush1.msra.mxu0 0.0
      %1151 = vmatprep.subr.mxu0 0.0
      %1152 = vmatpush1.msra.mxu0 0.0
      %1153 = vmatprep.subr.mxu0 0.0
      %1154 = vmatpush1.msra.mxu0 0.0
      %1155 = vmatprep.subr.mxu0 0.0
      %1156 = vmatpush1.msra.mxu0 0.0
      %1157 = vmatprep.subr.mxu0 0.0
      %1158 = vmatpush1.msra.mxu0 0.0
      %1159 = vmatprep.subr.mxu0 0.0
      %1160 = vmatpush1.msra.mxu0 0.0
      %1161 = vmatprep.subr.mxu0 0.0
      %1162 = vmatpush1.msra.mxu0 0.0
      %1163 = vmatprep.subr.mxu0 0.0
      %1164 = vmatpush1.msra.mxu0 0.0
      %1165 = vmatprep.subr.mxu0 0.0
      %1166 = vmatpush1.msra.mxu0 0.0
      %1167 = vmatprep.subr.mxu0 0.0
      %1168 = vmatpush1.msra.mxu0 0.0
      %1169 = vmatprep.subr.mxu0 0.0
      %1170 = vmatpush1.msra.mxu0 0.0
      %1171 = vmatprep.subr.mxu0 0.0
      %1172 = vmatpush1.msra.mxu0 0.0
      %1173 = vmatprep.subr.mxu0 0.0
      %1174 = vmatpush1.msra.mxu0 0.0
      %1175 = vmatprep.subr.mxu0 0.0
      %1176 = vmatpush1.msra.mxu0 0.0
      %1177 = vmatprep.subr.mxu0 0.0
      %1178 = vmatpush1.msra.mxu0 0.0
      %1179 = vmatprep.subr.mxu0 0.0
      %1180 = vmatpush1.msra.mxu0 0.0
      %1181 = vmatprep.subr.mxu0 0.0
      %1182 = vmatpush1.msra.mxu0 0.0
      %1183 = vmatprep.subr.mxu0 0.0
      %1184 = vmatpush1.msra.mxu0 0.0
      %1185 = vmatprep.subr.mxu0 0.0
      %1186 = vmatpush1.msra.mxu0 0.0
      %1187 = vmatprep.mubr.f32.mxu0 0.0
      %1188 = vmatmul.mubr.f32.gmra.mrb[0].mxu0 %v1025
      %v1189 = vpop.f32.mrb[0].mxu0
      %v1190 = vadd.f32 0.0, %v1189
      %v1191 = vpop.f32.mrb[0].mxu0
      %1192 = vmatprep.mubr.f32.mxu0 0.0
      %1193 = vmatmul.mubr.f32.gmra.mrb[0].mxu0 %v1028
      %v1194 = vpop.f32.mrb[0].mxu0
      %v1195 = vadd.f32 0.0, %v1194
      %v1196 = vpop.f32.mrb[0].mxu0
      %1197 = vmatprep.mubr.f32.mxu0 0.0
      %1198 = vmatmul.mubr.f32.gmra.mrb[0].mxu0 %v1031
      %v1199 = vpop.f32.mrb[0].mxu0
      %v1200 = vadd.f32 0.0, %v1199
      %v1201 = vpop.f32.mrb[0].mxu0
      %1202 = vmatprep.mubr.f32.mxu0 0.0
      %1203 = vmatmul.mubr.f32.gmra.mrb[0].mxu0 %v1034
      %v1204 = vpop.f32.mrb[0].mxu0
      %v1205 = vadd.f32 0.0, %v1204
      %v1206 = vpop.f32.mrb[0].mxu0
      %1207 = vmatprep.mubr.f32.mxu0 0.0
      %1208 = vmatmul.mubr.f32.gmra.mrb[0].mxu0 %v1037
      %v1209 = vpop.f32.mrb[0].mxu0
      %v1210 = vadd.f32 0.0, %v1209
      %v1211 = vpop.f32.mrb[0].mxu0
      %1212 = vmatprep.mubr.f32.mxu0 0.0
      %1213 = vmatmul.mubr.f32.gmra.mrb[0].mxu0 %v1040
      %v1214 = vpop.f32.mrb[0].mxu0
      %v1215 = vadd.f32 0.0, %v1214
      %v1216 = vpop.f32.mrb[0].mxu0
      %1217 = vmatprep.mubr.f32.mxu0 0.0
      %1218 = vmatmul.mubr.f32.gmra.mrb[0].mxu0 %v1043
      %v1219 = vpop.f32.mrb[0].mxu0
      %v1220 = vadd.f32 0.0, %v1219
      %v1221 = vpop.f32.mrb[0].mxu0
      %1222 = vmatprep.mubr.f32.mxu0 0.0
      %1223 = vmatmul.mubr.f32.gmra.mrb[0].mxu0 %v1046
      %v1224 = vpop.f32.mrb[0].mxu0
      %v1225 = vadd.f32 0.0, %v1224
      %v1226 = vpop.f32.mrb[0].mxu0
      %1227 = vmatprep.mubr.f32.mxu0 0.0
      %1228 = vmatmul.mubr.f32.gmra.mrb[0].mxu0 %v1049
      %v1229 = vpop.f32.mrb[0].mxu0
      %v1230 = vadd.f32 0.0, %v1229
      %v1231 = vpop.f32.mrb[0].mxu0
      %1232 = vmatprep.mubr.f32.mxu0 0.0
      %1233 = vmatmul.mubr.f32.gmra.mrb[0].mxu0 %v1052
      %v1234 = vpop.f32.mrb[0].mxu0
      %v1235 = vadd.f32 0.0, %v1234
      %v1236 = vpop.f32.mrb[0].mxu0
      %1237 = vmatprep.mubr.f32.mxu0 0.0
      %1238 = vmatmul.mubr.f32.gmra.mrb[0].mxu0 %v1055
      %v1239 = vpop.f32.mrb[0].mxu0
      %v1240 = vadd.f32 0.0, %v1239
      %v1241 = vpop.f32.mrb[0].mxu0
      %1242 = vmatprep.mubr.f32.mxu0 0.0
      %1243 = vmatmul.mubr.f32.gmra.mrb[0].mxu0 %v1058
      %v1244 = vpop.f32.mrb[0].mxu0
      %v1245 = vadd.f32 0.0, %v1244
      %v1246 = vpop.f32.mrb[0].mxu0
      %1247 = vmatprep.mubr.f32.mxu0 0.0
      %1248 = vmatmul.mubr.f32.gmra.mrb[0].mxu0 %v1061
      %v1249 = vpop.f32.mrb[0].mxu0
      %v1250 = vadd.f32 0.0, %v1249
      %v1251 = vpop.f32.mrb[0].mxu0
      %1252 = vmatprep.mubr.f32.mxu0 0.0
      %1253 = vmatmul.mubr.f32.gmra.mrb[0].mxu0 %v1064
      %v1254 = vpop.f32.mrb[0].mxu0
      %v1255 = vadd.f32 0.0, %v1254
      %v1256 = vpop.f32.mrb[0].mxu0
      %1257 = vmatprep.mubr.f32.mxu0 0.0
      %1258 = vmatmul.mubr.f32.gmra.mrb[0].mxu0 %v1067
      %v1259 = vpop.f32.mrb[0].mxu0
      %v1260 = vadd.f32 0.0, %v1259
      %v1261 = vpop.f32.mrb[0].mxu0
      %1262 = vmatprep.mubr.f32.mxu0 0.0
      %1263 = vmatmul.mubr.f32.gmra.mrb[0].mxu0 %v1070
      %v1264 = vpop.f32.mrb[0].mxu0
      %v1265 = vadd.f32 0.0, %v1264
      %v1266 = vpop.f32.mrb[0].mxu0
      %1267 = vmatprep.mubr.f32.mxu0 0.0
      %1268 = vmatmul.mubr.f32.gmra.mrb[0].mxu0 %v1073
      %v1269 = vpop.f32.mrb[0].mxu0
      %v1270 = vadd.f32 0.0, %v1269
      %v1271 = vpop.f32.mrb[0].mxu0
      %1272 = vmatprep.mubr.f32.mxu0 0.0
      %1273 = vmatmul.mubr.f32.gmra.mrb[0].mxu0 %v1076
      %v1274 = vpop.f32.mrb[0].mxu0
      %v1275 = vadd.f32 0.0, %v1274
      %v1276 = vpop.f32.mrb[0].mxu0
      %1277 = vmatprep.mubr.f32.mxu0 0.0
      %1278 = vmatmul.mubr.f32.gmra.mrb[0].mxu0 %v1079
      %v1279 = vpop.f32.mrb[0].mxu0
      %v1280 = vadd.f32 0.0, %v1279
      %v1281 = vpop.f32.mrb[0].mxu0
      %1282 = vmatprep.mubr.f32.mxu0 0.0
      %1283 = vmatmul.mubr.f32.gmra.mrb[0].mxu0 %v1082
      %v1284 = vpop.f32.mrb[0].mxu0
      %v1285 = vadd.f32 0.0, %v1284
      %v1286 = vpop.f32.mrb[0].mxu0
      %1287 = vmatprep.mubr.f32.mxu0 0.0
      %1288 = vmatmul.mubr.f32.gmra.mrb[0].mxu0 %v1085
      %v1289 = vpop.f32.mrb[0].mxu0
      %v1290 = vadd.f32 0.0, %v1289
      %v1291 = vpop.f32.mrb[0].mxu0
      %1292 = vmatprep.mubr.f32.mxu0 0.0
      %1293 = vmatmul.mubr.f32.gmra.mrb[0].mxu0 %v1088
      %v1294 = vpop.f32.mrb[0].mxu0
      %v1295 = vadd.f32 0.0, %v1294
      %v1296 = vpop.f32.mrb[0].mxu0
      %1297 = vmatprep.mubr.f32.mxu0 0.0
      %1298 = vmatmul.mubr.f32.gmra.mrb[0].mxu0 %v1091
      %v1299 = vpop.f32.mrb[0].mxu0
      %v1300 = vadd.f32 0.0, %v1299
      %v1301 = vpop.f32.mrb[0].mxu0
      %1302 = vmatprep.mubr.f32.mxu0 0.0
      %1303 = vmatmul.mubr.f32.gmra.mrb[0].mxu0 %v1094
      %v1304 = vpop.f32.mrb[0].mxu0
      %v1305 = vadd.f32 0.0, %v1304
      %v1306 = vpop.f32.mrb[0].mxu0
      %1307 = vmatprep.mubr.f32.mxu0 0.0
      %1308 = vmatmul.mubr.f32.gmra.mrb[0].mxu0 %v1097
      %v1309 = vpop.f32.mrb[0].mxu0
      %v1310 = vadd.f32 0.0, %v1309
      %v1311 = vpop.f32.mrb[0].mxu0
      %1312 = vmatprep.mubr.f32.mxu0 0.0
      %1313 = vmatmul.mubr.f32.gmra.mrb[0].mxu0 %v1100
      %v1314 = vpop.f32.mrb[0].mxu0
      %v1315 = vadd.f32 0.0, %v1314
      %v1316 = vpop.f32.mrb[0].mxu0
      %1317 = vmatprep.mubr.f32.mxu0 0.0
      %1318 = vmatmul.mubr.f32.gmra.mrb[0].mxu0 %v1103
      %v1319 = vpop.f32.mrb[0].mxu0
      %v1320 = vadd.f32 0.0, %v1319
      %v1321 = vpop.f32.mrb[0].mxu0
      %1322 = vmatprep.mubr.f32.mxu0 0.0
      %1323 = vmatmul.mubr.f32.gmra.mrb[0].mxu0 %v1106
      %v1324 = vpop.f32.mrb[0].mxu0
      %v1325 = vadd.f32 0.0, %v1324
      %v1326 = vpop.f32.mrb[0].mxu0
      %1327 = vmatprep.mubr.f32.mxu0 0.0
      %1328 = vmatmul.mubr.f32.gmra.mrb[0].mxu0 %v1109
      %v1329 = vpop.f32.mrb[0].mxu0
      %v1330 = vadd.f32 0.0, %v1329
      %v1331 = vpop.f32.mrb[0].mxu0
      %1332 = vmatprep.mubr.f32.mxu0 0.0
      %1333 = vmatmul.mubr.f32.gmra.mrb[0].mxu0 %v1112
      %v1334 = vpop.f32.mrb[0].mxu0
      %v1335 = vadd.f32 0.0, %v1334
      %v1336 = vpop.f32.mrb[0].mxu0
      %1337 = vmatprep.mubr.f32.mxu0 0.0
      %1338 = vmatmul.mubr.f32.gmra.mrb[0].mxu0 %v1115
      %v1339 = vpop.f32.mrb[0].mxu0
      %v1340 = vadd.f32 0.0, %v1339
      %v1341 = vpop.f32.mrb[0].mxu0
      %1342 = vmatprep.mubr.f32.mxu0 0.0
      %1343 = vmatmul.mubr.f32.gmra.mrb[0].mxu0 %v1118
      %v1344 = vpop.f32.mrb[0].mxu0
      %v1345 = vadd.f32 0.0, %v1344
      %v1346 = vpop.f32.mrb[0].mxu0
      %1347 = vdwg.mxu0
      %v1348 = vadd.f32 %v832, %v1190
      %v1349 = vadd.f32 %v837, %v1195
      %v1350 = vadd.f32 %v842, %v1200
      %v1351 = vadd.f32 %v847, %v1205
      %v1352 = vadd.f32 %v852, %v1210
      %v1353 = vadd.f32 %v857, %v1215
      %v1354 = vadd.f32 %v862, %v1220
      %v1355 = vadd.f32 %v867, %v1225
      %v1356 = vadd.f32 %v872, %v1230
      %v1357 = vadd.f32 %v877, %v1235
      %v1358 = vadd.f32 %v882, %v1240
      %v1359 = vadd.f32 %v887, %v1245
      %v1360 = vadd.f32 %v892, %v1250
      %v1361 = vadd.f32 %v897, %v1255
      %v1362 = vadd.f32 %v902, %v1260
      %v1363 = vadd.f32 %v907, %v1265
      %v1364 = vadd.f32 %v912, %v1270
      %v1365 = vadd.f32 %v917, %v1275
      %v1366 = vadd.f32 %v922, %v1280
      %v1367 = vadd.f32 %v927, %v1285
      %v1368 = vadd.f32 %v932, %v1290
      %v1369 = vadd.f32 %v937, %v1295
      %v1370 = vadd.f32 %v942, %v1300
      %v1371 = vadd.f32 %v947, %v1305
      %v1372 = vadd.f32 %v952, %v1310
      %v1373 = vadd.f32 %v957, %v1315
      %v1374 = vadd.f32 %v962, %v1320
      %v1375 = vadd.f32 %v967, %v1325
      %v1376 = vadd.f32 %v972, %v1330
      %v1377 = vadd.f32 %v977, %v1335
      %v1378 = vadd.f32 %v982, %v1340
      %v1379 = vadd.f32 %v987, %v1345
      %s1380 = scalar_lea.vmem %s245, 24
      %v1381 = vld [vmem:[%s1380] sm:$0xff]
      %v1382 = vld [vmem:[%s1380 + $0x8] sm:$0xff]
      %v1383 = vld [vmem:[%s1380 + $0x18] sm:$0xff]
      %v1384 = vld [vmem:[%s1380 + $0x20] sm:$0xff]
      %v1385 = vld [vmem:[%s1380 + $0x30] sm:$0xff]
      %v1386 = vld [vmem:[%s1380 + $0x38] sm:$0xff]
      %v1387 = vld [vmem:[%s1380 + $0x48] sm:$0xff]
      %v1388 = vld [vmem:[%s1380 + $0x50] sm:$0xff]
      %v1389 = vld [vmem:[%s1380 + $0x60] sm:$0xff]
      %v1390 = vld [vmem:[%s1380 + $0x68] sm:$0xff]
      %v1391 = vld [vmem:[%s1380 + $0x78] sm:$0xff]
      %v1392 = vld [vmem:[%s1380 + $0x80] sm:$0xff]
      %v1393 = vld [vmem:[%s1380 + $0x90] sm:$0xff]
      %v1394 = vld [vmem:[%s1380 + $0x98] sm:$0xff]
      %v1395 = vld [vmem:[%s1380 + $0xa8] sm:$0xff]
      %v1396 = vld [vmem:[%s1380 + $0xb0] sm:$0xff]
      %v1397 = vld [vmem:[%s1380 + $0xc0] sm:$0xff]
      %v1398 = vld [vmem:[%s1380 + $0xc8] sm:$0xff]
      %v1399 = vld [vmem:[%s1380 + $0xd8] sm:$0xff]
      %v1400 = vld [vmem:[%s1380 + $0xe0] sm:$0xff]
      %v1401 = vld [vmem:[%s1380 + $0xf0] sm:$0xff]
      %v1402 = vld [vmem:[%s1380 + $0xf8] sm:$0xff]
      %v1403 = vld [vmem:[%s1380 + $0x108] sm:$0xff]
      %v1404 = vld [vmem:[%s1380 + $0x110] sm:$0xff]
      %v1405 = vld [vmem:[%s1380 + $0x120] sm:$0xff]
      %v1406 = vld [vmem:[%s1380 + $0x128] sm:$0xff]
      %v1407 = vld [vmem:[%s1380 + $0x138] sm:$0xff]
      %v1408 = vld [vmem:[%s1380 + $0x140] sm:$0xff]
      %v1409 = vld [vmem:[%s1380 + $0x150] sm:$0xff]
      %v1410 = vld [vmem:[%s1380 + $0x158] sm:$0xff]
      %v1411 = vld [vmem:[%s1380 + $0x168] sm:$0xff]
      %v1412 = vld [vmem:[%s1380 + $0x170] sm:$0xff]
      %s1413 = scalar_lea.vmem %s249, 12
      %v1414 = vld [vmem:[%s1413] sm:$0xf]
      %v1416 = vsel %vm340, %v1381, 0
      %v1419 = vsel %vm340, %v1382, 0
      %v1422 = vsel %vm340, %v1383, 0
      %v1425 = vsel %vm340, %v1384, 0
      %v1428 = vsel %vm340, %v1385, 0
      %v1431 = vsel %vm340, %v1386, 0
      %v1434 = vsel %vm340, %v1387, 0
      %v1437 = vsel %vm340, %v1388, 0
      %v1440 = vsel %vm340, %v1389, 0
      %v1443 = vsel %vm340, %v1390, 0
      %v1446 = vsel %vm340, %v1391, 0
      %v1449 = vsel %vm340, %v1392, 0
      %v1452 = vsel %vm340, %v1393, 0
      %v1455 = vsel %vm340, %v1394, 0
      %v1458 = vsel %vm340, %v1395, 0
      %v1461 = vsel %vm340, %v1396, 0
      %v1464 = vsel %vm340, %v1397, 0
      %v1467 = vsel %vm340, %v1398, 0
      %v1470 = vsel %vm340, %v1399, 0
      %v1473 = vsel %vm340, %v1400, 0
      %v1476 = vsel %vm340, %v1401, 0
      %v1479 = vsel %vm340, %v1402, 0
      %v1482 = vsel %vm340, %v1403, 0
      %v1485 = vsel %vm340, %v1404, 0
      %v1488 = vsel %vm340, %v1405, 0
      %v1491 = vsel %vm340, %v1406, 0
      %v1494 = vsel %vm340, %v1407, 0
      %v1497 = vsel %vm340, %v1408, 0
      %v1500 = vsel %vm340, %v1409, 0
      %v1503 = vsel %vm340, %v1410, 0
      %v1506 = vsel %vm340, %v1411, 0
      %v1509 = vsel %vm340, %v1412, 0
      %v1512 = vsel %vm437, %v1414, 0
      %1514 = vmatprep.subr.mxu0 0.0
      %1515 = vmatpush1.msra.mxu0 %v1512
      %1516 = vmatprep.subr.mxu0 0.0
      %1517 = vmatpush1.msra.mxu0 0.0
      %1518 = vmatprep.subr.mxu0 0.0
      %1519 = vmatpush1.msra.mxu0 0.0
      %1520 = vmatprep.subr.mxu0 0.0
      %1521 = vmatpush1.msra.mxu0 0.0
      %1522 = vmatprep.subr.mxu0 0.0
      %1523 = vmatpush1.msra.mxu0 0.0
      %1524 = vmatprep.subr.mxu0 0.0
      %1525 = vmatpush1.msra.mxu0 0.0
      %1526 = vmatprep.subr.mxu0 0.0
      %1527 = vmatpush1.msra.mxu0 0.0
      %1528 = vmatprep.subr.mxu0 0.0
      %1529 = vmatpush1.msra.mxu0 0.0
      %1530 = vmatprep.subr.mxu0 0.0
      %1531 = vmatpush1.msra.mxu0 0.0
      %1532 = vmatprep.subr.mxu0 0.0
      %1533 = vmatpush1.msra.mxu0 0.0
      %1534 = vmatprep.subr.mxu0 0.0
      %1535 = vmatpush1.msra.mxu0 0.0
      %1536 = vmatprep.subr.mxu0 0.0
      %1537 = vmatpush1.msra.mxu0 0.0
      %1538 = vmatprep.subr.mxu0 0.0
      %1539 = vmatpush1.msra.mxu0 0.0
      %1540 = vmatprep.subr.mxu0 0.0
      %1541 = vmatpush1.msra.mxu0 0.0
      %1542 = vmatprep.subr.mxu0 0.0
      %1543 = vmatpush1.msra.mxu0 0.0
      %1544 = vmatprep.subr.mxu0 0.0
      %1545 = vmatpush1.msra.mxu0 0.0
      %1546 = vmatprep.subr.mxu0 0.0
      %1547 = vmatpush1.msra.mxu0 0.0
      %1548 = vmatprep.subr.mxu0 0.0
      %1549 = vmatpush1.msra.mxu0 0.0
      %1550 = vmatprep.subr.mxu0 0.0
      %1551 = vmatpush1.msra.mxu0 0.0
      %1552 = vmatprep.subr.mxu0 0.0
      %1553 = vmatpush1.msra.mxu0 0.0
      %1554 = vmatprep.subr.mxu0 0.0
      %1555 = vmatpush1.msra.mxu0 0.0
      %1556 = vmatprep.subr.mxu0 0.0
      %1557 = vmatpush1.msra.mxu0 0.0
      %1558 = vmatprep.subr.mxu0 0.0
      %1559 = vmatpush1.msra.mxu0 0.0
      %1560 = vmatprep.subr.mxu0 0.0
      %1561 = vmatpush1.msra.mxu0 0.0
      %1562 = vmatprep.subr.mxu0 0.0
      %1563 = vmatpush1.msra.mxu0 0.0
      %1564 = vmatprep.subr.mxu0 0.0
      %1565 = vmatpush1.msra.mxu0 0.0
      %1566 = vmatprep.subr.mxu0 0.0
      %1567 = vmatpush1.msra.mxu0 0.0
      %1568 = vmatprep.subr.mxu0 0.0
      %1569 = vmatpush1.msra.mxu0 0.0
      %1570 = vmatprep.subr.mxu0 0.0
      %1571 = vmatpush1.msra.mxu0 0.0
      %1572 = vmatprep.subr.mxu0 0.0
      %1573 = vmatpush1.msra.mxu0 0.0
      %1574 = vmatprep.subr.mxu0 0.0
      %1575 = vmatpush1.msra.mxu0 0.0
      %1576 = vmatprep.subr.mxu0 0.0
      %1577 = vmatpush1.msra.mxu0 0.0
      %1578 = vmatprep.mubr.f32.mxu0 0.0
      %1579 = vmatmul.mubr.f32.gmra.mrb[0].mxu0 %v1416
      %v1580 = vpop.f32.mrb[0].mxu0
      %v1581 = vadd.f32 0.0, %v1580
      %v1582 = vpop.f32.mrb[0].mxu0
      %1583 = vmatprep.mubr.f32.mxu0 0.0
      %1584 = vmatmul.mubr.f32.gmra.mrb[0].mxu0 %v1419
      %v1585 = vpop.f32.mrb[0].mxu0
      %v1586 = vadd.f32 0.0, %v1585
      %v1587 = vpop.f32.mrb[0].mxu0
      %1588 = vmatprep.mubr.f32.mxu0 0.0
      %1589 = vmatmul.mubr.f32.gmra.mrb[0].mxu0 %v1422
      %v1590 = vpop.f32.mrb[0].mxu0
      %v1591 = vadd.f32 0.0, %v1590
      %v1592 = vpop.f32.mrb[0].mxu0
      %1593 = vmatprep.mubr.f32.mxu0 0.0
      %1594 = vmatmul.mubr.f32.gmra.mrb[0].mxu0 %v1425
      %v1595 = vpop.f32.mrb[0].mxu0
      %v1596 = vadd.f32 0.0, %v1595
      %v1597 = vpop.f32.mrb[0].mxu0
      %1598 = vmatprep.mubr.f32.mxu0 0.0
      %1599 = vmatmul.mubr.f32.gmra.mrb[0].mxu0 %v1428
      %v1600 = vpop.f32.mrb[0].mxu0
      %v1601 = vadd.f32 0.0, %v1600
      %v1602 = vpop.f32.mrb[0].mxu0
      %1603 = vmatprep.mubr.f32.mxu0 0.0
      %1604 = vmatmul.mubr.f32.gmra.mrb[0].mxu0 %v1431
      %v1605 = vpop.f32.mrb[0].mxu0
      %v1606 = vadd.f32 0.0, %v1605
      %v1607 = vpop.f32.mrb[0].mxu0
      %1608 = vmatprep.mubr.f32.mxu0 0.0
      %1609 = vmatmul.mubr.f32.gmra.mrb[0].mxu0 %v1434
      %v1610 = vpop.f32.mrb[0].mxu0
      %v1611 = vadd.f32 0.0, %v1610
      %v1612 = vpop.f32.mrb[0].mxu0
      %1613 = vmatprep.mubr.f32.mxu0 0.0
      %1614 = vmatmul.mubr.f32.gmra.mrb[0].mxu0 %v1437
      %v1615 = vpop.f32.mrb[0].mxu0
      %v1616 = vadd.f32 0.0, %v1615
      %v1617 = vpop.f32.mrb[0].mxu0
      %1618 = vmatprep.mubr.f32.mxu0 0.0
      %1619 = vmatmul.mubr.f32.gmra.mrb[0].mxu0 %v1440
      %v1620 = vpop.f32.mrb[0].mxu0
      %v1621 = vadd.f32 0.0, %v1620
      %v1622 = vpop.f32.mrb[0].mxu0
      %1623 = vmatprep.mubr.f32.mxu0 0.0
      %1624 = vmatmul.mubr.f32.gmra.mrb[0].mxu0 %v1443
      %v1625 = vpop.f32.mrb[0].mxu0
      %v1626 = vadd.f32 0.0, %v1625
      %v1627 = vpop.f32.mrb[0].mxu0
      %1628 = vmatprep.mubr.f32.mxu0 0.0
      %1629 = vmatmul.mubr.f32.gmra.mrb[0].mxu0 %v1446
      %v1630 = vpop.f32.mrb[0].mxu0
      %v1631 = vadd.f32 0.0, %v1630
      %v1632 = vpop.f32.mrb[0].mxu0
      %1633 = vmatprep.mubr.f32.mxu0 0.0
      %1634 = vmatmul.mubr.f32.gmra.mrb[0].mxu0 %v1449
      %v1635 = vpop.f32.mrb[0].mxu0
      %v1636 = vadd.f32 0.0, %v1635
      %v1637 = vpop.f32.mrb[0].mxu0
      %1638 = vmatprep.mubr.f32.mxu0 0.0
      %1639 = vmatmul.mubr.f32.gmra.mrb[0].mxu0 %v1452
      %v1640 = vpop.f32.mrb[0].mxu0
      %v1641 = vadd.f32 0.0, %v1640
      %v1642 = vpop.f32.mrb[0].mxu0
      %1643 = vmatprep.mubr.f32.mxu0 0.0
      %1644 = vmatmul.mubr.f32.gmra.mrb[0].mxu0 %v1455
      %v1645 = vpop.f32.mrb[0].mxu0
      %v1646 = vadd.f32 0.0, %v1645
      %v1647 = vpop.f32.mrb[0].mxu0
      %1648 = vmatprep.mubr.f32.mxu0 0.0
      %1649 = vmatmul.mubr.f32.gmra.mrb[0].mxu0 %v1458
      %v1650 = vpop.f32.mrb[0].mxu0
      %v1651 = vadd.f32 0.0, %v1650
      %v1652 = vpop.f32.mrb[0].mxu0
      %1653 = vmatprep.mubr.f32.mxu0 0.0
      %1654 = vmatmul.mubr.f32.gmra.mrb[0].mxu0 %v1461
      %v1655 = vpop.f32.mrb[0].mxu0
      %v1656 = vadd.f32 0.0, %v1655
      %v1657 = vpop.f32.mrb[0].mxu0
      %1658 = vmatprep.mubr.f32.mxu0 0.0
      %1659 = vmatmul.mubr.f32.gmra.mrb[0].mxu0 %v1464
      %v1660 = vpop.f32.mrb[0].mxu0
      %v1661 = vadd.f32 0.0, %v1660
      %v1662 = vpop.f32.mrb[0].mxu0
      %1663 = vmatprep.mubr.f32.mxu0 0.0
      %1664 = vmatmul.mubr.f32.gmra.mrb[0].mxu0 %v1467
      %v1665 = vpop.f32.mrb[0].mxu0
      %v1666 = vadd.f32 0.0, %v1665
      %v1667 = vpop.f32.mrb[0].mxu0
      %1668 = vmatprep.mubr.f32.mxu0 0.0
      %1669 = vmatmul.mubr.f32.gmra.mrb[0].mxu0 %v1470
      %v1670 = vpop.f32.mrb[0].mxu0
      %v1671 = vadd.f32 0.0, %v1670
      %v1672 = vpop.f32.mrb[0].mxu0
      %1673 = vmatprep.mubr.f32.mxu0 0.0
      %1674 = vmatmul.mubr.f32.gmra.mrb[0].mxu0 %v1473
      %v1675 = vpop.f32.mrb[0].mxu0
      %v1676 = vadd.f32 0.0, %v1675
      %v1677 = vpop.f32.mrb[0].mxu0
      %1678 = vmatprep.mubr.f32.mxu0 0.0
      %1679 = vmatmul.mubr.f32.gmra.mrb[0].mxu0 %v1476
      %v1680 = vpop.f32.mrb[0].mxu0
      %v1681 = vadd.f32 0.0, %v1680
      %v1682 = vpop.f32.mrb[0].mxu0
      %1683 = vmatprep.mubr.f32.mxu0 0.0
      %1684 = vmatmul.mubr.f32.gmra.mrb[0].mxu0 %v1479
      %v1685 = vpop.f32.mrb[0].mxu0
      %v1686 = vadd.f32 0.0, %v1685
      %v1687 = vpop.f32.mrb[0].mxu0
      %1688 = vmatprep.mubr.f32.mxu0 0.0
      %1689 = vmatmul.mubr.f32.gmra.mrb[0].mxu0 %v1482
      %v1690 = vpop.f32.mrb[0].mxu0
      %v1691 = vadd.f32 0.0, %v1690
      %v1692 = vpop.f32.mrb[0].mxu0
      %1693 = vmatprep.mubr.f32.mxu0 0.0
      %1694 = vmatmul.mubr.f32.gmra.mrb[0].mxu0 %v1485
      %v1695 = vpop.f32.mrb[0].mxu0
      %v1696 = vadd.f32 0.0, %v1695
      %v1697 = vpop.f32.mrb[0].mxu0
      %1698 = vmatprep.mubr.f32.mxu0 0.0
      %1699 = vmatmul.mubr.f32.gmra.mrb[0].mxu0 %v1488
      %v1700 = vpop.f32.mrb[0].mxu0
      %v1701 = vadd.f32 0.0, %v1700
      %v1702 = vpop.f32.mrb[0].mxu0
      %1703 = vmatprep.mubr.f32.mxu0 0.0
      %1704 = vmatmul.mubr.f32.gmra.mrb[0].mxu0 %v1491
      %v1705 = vpop.f32.mrb[0].mxu0
      %v1706 = vadd.f32 0.0, %v1705
      %v1707 = vpop.f32.mrb[0].mxu0
      %1708 = vmatprep.mubr.f32.mxu0 0.0
      %1709 = vmatmul.mubr.f32.gmra.mrb[0].mxu0 %v1494
      %v1710 = vpop.f32.mrb[0].mxu0
      %v1711 = vadd.f32 0.0, %v1710
      %v1712 = vpop.f32.mrb[0].mxu0
      %1713 = vmatprep.mubr.f32.mxu0 0.0
      %1714 = vmatmul.mubr.f32.gmra.mrb[0].mxu0 %v1497
      %v1715 = vpop.f32.mrb[0].mxu0
      %v1716 = vadd.f32 0.0, %v1715
      %v1717 = vpop.f32.mrb[0].mxu0
      %1718 = vmatprep.mubr.f32.mxu0 0.0
      %1719 = vmatmul.mubr.f32.gmra.mrb[0].mxu0 %v1500
      %v1720 = vpop.f32.mrb[0].mxu0
      %v1721 = vadd.f32 0.0, %v1720
      %v1722 = vpop.f32.mrb[0].mxu0
      %1723 = vmatprep.mubr.f32.mxu0 0.0
      %1724 = vmatmul.mubr.f32.gmra.mrb[0].mxu0 %v1503
      %v1725 = vpop.f32.mrb[0].mxu0
      %v1726 = vadd.f32 0.0, %v1725
      %v1727 = vpop.f32.mrb[0].mxu0
      %1728 = vmatprep.mubr.f32.mxu0 0.0
      %1729 = vmatmul.mubr.f32.gmra.mrb[0].mxu0 %v1506
      %v1730 = vpop.f32.mrb[0].mxu0
      %v1731 = vadd.f32 0.0, %v1730
      %v1732 = vpop.f32.mrb[0].mxu0
      %1733 = vmatprep.mubr.f32.mxu0 0.0
      %1734 = vmatmul.mubr.f32.gmra.mrb[0].mxu0 %v1509
      %v1735 = vpop.f32.mrb[0].mxu0
      %v1736 = vadd.f32 0.0, %v1735
      %v1737 = vpop.f32.mrb[0].mxu0
      %1738 = vdwg.mxu0
      %v1739 = vadd.f32 %v1348, %v1581
      %v1740 = vadd.f32 %v1349, %v1586
      %v1741 = vadd.f32 %v1350, %v1591
      %v1742 = vadd.f32 %v1351, %v1596
      %v1743 = vadd.f32 %v1352, %v1601
      %v1744 = vadd.f32 %v1353, %v1606
      %v1745 = vadd.f32 %v1354, %v1611
      %v1746 = vadd.f32 %v1355, %v1616
      %v1747 = vadd.f32 %v1356, %v1621
      %v1748 = vadd.f32 %v1357, %v1626
      %v1749 = vadd.f32 %v1358, %v1631
      %v1750 = vadd.f32 %v1359, %v1636
      %v1751 = vadd.f32 %v1360, %v1641
      %v1752 = vadd.f32 %v1361, %v1646
      %v1753 = vadd.f32 %v1362, %v1651
      %v1754 = vadd.f32 %v1363, %v1656
      %v1755 = vadd.f32 %v1364, %v1661
      %v1756 = vadd.f32 %v1365, %v1666
      %v1757 = vadd.f32 %v1366, %v1671
      %v1758 = vadd.f32 %v1367, %v1676
      %v1759 = vadd.f32 %v1368, %v1681
      %v1760 = vadd.f32 %v1369, %v1686
      %v1761 = vadd.f32 %v1370, %v1691
      %v1762 = vadd.f32 %v1371, %v1696
      %v1763 = vadd.f32 %v1372, %v1701
      %v1764 = vadd.f32 %v1373, %v1706
      %v1765 = vadd.f32 %v1374, %v1711
      %v1766 = vadd.f32 %v1375, %v1716
      %v1767 = vadd.f32 %v1376, %v1721
      %v1768 = vadd.f32 %v1377, %v1726
      %v1769 = vadd.f32 %v1378, %v1731
      %v1770 = vadd.f32 %v1379, %v1736
      %v1771 = vld [vmem:[%s1380 + $0x1] sm:$0xff]
      %v1772 = vld [vmem:[%s1380 + $0x9] sm:$0xff]
      %v1773 = vld [vmem:[%s1380 + $0x19] sm:$0xff]
      %v1774 = vld [vmem:[%s1380 + $0x21] sm:$0xff]
      %v1775 = vld [vmem:[%s1380 + $0x31] sm:$0xff]
      %v1776 = vld [vmem:[%s1380 + $0x39] sm:$0xff]
      %v1777 = vld [vmem:[%s1380 + $0x49] sm:$0xff]
      %v1778 = vld [vmem:[%s1380 + $0x51] sm:$0xff]
      %v1779 = vld [vmem:[%s1380 + $0x61] sm:$0xff]
      %v1780 = vld [vmem:[%s1380 + $0x69] sm:$0xff]
      %v1781 = vld [vmem:[%s1380 + $0x79] sm:$0xff]
      %v1782 = vld [vmem:[%s1380 + $0x81] sm:$0xff]
      %v1783 = vld [vmem:[%s1380 + $0x91] sm:$0xff]
      %v1784 = vld [vmem:[%s1380 + $0x99] sm:$0xff]
      %v1785 = vld [vmem:[%s1380 + $0xa9] sm:$0xff]
      %v1786 = vld [vmem:[%s1380 + $0xb1] sm:$0xff]
      %v1787 = vld [vmem:[%s1380 + $0xc1] sm:$0xff]
      %v1788 = vld [vmem:[%s1380 + $0xc9] sm:$0xff]
      %v1789 = vld [vmem:[%s1380 + $0xd9] sm:$0xff]
      %v1790 = vld [vmem:[%s1380 + $0xe1] sm:$0xff]
      %v1791 = vld [vmem:[%s1380 + $0xf1] sm:$0xff]
      %v1792 = vld [vmem:[%s1380 + $0xf9] sm:$0xff]
      %v1793 = vld [vmem:[%s1380 + $0x109] sm:$0xff]
      %v1794 = vld [vmem:[%s1380 + $0x111] sm:$0xff]
      %v1795 = vld [vmem:[%s1380 + $0x121] sm:$0xff]
      %v1796 = vld [vmem:[%s1380 + $0x129] sm:$0xff]
      %v1797 = vld [vmem:[%s1380 + $0x139] sm:$0xff]
      %v1798 = vld [vmem:[%s1380 + $0x141] sm:$0xff]
      %v1799 = vld [vmem:[%s1380 + $0x151] sm:$0xff]
      %v1800 = vld [vmem:[%s1380 + $0x159] sm:$0xff]
      %v1801 = vld [vmem:[%s1380 + $0x169] sm:$0xff]
      %v1802 = vld [vmem:[%s1380 + $0x171] sm:$0xff]
      %s1803 = scalar_lea.vmem %s249, 16
      %v1804 = vld [vmem:[%s1803] sm:$0xf]
      %v1806 = vsel %vm340, %v1771, 0
      %v1809 = vsel %vm340, %v1772, 0
      %v1812 = vsel %vm340, %v1773, 0
      %v1815 = vsel %vm340, %v1774, 0
      %v1818 = vsel %vm340, %v1775, 0
      %v1821 = vsel %vm340, %v1776, 0
      %v1824 = vsel %vm340, %v1777, 0
      %v1827 = vsel %vm340, %v1778, 0
      %v1830 = vsel %vm340, %v1779, 0
      %v1833 = vsel %vm340, %v1780, 0
      %v1836 = vsel %vm340, %v1781, 0
      %v1839 = vsel %vm340, %v1782, 0
      %v1842 = vsel %vm340, %v1783, 0
      %v1845 = vsel %vm340, %v1784, 0
      %v1848 = vsel %vm340, %v1785, 0
      %v1851 = vsel %vm340, %v1786, 0
      %v1854 = vsel %vm340, %v1787, 0
      %v1857 = vsel %vm340, %v1788, 0
      %v1860 = vsel %vm340, %v1789, 0
      %v1863 = vsel %vm340, %v1790, 0
      %v1866 = vsel %vm340, %v1791, 0
      %v1869 = vsel %vm340, %v1792, 0
      %v1872 = vsel %vm340, %v1793, 0
      %v1875 = vsel %vm340, %v1794, 0
      %v1878 = vsel %vm340, %v1795, 0
      %v1881 = vsel %vm340, %v1796, 0
      %v1884 = vsel %vm340, %v1797, 0
      %v1887 = vsel %vm340, %v1798, 0
      %v1890 = vsel %vm340, %v1799, 0
      %v1893 = vsel %vm340, %v1800, 0
      %v1896 = vsel %vm340, %v1801, 0
      %v1899 = vsel %vm340, %v1802, 0
      %v1902 = vsel %vm437, %v1804, 0
      %1904 = vmatprep.subr.mxu0 0.0
      %1905 = vmatpush1.msra.mxu0 %v1902
      %1906 = vmatprep.subr.mxu0 0.0
      %1907 = vmatpush1.msra.mxu0 0.0
      %1908 = vmatprep.subr.mxu0 0.0
      %1909 = vmatpush1.msra.mxu0 0.0
      %1910 = vmatprep.subr.mxu0 0.0
      %1911 = vmatpush1.msra.mxu0 0.0
      %1912 = vmatprep.subr.mxu0 0.0
      %1913 = vmatpush1.msra.mxu0 0.0
      %1914 = vmatprep.subr.mxu0 0.0
      %1915 = vmatpush1.msra.mxu0 0.0
      %1916 = vmatprep.subr.mxu0 0.0
      %1917 = vmatpush1.msra.mxu0 0.0
      %1918 = vmatprep.subr.mxu0 0.0
      %1919 = vmatpush1.msra.mxu0 0.0
      %1920 = vmatprep.subr.mxu0 0.0
      %1921 = vmatpush1.msra.mxu0 0.0
      %1922 = vmatprep.subr.mxu0 0.0
      %1923 = vmatpush1.msra.mxu0 0.0
      %1924 = vmatprep.subr.mxu0 0.0
      %1925 = vmatpush1.msra.mxu0 0.0
      %1926 = vmatprep.subr.mxu0 0.0
      %1927 = vmatpush1.msra.mxu0 0.0
      %1928 = vmatprep.subr.mxu0 0.0
      %1929 = vmatpush1.msra.mxu0 0.0
      %1930 = vmatprep.subr.mxu0 0.0
      %1931 = vmatpush1.msra.mxu0 0.0
      %1932 = vmatprep.subr.mxu0 0.0
      %1933 = vmatpush1.msra.mxu0 0.0
      %1934 = vmatprep.subr.mxu0 0.0
      %1935 = vmatpush1.msra.mxu0 0.0
      %1936 = vmatprep.subr.mxu0 0.0
      %1937 = vmatpush1.msra.mxu0 0.0
      %1938 = vmatprep.subr.mxu0 0.0
      %1939 = vmatpush1.msra.mxu0 0.0
      %1940 = vmatprep.subr.mxu0 0.0
      %1941 = vmatpush1.msra.mxu0 0.0
      %1942 = vmatprep.subr.mxu0 0.0
      %1943 = vmatpush1.msra.mxu0 0.0
      %1944 = vmatprep.subr.mxu0 0.0
      %1945 = vmatpush1.msra.mxu0 0.0
      %1946 = vmatprep.subr.mxu0 0.0
      %1947 = vmatpush1.msra.mxu0 0.0
      %1948 = vmatprep.subr.mxu0 0.0
      %1949 = vmatpush1.msra.mxu0 0.0
      %1950 = vmatprep.subr.mxu0 0.0
      %1951 = vmatpush1.msra.mxu0 0.0
      %1952 = vmatprep.subr.mxu0 0.0
      %1953 = vmatpush1.msra.mxu0 0.0
      %1954 = vmatprep.subr.mxu0 0.0
      %1955 = vmatpush1.msra.mxu0 0.0
      %1956 = vmatprep.subr.mxu0 0.0
      %1957 = vmatpush1.msra.mxu0 0.0
      %1958 = vmatprep.subr.mxu0 0.0
      %1959 = vmatpush1.msra.mxu0 0.0
      %1960 = vmatprep.subr.mxu0 0.0
      %1961 = vmatpush1.msra.mxu0 0.0
      %1962 = vmatprep.subr.mxu0 0.0
      %1963 = vmatpush1.msra.mxu0 0.0
      %1964 = vmatprep.subr.mxu0 0.0
      %1965 = vmatpush1.msra.mxu0 0.0
      %1966 = vmatprep.subr.mxu0 0.0
      %1967 = vmatpush1.msra.mxu0 0.0
      %1968 = vmatprep.mubr.f32.mxu0 0.0
      %1969 = vmatmul.mubr.f32.gmra.mrb[0].mxu0 %v1806
      %v1970 = vpop.f32.mrb[0].mxu0
      %v1971 = vadd.f32 0.0, %v1970
      %v1972 = vpop.f32.mrb[0].mxu0
      %1973 = vmatprep.mubr.f32.mxu0 0.0
      %1974 = vmatmul.mubr.f32.gmra.mrb[0].mxu0 %v1809
      %v1975 = vpop.f32.mrb[0].mxu0
      %v1976 = vadd.f32 0.0, %v1975
      %v1977 = vpop.f32.mrb[0].mxu0
      %1978 = vmatprep.mubr.f32.mxu0 0.0
      %1979 = vmatmul.mubr.f32.gmra.mrb[0].mxu0 %v1812
      %v1980 = vpop.f32.mrb[0].mxu0
      %v1981 = vadd.f32 0.0, %v1980
      %v1982 = vpop.f32.mrb[0].mxu0
      %1983 = vmatprep.mubr.f32.mxu0 0.0
      %1984 = vmatmul.mubr.f32.gmra.mrb[0].mxu0 %v1815
      %v1985 = vpop.f32.mrb[0].mxu0
      %v1986 = vadd.f32 0.0, %v1985
      %v1987 = vpop.f32.mrb[0].mxu0
      %1988 = vmatprep.mubr.f32.mxu0 0.0
      %1989 = vmatmul.mubr.f32.gmra.mrb[0].mxu0 %v1818
      %v1990 = vpop.f32.mrb[0].mxu0
      %v1991 = vadd.f32 0.0, %v1990
      %v1992 = vpop.f32.mrb[0].mxu0
      %1993 = vmatprep.mubr.f32.mxu0 0.0
      %1994 = vmatmul.mubr.f32.gmra.mrb[0].mxu0 %v1821
      %v1995 = vpop.f32.mrb[0].mxu0
      %v1996 = vadd.f32 0.0, %v1995
      %v1997 = vpop.f32.mrb[0].mxu0
      %1998 = vmatprep.mubr.f32.mxu0 0.0
      %1999 = vmatmul.mubr.f32.gmra.mrb[0].mxu0 %v1824
      %v2000 = vpop.f32.mrb[0].mxu0
      %v2001 = vadd.f32 0.0, %v2000
      %v2002 = vpop.f32.mrb[0].mxu0
      %2003 = vmatprep.mubr.f32.mxu0 0.0
      %2004 = vmatmul.mubr.f32.gmra.mrb[0].mxu0 %v1827
      %v2005 = vpop.f32.mrb[0].mxu0
      %v2006 = vadd.f32 0.0, %v2005
      %v2007 = vpop.f32.mrb[0].mxu0
      %2008 = vmatprep.mubr.f32.mxu0 0.0
      %2009 = vmatmul.mubr.f32.gmra.mrb[0].mxu0 %v1830
      %v2010 = vpop.f32.mrb[0].mxu0
      %v2011 = vadd.f32 0.0, %v2010
      %v2012 = vpop.f32.mrb[0].mxu0
      %2013 = vmatprep.mubr.f32.mxu0 0.0
      %2014 = vmatmul.mubr.f32.gmra.mrb[0].mxu0 %v1833
      %v2015 = vpop.f32.mrb[0].mxu0
      %v2016 = vadd.f32 0.0, %v2015
      %v2017 = vpop.f32.mrb[0].mxu0
      %2018 = vmatprep.mubr.f32.mxu0 0.0
      %2019 = vmatmul.mubr.f32.gmra.mrb[0].mxu0 %v1836
      %v2020 = vpop.f32.mrb[0].mxu0
      %v2021 = vadd.f32 0.0, %v2020
      %v2022 = vpop.f32.mrb[0].mxu0
      %2023 = vmatprep.mubr.f32.mxu0 0.0
      %2024 = vmatmul.mubr.f32.gmra.mrb[0].mxu0 %v1839
      %v2025 = vpop.f32.mrb[0].mxu0
      %v2026 = vadd.f32 0.0, %v2025
      %v2027 = vpop.f32.mrb[0].mxu0
      %2028 = vmatprep.mubr.f32.mxu0 0.0
      %2029 = vmatmul.mubr.f32.gmra.mrb[0].mxu0 %v1842
      %v2030 = vpop.f32.mrb[0].mxu0
      %v2031 = vadd.f32 0.0, %v2030
      %v2032 = vpop.f32.mrb[0].mxu0
      %2033 = vmatprep.mubr.f32.mxu0 0.0
      %2034 = vmatmul.mubr.f32.gmra.mrb[0].mxu0 %v1845
      %v2035 = vpop.f32.mrb[0].mxu0
      %v2036 = vadd.f32 0.0, %v2035
      %v2037 = vpop.f32.mrb[0].mxu0
      %2038 = vmatprep.mubr.f32.mxu0 0.0
      %2039 = vmatmul.mubr.f32.gmra.mrb[0].mxu0 %v1848
      %v2040 = vpop.f32.mrb[0].mxu0
      %v2041 = vadd.f32 0.0, %v2040
      %v2042 = vpop.f32.mrb[0].mxu0
      %2043 = vmatprep.mubr.f32.mxu0 0.0
      %2044 = vmatmul.mubr.f32.gmra.mrb[0].mxu0 %v1851
      %v2045 = vpop.f32.mrb[0].mxu0
      %v2046 = vadd.f32 0.0, %v2045
      %v2047 = vpop.f32.mrb[0].mxu0
      %2048 = vmatprep.mubr.f32.mxu0 0.0
      %2049 = vmatmul.mubr.f32.gmra.mrb[0].mxu0 %v1854
      %v2050 = vpop.f32.mrb[0].mxu0
      %v2051 = vadd.f32 0.0, %v2050
      %v2052 = vpop.f32.mrb[0].mxu0
      %2053 = vmatprep.mubr.f32.mxu0 0.0
      %2054 = vmatmul.mubr.f32.gmra.mrb[0].mxu0 %v1857
      %v2055 = vpop.f32.mrb[0].mxu0
      %v2056 = vadd.f32 0.0, %v2055
      %v2057 = vpop.f32.mrb[0].mxu0
      %2058 = vmatprep.mubr.f32.mxu0 0.0
      %2059 = vmatmul.mubr.f32.gmra.mrb[0].mxu0 %v1860
      %v2060 = vpop.f32.mrb[0].mxu0
      %v2061 = vadd.f32 0.0, %v2060
      %v2062 = vpop.f32.mrb[0].mxu0
      %2063 = vmatprep.mubr.f32.mxu0 0.0
      %2064 = vmatmul.mubr.f32.gmra.mrb[0].mxu0 %v1863
      %v2065 = vpop.f32.mrb[0].mxu0
      %v2066 = vadd.f32 0.0, %v2065
      %v2067 = vpop.f32.mrb[0].mxu0
      %2068 = vmatprep.mubr.f32.mxu0 0.0
      %2069 = vmatmul.mubr.f32.gmra.mrb[0].mxu0 %v1866
      %v2070 = vpop.f32.mrb[0].mxu0
      %v2071 = vadd.f32 0.0, %v2070
      %v2072 = vpop.f32.mrb[0].mxu0
      %2073 = vmatprep.mubr.f32.mxu0 0.0
      %2074 = vmatmul.mubr.f32.gmra.mrb[0].mxu0 %v1869
      %v2075 = vpop.f32.mrb[0].mxu0
      %v2076 = vadd.f32 0.0, %v2075
      %v2077 = vpop.f32.mrb[0].mxu0
      %2078 = vmatprep.mubr.f32.mxu0 0.0
      %2079 = vmatmul.mubr.f32.gmra.mrb[0].mxu0 %v1872
      %v2080 = vpop.f32.mrb[0].mxu0
      %v2081 = vadd.f32 0.0, %v2080
      %v2082 = vpop.f32.mrb[0].mxu0
      %2083 = vmatprep.mubr.f32.mxu0 0.0
      %2084 = vmatmul.mubr.f32.gmra.mrb[0].mxu0 %v1875
      %v2085 = vpop.f32.mrb[0].mxu0
      %v2086 = vadd.f32 0.0, %v2085
      %v2087 = vpop.f32.mrb[0].mxu0
      %2088 = vmatprep.mubr.f32.mxu0 0.0
      %2089 = vmatmul.mubr.f32.gmra.mrb[0].mxu0 %v1878
      %v2090 = vpop.f32.mrb[0].mxu0
      %v2091 = vadd.f32 0.0, %v2090
      %v2092 = vpop.f32.mrb[0].mxu0
      %2093 = vmatprep.mubr.f32.mxu0 0.0
      %2094 = vmatmul.mubr.f32.gmra.mrb[0].mxu0 %v1881
      %v2095 = vpop.f32.mrb[0].mxu0
      %v2096 = vadd.f32 0.0, %v2095
      %v2097 = vpop.f32.mrb[0].mxu0
      %2098 = vmatprep.mubr.f32.mxu0 0.0
      %2099 = vmatmul.mubr.f32.gmra.mrb[0].mxu0 %v1884
      %v2100 = vpop.f32.mrb[0].mxu0
      %v2101 = vadd.f32 0.0, %v2100
      %v2102 = vpop.f32.mrb[0].mxu0
      %2103 = vmatprep.mubr.f32.mxu0 0.0
      %2104 = vmatmul.mubr.f32.gmra.mrb[0].mxu0 %v1887
      %v2105 = vpop.f32.mrb[0].mxu0
      %v2106 = vadd.f32 0.0, %v2105
      %v2107 = vpop.f32.mrb[0].mxu0
      %2108 = vmatprep.mubr.f32.mxu0 0.0
      %2109 = vmatmul.mubr.f32.gmra.mrb[0].mxu0 %v1890
      %v2110 = vpop.f32.mrb[0].mxu0
      %v2111 = vadd.f32 0.0, %v2110
      %v2112 = vpop.f32.mrb[0].mxu0
      %2113 = vmatprep.mubr.f32.mxu0 0.0
      %2114 = vmatmul.mubr.f32.gmra.mrb[0].mxu0 %v1893
      %v2115 = vpop.f32.mrb[0].mxu0
      %v2116 = vadd.f32 0.0, %v2115
      %v2117 = vpop.f32.mrb[0].mxu0
      %2118 = vmatprep.mubr.f32.mxu0 0.0
      %2119 = vmatmul.mubr.f32.gmra.mrb[0].mxu0 %v1896
      %v2120 = vpop.f32.mrb[0].mxu0
      %v2121 = vadd.f32 0.0, %v2120
      %v2122 = vpop.f32.mrb[0].mxu0
      %2123 = vmatprep.mubr.f32.mxu0 0.0
      %2124 = vmatmul.mubr.f32.gmra.mrb[0].mxu0 %v1899
      %v2125 = vpop.f32.mrb[0].mxu0
      %v2126 = vadd.f32 0.0, %v2125
      %v2127 = vpop.f32.mrb[0].mxu0
      %2128 = vdwg.mxu0
      %v2129 = vadd.f32 %v1739, %v1971
      %v2130 = vadd.f32 %v1740, %v1976
      %v2131 = vadd.f32 %v1741, %v1981
      %v2132 = vadd.f32 %v1742, %v1986
      %v2133 = vadd.f32 %v1743, %v1991
      %v2134 = vadd.f32 %v1744, %v1996
      %v2135 = vadd.f32 %v1745, %v2001
      %v2136 = vadd.f32 %v1746, %v2006
      %v2137 = vadd.f32 %v1747, %v2011
      %v2138 = vadd.f32 %v1748, %v2016
      %v2139 = vadd.f32 %v1749, %v2021
      %v2140 = vadd.f32 %v1750, %v2026
      %v2141 = vadd.f32 %v1751, %v2031
      %v2142 = vadd.f32 %v1752, %v2036
      %v2143 = vadd.f32 %v1753, %v2041
      %v2144 = vadd.f32 %v1754, %v2046
      %v2145 = vadd.f32 %v1755, %v2051
      %v2146 = vadd.f32 %v1756, %v2056
      %v2147 = vadd.f32 %v1757, %v2061
      %v2148 = vadd.f32 %v1758, %v2066
      %v2149 = vadd.f32 %v1759, %v2071
      %v2150 = vadd.f32 %v1760, %v2076
      %v2151 = vadd.f32 %v1761, %v2081
      %v2152 = vadd.f32 %v1762, %v2086
      %v2153 = vadd.f32 %v1763, %v2091
      %v2154 = vadd.f32 %v1764, %v2096
      %v2155 = vadd.f32 %v1765, %v2101
      %v2156 = vadd.f32 %v1766, %v2106
      %v2157 = vadd.f32 %v1767, %v2111
      %v2158 = vadd.f32 %v1768, %v2116
      %v2159 = vadd.f32 %v1769, %v2121
      %v2160 = vadd.f32 %v1770, %v2126
      %v2161 = vld [vmem:[%s1380 + $0x2] sm:$0xff]
      %v2162 = vld [vmem:[%s1380 + $0xa] sm:$0xff]
      %v2163 = vld [vmem:[%s1380 + $0x1a] sm:$0xff]
      %v2164 = vld [vmem:[%s1380 + $0x22] sm:$0xff]
      %v2165 = vld [vmem:[%s1380 + $0x32] sm:$0xff]
      %v2166 = vld [vmem:[%s1380 + $0x3a] sm:$0xff]
      %v2167 = vld [vmem:[%s1380 + $0x4a] sm:$0xff]
      %v2168 = vld [vmem:[%s1380 + $0x52] sm:$0xff]
      %v2169 = vld [vmem:[%s1380 + $0x62] sm:$0xff]
      %v2170 = vld [vmem:[%s1380 + $0x6a] sm:$0xff]
      %v2171 = vld [vmem:[%s1380 + $0x7a] sm:$0xff]
      %v2172 = vld [vmem:[%s1380 + $0x82] sm:$0xff]
      %v2173 = vld [vmem:[%s1380 + $0x92] sm:$0xff]
      %v2174 = vld [vmem:[%s1380 + $0x9a] sm:$0xff]
      %v2175 = vld [vmem:[%s1380 + $0xaa] sm:$0xff]
      %v2176 = vld [vmem:[%s1380 + $0xb2] sm:$0xff]
      %v2177 = vld [vmem:[%s1380 + $0xc2] sm:$0xff]
      %v2178 = vld [vmem:[%s1380 + $0xca] sm:$0xff]
      %v2179 = vld [vmem:[%s1380 + $0xda] sm:$0xff]
      %v2180 = vld [vmem:[%s1380 + $0xe2] sm:$0xff]
      %v2181 = vld [vmem:[%s1380 + $0xf2] sm:$0xff]
      %v2182 = vld [vmem:[%s1380 + $0xfa] sm:$0xff]
      %v2183 = vld [vmem:[%s1380 + $0x10a] sm:$0xff]
      %v2184 = vld [vmem:[%s1380 + $0x112] sm:$0xff]
      %v2185 = vld [vmem:[%s1380 + $0x122] sm:$0xff]
      %v2186 = vld [vmem:[%s1380 + $0x12a] sm:$0xff]
      %v2187 = vld [vmem:[%s1380 + $0x13a] sm:$0xff]
      %v2188 = vld [vmem:[%s1380 + $0x142] sm:$0xff]
      %v2189 = vld [vmem:[%s1380 + $0x152] sm:$0xff]
      %v2190 = vld [vmem:[%s1380 + $0x15a] sm:$0xff]
      %v2191 = vld [vmem:[%s1380 + $0x16a] sm:$0xff]
      %v2192 = vld [vmem:[%s1380 + $0x172] sm:$0xff]
      %s2193 = scalar_lea.vmem %s249, 20
      %v2194 = vld [vmem:[%s2193] sm:$0xf]
      %v2196 = vsel %vm340, %v2161, 0
      %v2199 = vsel %vm340, %v2162, 0
      %v2202 = vsel %vm340, %v2163, 0
      %v2205 = vsel %vm340, %v2164, 0
      %v2208 = vsel %vm340, %v2165, 0
      %v2211 = vsel %vm340, %v2166, 0
      %v2214 = vsel %vm340, %v2167, 0
      %v2217 = vsel %vm340, %v2168, 0
      %v2220 = vsel %vm340, %v2169, 0
      %v2223 = vsel %vm340, %v2170, 0
      %v2226 = vsel %vm340, %v2171, 0
      %v2229 = vsel %vm340, %v2172, 0
      %v2232 = vsel %vm340, %v2173, 0
      %v2235 = vsel %vm340, %v2174, 0
      %v2238 = vsel %vm340, %v2175, 0
      %v2241 = vsel %vm340, %v2176, 0
      %v2244 = vsel %vm340, %v2177, 0
      %v2247 = vsel %vm340, %v2178, 0
      %v2250 = vsel %vm340, %v2179, 0
      %v2253 = vsel %vm340, %v2180, 0
      %v2256 = vsel %vm340, %v2181, 0
      %v2259 = vsel %vm340, %v2182, 0
      %v2262 = vsel %vm340, %v2183, 0
      %v2265 = vsel %vm340, %v2184, 0
      %v2268 = vsel %vm340, %v2185, 0
      %v2271 = vsel %vm340, %v2186, 0
      %v2274 = vsel %vm340, %v2187, 0
      %v2277 = vsel %vm340, %v2188, 0
      %v2280 = vsel %vm340, %v2189, 0
      %v2283 = vsel %vm340, %v2190, 0
      %v2286 = vsel %vm340, %v2191, 0
      %v2289 = vsel %vm340, %v2192, 0
      %v2292 = vsel %vm437, %v2194, 0
      %2294 = vmatprep.subr.mxu0 0.0
      %2295 = vmatpush1.msra.mxu0 %v2292
      %2296 = vmatprep.subr.mxu0 0.0
      %2297 = vmatpush1.msra.mxu0 0.0
      %2298 = vmatprep.subr.mxu0 0.0
      %2299 = vmatpush1.msra.mxu0 0.0
      %2300 = vmatprep.subr.mxu0 0.0
      %2301 = vmatpush1.msra.mxu0 0.0
      %2302 = vmatprep.subr.mxu0 0.0
      %2303 = vmatpush1.msra.mxu0 0.0
      %2304 = vmatprep.subr.mxu0 0.0
      %2305 = vmatpush1.msra.mxu0 0.0
      %2306 = vmatprep.subr.mxu0 0.0
      %2307 = vmatpush1.msra.mxu0 0.0
      %2308 = vmatprep.subr.mxu0 0.0
      %2309 = vmatpush1.msra.mxu0 0.0
      %2310 = vmatprep.subr.mxu0 0.0
      %2311 = vmatpush1.msra.mxu0 0.0
      %2312 = vmatprep.subr.mxu0 0.0
      %2313 = vmatpush1.msra.mxu0 0.0
      %2314 = vmatprep.subr.mxu0 0.0
      %2315 = vmatpush1.msra.mxu0 0.0
      %2316 = vmatprep.subr.mxu0 0.0
      %2317 = vmatpush1.msra.mxu0 0.0
      %2318 = vmatprep.subr.mxu0 0.0
      %2319 = vmatpush1.msra.mxu0 0.0
      %2320 = vmatprep.subr.mxu0 0.0
      %2321 = vmatpush1.msra.mxu0 0.0
      %2322 = vmatprep.subr.mxu0 0.0
      %2323 = vmatpush1.msra.mxu0 0.0
      %2324 = vmatprep.subr.mxu0 0.0
      %2325 = vmatpush1.msra.mxu0 0.0
      %2326 = vmatprep.subr.mxu0 0.0
      %2327 = vmatpush1.msra.mxu0 0.0
      %2328 = vmatprep.subr.mxu0 0.0
      %2329 = vmatpush1.msra.mxu0 0.0
      %2330 = vmatprep.subr.mxu0 0.0
      %2331 = vmatpush1.msra.mxu0 0.0
      %2332 = vmatprep.subr.mxu0 0.0
      %2333 = vmatpush1.msra.mxu0 0.0
      %2334 = vmatprep.subr.mxu0 0.0
      %2335 = vmatpush1.msra.mxu0 0.0
      %2336 = vmatprep.subr.mxu0 0.0
      %2337 = vmatpush1.msra.mxu0 0.0
      %2338 = vmatprep.subr.mxu0 0.0
      %2339 = vmatpush1.msra.mxu0 0.0
      %2340 = vmatprep.subr.mxu0 0.0
      %2341 = vmatpush1.msra.mxu0 0.0
      %2342 = vmatprep.subr.mxu0 0.0
      %2343 = vmatpush1.msra.mxu0 0.0
      %2344 = vmatprep.subr.mxu0 0.0
      %2345 = vmatpush1.msra.mxu0 0.0
      %2346 = vmatprep.subr.mxu0 0.0
      %2347 = vmatpush1.msra.mxu0 0.0
      %2348 = vmatprep.subr.mxu0 0.0
      %2349 = vmatpush1.msra.mxu0 0.0
      %2350 = vmatprep.subr.mxu0 0.0
      %2351 = vmatpush1.msra.mxu0 0.0
      %2352 = vmatprep.subr.mxu0 0.0
      %2353 = vmatpush1.msra.mxu0 0.0
      %2354 = vmatprep.subr.mxu0 0.0
      %2355 = vmatpush1.msra.mxu0 0.0
      %2356 = vmatprep.subr.mxu0 0.0
      %2357 = vmatpush1.msra.mxu0 0.0
      %2358 = vmatprep.mubr.f32.mxu0 0.0
      %2359 = vmatmul.mubr.f32.gmra.mrb[0].mxu0 %v2196
      %v2360 = vpop.f32.mrb[0].mxu0
      %v2361 = vadd.f32 0.0, %v2360
      %v2362 = vpop.f32.mrb[0].mxu0
      %2363 = vmatprep.mubr.f32.mxu0 0.0
      %2364 = vmatmul.mubr.f32.gmra.mrb[0].mxu0 %v2199
      %v2365 = vpop.f32.mrb[0].mxu0
      %v2366 = vadd.f32 0.0, %v2365
      %v2367 = vpop.f32.mrb[0].mxu0
      %2368 = vmatprep.mubr.f32.mxu0 0.0
      %2369 = vmatmul.mubr.f32.gmra.mrb[0].mxu0 %v2202
      %v2370 = vpop.f32.mrb[0].mxu0
      %v2371 = vadd.f32 0.0, %v2370
      %v2372 = vpop.f32.mrb[0].mxu0
      %2373 = vmatprep.mubr.f32.mxu0 0.0
      %2374 = vmatmul.mubr.f32.gmra.mrb[0].mxu0 %v2205
      %v2375 = vpop.f32.mrb[0].mxu0
      %v2376 = vadd.f32 0.0, %v2375
      %v2377 = vpop.f32.mrb[0].mxu0
      %2378 = vmatprep.mubr.f32.mxu0 0.0
      %2379 = vmatmul.mubr.f32.gmra.mrb[0].mxu0 %v2208
      %v2380 = vpop.f32.mrb[0].mxu0
      %v2381 = vadd.f32 0.0, %v2380
      %v2382 = vpop.f32.mrb[0].mxu0
      %2383 = vmatprep.mubr.f32.mxu0 0.0
      %2384 = vmatmul.mubr.f32.gmra.mrb[0].mxu0 %v2211
      %v2385 = vpop.f32.mrb[0].mxu0
      %v2386 = vadd.f32 0.0, %v2385
      %v2387 = vpop.f32.mrb[0].mxu0
      %2388 = vmatprep.mubr.f32.mxu0 0.0
      %2389 = vmatmul.mubr.f32.gmra.mrb[0].mxu0 %v2214
      %v2390 = vpop.f32.mrb[0].mxu0
      %v2391 = vadd.f32 0.0, %v2390
      %v2392 = vpop.f32.mrb[0].mxu0
      %2393 = vmatprep.mubr.f32.mxu0 0.0
      %2394 = vmatmul.mubr.f32.gmra.mrb[0].mxu0 %v2217
      %v2395 = vpop.f32.mrb[0].mxu0
      %v2396 = vadd.f32 0.0, %v2395
      %v2397 = vpop.f32.mrb[0].mxu0
      %2398 = vmatprep.mubr.f32.mxu0 0.0
      %2399 = vmatmul.mubr.f32.gmra.mrb[0].mxu0 %v2220
      %v2400 = vpop.f32.mrb[0].mxu0
      %v2401 = vadd.f32 0.0, %v2400
      %v2402 = vpop.f32.mrb[0].mxu0
      %2403 = vmatprep.mubr.f32.mxu0 0.0
      %2404 = vmatmul.mubr.f32.gmra.mrb[0].mxu0 %v2223
      %v2405 = vpop.f32.mrb[0].mxu0
      %v2406 = vadd.f32 0.0, %v2405
      %v2407 = vpop.f32.mrb[0].mxu0
      %2408 = vmatprep.mubr.f32.mxu0 0.0
      %2409 = vmatmul.mubr.f32.gmra.mrb[0].mxu0 %v2226
      %v2410 = vpop.f32.mrb[0].mxu0
      %v2411 = vadd.f32 0.0, %v2410
      %v2412 = vpop.f32.mrb[0].mxu0
      %2413 = vmatprep.mubr.f32.mxu0 0.0
      %2414 = vmatmul.mubr.f32.gmra.mrb[0].mxu0 %v2229
      %v2415 = vpop.f32.mrb[0].mxu0
      %v2416 = vadd.f32 0.0, %v2415
      %v2417 = vpop.f32.mrb[0].mxu0
      %2418 = vmatprep.mubr.f32.mxu0 0.0
      %2419 = vmatmul.mubr.f32.gmra.mrb[0].mxu0 %v2232
      %v2420 = vpop.f32.mrb[0].mxu0
      %v2421 = vadd.f32 0.0, %v2420
      %v2422 = vpop.f32.mrb[0].mxu0
      %2423 = vmatprep.mubr.f32.mxu0 0.0
      %2424 = vmatmul.mubr.f32.gmra.mrb[0].mxu0 %v2235
      %v2425 = vpop.f32.mrb[0].mxu0
      %v2426 = vadd.f32 0.0, %v2425
      %v2427 = vpop.f32.mrb[0].mxu0
      %2428 = vmatprep.mubr.f32.mxu0 0.0
      %2429 = vmatmul.mubr.f32.gmra.mrb[0].mxu0 %v2238
      %v2430 = vpop.f32.mrb[0].mxu0
      %v2431 = vadd.f32 0.0, %v2430
      %v2432 = vpop.f32.mrb[0].mxu0
      %2433 = vmatprep.mubr.f32.mxu0 0.0
      %2434 = vmatmul.mubr.f32.gmra.mrb[0].mxu0 %v2241
      %v2435 = vpop.f32.mrb[0].mxu0
      %v2436 = vadd.f32 0.0, %v2435
      %v2437 = vpop.f32.mrb[0].mxu0
      %2438 = vmatprep.mubr.f32.mxu0 0.0
      %2439 = vmatmul.mubr.f32.gmra.mrb[0].mxu0 %v2244
      %v2440 = vpop.f32.mrb[0].mxu0
      %v2441 = vadd.f32 0.0, %v2440
      %v2442 = vpop.f32.mrb[0].mxu0
      %2443 = vmatprep.mubr.f32.mxu0 0.0
      %2444 = vmatmul.mubr.f32.gmra.mrb[0].mxu0 %v2247
      %v2445 = vpop.f32.mrb[0].mxu0
      %v2446 = vadd.f32 0.0, %v2445
      %v2447 = vpop.f32.mrb[0].mxu0
      %2448 = vmatprep.mubr.f32.mxu0 0.0
      %2449 = vmatmul.mubr.f32.gmra.mrb[0].mxu0 %v2250
      %v2450 = vpop.f32.mrb[0].mxu0
      %v2451 = vadd.f32 0.0, %v2450
      %v2452 = vpop.f32.mrb[0].mxu0
      %2453 = vmatprep.mubr.f32.mxu0 0.0
      %2454 = vmatmul.mubr.f32.gmra.mrb[0].mxu0 %v2253
      %v2455 = vpop.f32.mrb[0].mxu0
      %v2456 = vadd.f32 0.0, %v2455
      %v2457 = vpop.f32.mrb[0].mxu0
      %2458 = vmatprep.mubr.f32.mxu0 0.0
      %2459 = vmatmul.mubr.f32.gmra.mrb[0].mxu0 %v2256
      %v2460 = vpop.f32.mrb[0].mxu0
      %v2461 = vadd.f32 0.0, %v2460
      %v2462 = vpop.f32.mrb[0].mxu0
      %2463 = vmatprep.mubr.f32.mxu0 0.0
      %2464 = vmatmul.mubr.f32.gmra.mrb[0].mxu0 %v2259
      %v2465 = vpop.f32.mrb[0].mxu0
      %v2466 = vadd.f32 0.0, %v2465
      %v2467 = vpop.f32.mrb[0].mxu0
      %2468 = vmatprep.mubr.f32.mxu0 0.0
      %2469 = vmatmul.mubr.f32.gmra.mrb[0].mxu0 %v2262
      %v2470 = vpop.f32.mrb[0].mxu0
      %v2471 = vadd.f32 0.0, %v2470
      %v2472 = vpop.f32.mrb[0].mxu0
      %2473 = vmatprep.mubr.f32.mxu0 0.0
      %2474 = vmatmul.mubr.f32.gmra.mrb[0].mxu0 %v2265
      %v2475 = vpop.f32.mrb[0].mxu0
      %v2476 = vadd.f32 0.0, %v2475
      %v2477 = vpop.f32.mrb[0].mxu0
      %2478 = vmatprep.mubr.f32.mxu0 0.0
      %2479 = vmatmul.mubr.f32.gmra.mrb[0].mxu0 %v2268
      %v2480 = vpop.f32.mrb[0].mxu0
      %v2481 = vadd.f32 0.0, %v2480
      %v2482 = vpop.f32.mrb[0].mxu0
      %2483 = vmatprep.mubr.f32.mxu0 0.0
      %2484 = vmatmul.mubr.f32.gmra.mrb[0].mxu0 %v2271
      %v2485 = vpop.f32.mrb[0].mxu0
      %v2486 = vadd.f32 0.0, %v2485
      %v2487 = vpop.f32.mrb[0].mxu0
      %2488 = vmatprep.mubr.f32.mxu0 0.0
      %2489 = vmatmul.mubr.f32.gmra.mrb[0].mxu0 %v2274
      %v2490 = vpop.f32.mrb[0].mxu0
      %v2491 = vadd.f32 0.0, %v2490
      %v2492 = vpop.f32.mrb[0].mxu0
      %2493 = vmatprep.mubr.f32.mxu0 0.0
      %2494 = vmatmul.mubr.f32.gmra.mrb[0].mxu0 %v2277
      %v2495 = vpop.f32.mrb[0].mxu0
      %v2496 = vadd.f32 0.0, %v2495
      %v2497 = vpop.f32.mrb[0].mxu0
      %2498 = vmatprep.mubr.f32.mxu0 0.0
      %2499 = vmatmul.mubr.f32.gmra.mrb[0].mxu0 %v2280
      %v2500 = vpop.f32.mrb[0].mxu0
      %v2501 = vadd.f32 0.0, %v2500
      %v2502 = vpop.f32.mrb[0].mxu0
      %2503 = vmatprep.mubr.f32.mxu0 0.0
      %2504 = vmatmul.mubr.f32.gmra.mrb[0].mxu0 %v2283
      %v2505 = vpop.f32.mrb[0].mxu0
      %v2506 = vadd.f32 0.0, %v2505
      %v2507 = vpop.f32.mrb[0].mxu0
      %2508 = vmatprep.mubr.f32.mxu0 0.0
      %2509 = vmatmul.mubr.f32.gmra.mrb[0].mxu0 %v2286
      %v2510 = vpop.f32.mrb[0].mxu0
      %v2511 = vadd.f32 0.0, %v2510
      %v2512 = vpop.f32.mrb[0].mxu0
      %2513 = vmatprep.mubr.f32.mxu0 0.0
      %2514 = vmatmul.mubr.f32.gmra.mrb[0].mxu0 %v2289
      %v2515 = vpop.f32.mrb[0].mxu0
      %v2516 = vadd.f32 0.0, %v2515
      %v2517 = vpop.f32.mrb[0].mxu0
      %2518 = vdwg.mxu0
      %v2519 = vadd.f32 %v2129, %v2361
      %v2520 = vadd.f32 %v2130, %v2366
      %v2521 = vadd.f32 %v2131, %v2371
      %v2522 = vadd.f32 %v2132, %v2376
      %v2523 = vadd.f32 %v2133, %v2381
      %v2524 = vadd.f32 %v2134, %v2386
      %v2525 = vadd.f32 %v2135, %v2391
      %v2526 = vadd.f32 %v2136, %v2396
      %v2527 = vadd.f32 %v2137, %v2401
      %v2528 = vadd.f32 %v2138, %v2406
      %v2529 = vadd.f32 %v2139, %v2411
      %v2530 = vadd.f32 %v2140, %v2416
      %v2531 = vadd.f32 %v2141, %v2421
      %v2532 = vadd.f32 %v2142, %v2426
      %v2533 = vadd.f32 %v2143, %v2431
      %v2534 = vadd.f32 %v2144, %v2436
      %v2535 = vadd.f32 %v2145, %v2441
      %v2536 = vadd.f32 %v2146, %v2446
      %v2537 = vadd.f32 %v2147, %v2451
      %v2538 = vadd.f32 %v2148, %v2456
      %v2539 = vadd.f32 %v2149, %v2461
      %v2540 = vadd.f32 %v2150, %v2466
      %v2541 = vadd.f32 %v2151, %v2471
      %v2542 = vadd.f32 %v2152, %v2476
      %v2543 = vadd.f32 %v2153, %v2481
      %v2544 = vadd.f32 %v2154, %v2486
      %v2545 = vadd.f32 %v2155, %v2491
      %v2546 = vadd.f32 %v2156, %v2496
      %v2547 = vadd.f32 %v2157, %v2501
      %v2548 = vadd.f32 %v2158, %v2506
      %v2549 = vadd.f32 %v2159, %v2511
      %v2550 = vadd.f32 %v2160, %v2516
      %s2551 = scalar_lea.vmem %s245, 48
      %v2552 = vld [vmem:[%s2551] sm:$0xff]
      %v2553 = vld [vmem:[%s2551 + $0x8] sm:$0xff]
      %v2554 = vld [vmem:[%s2551 + $0x18] sm:$0xff]
      %v2555 = vld [vmem:[%s2551 + $0x20] sm:$0xff]
      %v2556 = vld [vmem:[%s2551 + $0x30] sm:$0xff]
      %v2557 = vld [vmem:[%s2551 + $0x38] sm:$0xff]
      %v2558 = vld [vmem:[%s2551 + $0x48] sm:$0xff]
      %v2559 = vld [vmem:[%s2551 + $0x50] sm:$0xff]
      %v2560 = vld [vmem:[%s2551 + $0x60] sm:$0xff]
      %v2561 = vld [vmem:[%s2551 + $0x68] sm:$0xff]
      %v2562 = vld [vmem:[%s2551 + $0x78] sm:$0xff]
      %v2563 = vld [vmem:[%s2551 + $0x80] sm:$0xff]
      %v2564 = vld [vmem:[%s2551 + $0x90] sm:$0xff]
      %v2565 = vld [vmem:[%s2551 + $0x98] sm:$0xff]
      %v2566 = vld [vmem:[%s2551 + $0xa8] sm:$0xff]
      %v2567 = vld [vmem:[%s2551 + $0xb0] sm:$0xff]
      %v2568 = vld [vmem:[%s2551 + $0xc0] sm:$0xff]
      %v2569 = vld [vmem:[%s2551 + $0xc8] sm:$0xff]
      %v2570 = vld [vmem:[%s2551 + $0xd8] sm:$0xff]
      %v2571 = vld [vmem:[%s2551 + $0xe0] sm:$0xff]
      %v2572 = vld [vmem:[%s2551 + $0xf0] sm:$0xff]
      %v2573 = vld [vmem:[%s2551 + $0xf8] sm:$0xff]
      %v2574 = vld [vmem:[%s2551 + $0x108] sm:$0xff]
      %v2575 = vld [vmem:[%s2551 + $0x110] sm:$0xff]
      %v2576 = vld [vmem:[%s2551 + $0x120] sm:$0xff]
      %v2577 = vld [vmem:[%s2551 + $0x128] sm:$0xff]
      %v2578 = vld [vmem:[%s2551 + $0x138] sm:$0xff]
      %v2579 = vld [vmem:[%s2551 + $0x140] sm:$0xff]
      %v2580 = vld [vmem:[%s2551 + $0x150] sm:$0xff]
      %v2581 = vld [vmem:[%s2551 + $0x158] sm:$0xff]
      %v2582 = vld [vmem:[%s2551 + $0x168] sm:$0xff]
      %v2583 = vld [vmem:[%s2551 + $0x170] sm:$0xff]
      %s2584 = scalar_lea.vmem %s249, 24
      %v2585 = vld [vmem:[%s2584] sm:$0xf]
      %v2587 = vsel %vm340, %v2552, 0
      %v2590 = vsel %vm340, %v2553, 0
      %v2593 = vsel %vm340, %v2554, 0
      %v2596 = vsel %vm340, %v2555, 0
      %v2599 = vsel %vm340, %v2556, 0
      %v2602 = vsel %vm340, %v2557, 0
      %v2605 = vsel %vm340, %v2558, 0
      %v2608 = vsel %vm340, %v2559, 0
      %v2611 = vsel %vm340, %v2560, 0
      %v2614 = vsel %vm340, %v2561, 0
      %v2617 = vsel %vm340, %v2562, 0
      %v2620 = vsel %vm340, %v2563, 0
      %v2623 = vsel %vm340, %v2564, 0
      %v2626 = vsel %vm340, %v2565, 0
      %v2629 = vsel %vm340, %v2566, 0
      %v2632 = vsel %vm340, %v2567, 0
      %v2635 = vsel %vm340, %v2568, 0
      %v2638 = vsel %vm340, %v2569, 0
      %v2641 = vsel %vm340, %v2570, 0
      %v2644 = vsel %vm340, %v2571, 0
      %v2647 = vsel %vm340, %v2572, 0
      %v2650 = vsel %vm340, %v2573, 0
      %v2653 = vsel %vm340, %v2574, 0
      %v2656 = vsel %vm340, %v2575, 0
      %v2659 = vsel %vm340, %v2576, 0
      %v2662 = vsel %vm340, %v2577, 0
      %v2665 = vsel %vm340, %v2578, 0
      %v2668 = vsel %vm340, %v2579, 0
      %v2671 = vsel %vm340, %v2580, 0
      %v2674 = vsel %vm340, %v2581, 0
      %v2677 = vsel %vm340, %v2582, 0
      %v2680 = vsel %vm340, %v2583, 0
      %v2683 = vsel %vm437, %v2585, 0
      %2685 = vmatprep.subr.mxu0 0.0
      %2686 = vmatpush1.msra.mxu0 %v2683
      %2687 = vmatprep.subr.mxu0 0.0
      %2688 = vmatpush1.msra.mxu0 0.0
      %2689 = vmatprep.subr.mxu0 0.0
      %2690 = vmatpush1.msra.mxu0 0.0
      %2691 = vmatprep.subr.mxu0 0.0
      %2692 = vmatpush1.msra.mxu0 0.0
      %2693 = vmatprep.subr.mxu0 0.0
      %2694 = vmatpush1.msra.mxu0 0.0
      %2695 = vmatprep.subr.mxu0 0.0
      %2696 = vmatpush1.msra.mxu0 0.0
      %2697 = vmatprep.subr.mxu0 0.0
      %2698 = vmatpush1.msra.mxu0 0.0
      %2699 = vmatprep.subr.mxu0 0.0
      %2700 = vmatpush1.msra.mxu0 0.0
      %2701 = vmatprep.subr.mxu0 0.0
      %2702 = vmatpush1.msra.mxu0 0.0
      %2703 = vmatprep.subr.mxu0 0.0
      %2704 = vmatpush1.msra.mxu0 0.0
      %2705 = vmatprep.subr.mxu0 0.0
      %2706 = vmatpush1.msra.mxu0 0.0
      %2707 = vmatprep.subr.mxu0 0.0
      %2708 = vmatpush1.msra.mxu0 0.0
      %2709 = vmatprep.subr.mxu0 0.0
      %2710 = vmatpush1.msra.mxu0 0.0
      %2711 = vmatprep.subr.mxu0 0.0
      %2712 = vmatpush1.msra.mxu0 0.0
      %2713 = vmatprep.subr.mxu0 0.0
      %2714 = vmatpush1.msra.mxu0 0.0
      %2715 = vmatprep.subr.mxu0 0.0
      %2716 = vmatpush1.msra.mxu0 0.0
      %2717 = vmatprep.subr.mxu0 0.0
      %2718 = vmatpush1.msra.mxu0 0.0
      %2719 = vmatprep.subr.mxu0 0.0
      %2720 = vmatpush1.msra.mxu0 0.0
      %2721 = vmatprep.subr.mxu0 0.0
      %2722 = vmatpush1.msra.mxu0 0.0
      %2723 = vmatprep.subr.mxu0 0.0
      %2724 = vmatpush1.msra.mxu0 0.0
      %2725 = vmatprep.subr.mxu0 0.0
      %2726 = vmatpush1.msra.mxu0 0.0
      %2727 = vmatprep.subr.mxu0 0.0
      %2728 = vmatpush1.msra.mxu0 0.0
      %2729 = vmatprep.subr.mxu0 0.0
      %2730 = vmatpush1.msra.mxu0 0.0
      %2731 = vmatprep.subr.mxu0 0.0
      %2732 = vmatpush1.msra.mxu0 0.0
      %2733 = vmatprep.subr.mxu0 0.0
      %2734 = vmatpush1.msra.mxu0 0.0
      %2735 = vmatprep.subr.mxu0 0.0
      %2736 = vmatpush1.msra.mxu0 0.0
      %2737 = vmatprep.subr.mxu0 0.0
      %2738 = vmatpush1.msra.mxu0 0.0
      %2739 = vmatprep.subr.mxu0 0.0
      %2740 = vmatpush1.msra.mxu0 0.0
      %2741 = vmatprep.subr.mxu0 0.0
      %2742 = vmatpush1.msra.mxu0 0.0
      %2743 = vmatprep.subr.mxu0 0.0
      %2744 = vmatpush1.msra.mxu0 0.0
      %2745 = vmatprep.subr.mxu0 0.0
      %2746 = vmatpush1.msra.mxu0 0.0
      %2747 = vmatprep.subr.mxu0 0.0
      %2748 = vmatpush1.msra.mxu0 0.0
      %2749 = vmatprep.mubr.f32.mxu0 0.0
      %2750 = vmatmul.mubr.f32.gmra.mrb[0].mxu0 %v2587
      %v2751 = vpop.f32.mrb[0].mxu0
      %v2752 = vadd.f32 0.0, %v2751
      %v2753 = vpop.f32.mrb[0].mxu0
      %2754 = vmatprep.mubr.f32.mxu0 0.0
      %2755 = vmatmul.mubr.f32.gmra.mrb[0].mxu0 %v2590
      %v2756 = vpop.f32.mrb[0].mxu0
      %v2757 = vadd.f32 0.0, %v2756
      %v2758 = vpop.f32.mrb[0].mxu0
      %2759 = vmatprep.mubr.f32.mxu0 0.0
      %2760 = vmatmul.mubr.f32.gmra.mrb[0].mxu0 %v2593
      %v2761 = vpop.f32.mrb[0].mxu0
      %v2762 = vadd.f32 0.0, %v2761
      %v2763 = vpop.f32.mrb[0].mxu0
      %2764 = vmatprep.mubr.f32.mxu0 0.0
      %2765 = vmatmul.mubr.f32.gmra.mrb[0].mxu0 %v2596
      %v2766 = vpop.f32.mrb[0].mxu0
      %v2767 = vadd.f32 0.0, %v2766
      %v2768 = vpop.f32.mrb[0].mxu0
      %2769 = vmatprep.mubr.f32.mxu0 0.0
      %2770 = vmatmul.mubr.f32.gmra.mrb[0].mxu0 %v2599
      %v2771 = vpop.f32.mrb[0].mxu0
      %v2772 = vadd.f32 0.0, %v2771
      %v2773 = vpop.f32.mrb[0].mxu0
      %2774 = vmatprep.mubr.f32.mxu0 0.0
      %2775 = vmatmul.mubr.f32.gmra.mrb[0].mxu0 %v2602
      %v2776 = vpop.f32.mrb[0].mxu0
      %v2777 = vadd.f32 0.0, %v2776
      %v2778 = vpop.f32.mrb[0].mxu0
      %2779 = vmatprep.mubr.f32.mxu0 0.0
      %2780 = vmatmul.mubr.f32.gmra.mrb[0].mxu0 %v2605
      %v2781 = vpop.f32.mrb[0].mxu0
      %v2782 = vadd.f32 0.0, %v2781
      %v2783 = vpop.f32.mrb[0].mxu0
      %2784 = vmatprep.mubr.f32.mxu0 0.0
      %2785 = vmatmul.mubr.f32.gmra.mrb[0].mxu0 %v2608
      %v2786 = vpop.f32.mrb[0].mxu0
      %v2787 = vadd.f32 0.0, %v2786
      %v2788 = vpop.f32.mrb[0].mxu0
      %2789 = vmatprep.mubr.f32.mxu0 0.0
      %2790 = vmatmul.mubr.f32.gmra.mrb[0].mxu0 %v2611
      %v2791 = vpop.f32.mrb[0].mxu0
      %v2792 = vadd.f32 0.0, %v2791
      %v2793 = vpop.f32.mrb[0].mxu0
      %2794 = vmatprep.mubr.f32.mxu0 0.0
      %2795 = vmatmul.mubr.f32.gmra.mrb[0].mxu0 %v2614
      %v2796 = vpop.f32.mrb[0].mxu0
      %v2797 = vadd.f32 0.0, %v2796
      %v2798 = vpop.f32.mrb[0].mxu0
      %2799 = vmatprep.mubr.f32.mxu0 0.0
      %2800 = vmatmul.mubr.f32.gmra.mrb[0].mxu0 %v2617
      %v2801 = vpop.f32.mrb[0].mxu0
      %v2802 = vadd.f32 0.0, %v2801
      %v2803 = vpop.f32.mrb[0].mxu0
      %2804 = vmatprep.mubr.f32.mxu0 0.0
      %2805 = vmatmul.mubr.f32.gmra.mrb[0].mxu0 %v2620
      %v2806 = vpop.f32.mrb[0].mxu0
      %v2807 = vadd.f32 0.0, %v2806
      %v2808 = vpop.f32.mrb[0].mxu0
      %2809 = vmatprep.mubr.f32.mxu0 0.0
      %2810 = vmatmul.mubr.f32.gmra.mrb[0].mxu0 %v2623
      %v2811 = vpop.f32.mrb[0].mxu0
      %v2812 = vadd.f32 0.0, %v2811
      %v2813 = vpop.f32.mrb[0].mxu0
      %2814 = vmatprep.mubr.f32.mxu0 0.0
      %2815 = vmatmul.mubr.f32.gmra.mrb[0].mxu0 %v2626
      %v2816 = vpop.f32.mrb[0].mxu0
      %v2817 = vadd.f32 0.0, %v2816
      %v2818 = vpop.f32.mrb[0].mxu0
      %2819 = vmatprep.mubr.f32.mxu0 0.0
      %2820 = vmatmul.mubr.f32.gmra.mrb[0].mxu0 %v2629
      %v2821 = vpop.f32.mrb[0].mxu0
      %v2822 = vadd.f32 0.0, %v2821
      %v2823 = vpop.f32.mrb[0].mxu0
      %2824 = vmatprep.mubr.f32.mxu0 0.0
      %2825 = vmatmul.mubr.f32.gmra.mrb[0].mxu0 %v2632
      %v2826 = vpop.f32.mrb[0].mxu0
      %v2827 = vadd.f32 0.0, %v2826
      %v2828 = vpop.f32.mrb[0].mxu0
      %2829 = vmatprep.mubr.f32.mxu0 0.0
      %2830 = vmatmul.mubr.f32.gmra.mrb[0].mxu0 %v2635
      %v2831 = vpop.f32.mrb[0].mxu0
      %v2832 = vadd.f32 0.0, %v2831
      %v2833 = vpop.f32.mrb[0].mxu0
      %2834 = vmatprep.mubr.f32.mxu0 0.0
      %2835 = vmatmul.mubr.f32.gmra.mrb[0].mxu0 %v2638
      %v2836 = vpop.f32.mrb[0].mxu0
      %v2837 = vadd.f32 0.0, %v2836
      %v2838 = vpop.f32.mrb[0].mxu0
      %2839 = vmatprep.mubr.f32.mxu0 0.0
      %2840 = vmatmul.mubr.f32.gmra.mrb[0].mxu0 %v2641
      %v2841 = vpop.f32.mrb[0].mxu0
      %v2842 = vadd.f32 0.0, %v2841
      %v2843 = vpop.f32.mrb[0].mxu0
      %2844 = vmatprep.mubr.f32.mxu0 0.0
      %2845 = vmatmul.mubr.f32.gmra.mrb[0].mxu0 %v2644
      %v2846 = vpop.f32.mrb[0].mxu0
      %v2847 = vadd.f32 0.0, %v2846
      %v2848 = vpop.f32.mrb[0].mxu0
      %2849 = vmatprep.mubr.f32.mxu0 0.0
      %2850 = vmatmul.mubr.f32.gmra.mrb[0].mxu0 %v2647
      %v2851 = vpop.f32.mrb[0].mxu0
      %v2852 = vadd.f32 0.0, %v2851
      %v2853 = vpop.f32.mrb[0].mxu0
      %2854 = vmatprep.mubr.f32.mxu0 0.0
      %2855 = vmatmul.mubr.f32.gmra.mrb[0].mxu0 %v2650
      %v2856 = vpop.f32.mrb[0].mxu0
      %v2857 = vadd.f32 0.0, %v2856
      %v2858 = vpop.f32.mrb[0].mxu0
      %2859 = vmatprep.mubr.f32.mxu0 0.0
      %2860 = vmatmul.mubr.f32.gmra.mrb[0].mxu0 %v2653
      %v2861 = vpop.f32.mrb[0].mxu0
      %v2862 = vadd.f32 0.0, %v2861
      %v2863 = vpop.f32.mrb[0].mxu0
      %2864 = vmatprep.mubr.f32.mxu0 0.0
      %2865 = vmatmul.mubr.f32.gmra.mrb[0].mxu0 %v2656
      %v2866 = vpop.f32.mrb[0].mxu0
      %v2867 = vadd.f32 0.0, %v2866
      %v2868 = vpop.f32.mrb[0].mxu0
      %2869 = vmatprep.mubr.f32.mxu0 0.0
      %2870 = vmatmul.mubr.f32.gmra.mrb[0].mxu0 %v2659
      %v2871 = vpop.f32.mrb[0].mxu0
      %v2872 = vadd.f32 0.0, %v2871
      %v2873 = vpop.f32.mrb[0].mxu0
      %2874 = vmatprep.mubr.f32.mxu0 0.0
      %2875 = vmatmul.mubr.f32.gmra.mrb[0].mxu0 %v2662
      %v2876 = vpop.f32.mrb[0].mxu0
      %v2877 = vadd.f32 0.0, %v2876
      %v2878 = vpop.f32.mrb[0].mxu0
      %2879 = vmatprep.mubr.f32.mxu0 0.0
      %2880 = vmatmul.mubr.f32.gmra.mrb[0].mxu0 %v2665
      %v2881 = vpop.f32.mrb[0].mxu0
      %v2882 = vadd.f32 0.0, %v2881
      %v2883 = vpop.f32.mrb[0].mxu0
      %2884 = vmatprep.mubr.f32.mxu0 0.0
      %2885 = vmatmul.mubr.f32.gmra.mrb[0].mxu0 %v2668
      %v2886 = vpop.f32.mrb[0].mxu0
      %v2887 = vadd.f32 0.0, %v2886
      %v2888 = vpop.f32.mrb[0].mxu0
      %2889 = vmatprep.mubr.f32.mxu0 0.0
      %2890 = vmatmul.mubr.f32.gmra.mrb[0].mxu0 %v2671
      %v2891 = vpop.f32.mrb[0].mxu0
      %v2892 = vadd.f32 0.0, %v2891
      %v2893 = vpop.f32.mrb[0].mxu0
      %2894 = vmatprep.mubr.f32.mxu0 0.0
      %2895 = vmatmul.mubr.f32.gmra.mrb[0].mxu0 %v2674
      %v2896 = vpop.f32.mrb[0].mxu0
      %v2897 = vadd.f32 0.0, %v2896
      %v2898 = vpop.f32.mrb[0].mxu0
      %2899 = vmatprep.mubr.f32.mxu0 0.0
      %2900 = vmatmul.mubr.f32.gmra.mrb[0].mxu0 %v2677
      %v2901 = vpop.f32.mrb[0].mxu0
      %v2902 = vadd.f32 0.0, %v2901
      %v2903 = vpop.f32.mrb[0].mxu0
      %2904 = vmatprep.mubr.f32.mxu0 0.0
      %2905 = vmatmul.mubr.f32.gmra.mrb[0].mxu0 %v2680
      %v2906 = vpop.f32.mrb[0].mxu0
      %v2907 = vadd.f32 0.0, %v2906
      %v2908 = vpop.f32.mrb[0].mxu0
      %2909 = vdwg.mxu0
      %v2910 = vadd.f32 %v2519, %v2752
      %v2911 = vadd.f32 %v2520, %v2757
      %v2912 = vadd.f32 %v2521, %v2762
      %v2913 = vadd.f32 %v2522, %v2767
      %v2914 = vadd.f32 %v2523, %v2772
      %v2915 = vadd.f32 %v2524, %v2777
      %v2916 = vadd.f32 %v2525, %v2782
      %v2917 = vadd.f32 %v2526, %v2787
      %v2918 = vadd.f32 %v2527, %v2792
      %v2919 = vadd.f32 %v2528, %v2797
      %v2920 = vadd.f32 %v2529, %v2802
      %v2921 = vadd.f32 %v2530, %v2807
      %v2922 = vadd.f32 %v2531, %v2812
      %v2923 = vadd.f32 %v2532, %v2817
      %v2924 = vadd.f32 %v2533, %v2822
      %v2925 = vadd.f32 %v2534, %v2827
      %v2926 = vadd.f32 %v2535, %v2832
      %v2927 = vadd.f32 %v2536, %v2837
      %v2928 = vadd.f32 %v2537, %v2842
      %v2929 = vadd.f32 %v2538, %v2847
      %v2930 = vadd.f32 %v2539, %v2852
      %v2931 = vadd.f32 %v2540, %v2857
      %v2932 = vadd.f32 %v2541, %v2862
      %v2933 = vadd.f32 %v2542, %v2867
      %v2934 = vadd.f32 %v2543, %v2872
      %v2935 = vadd.f32 %v2544, %v2877
      %v2936 = vadd.f32 %v2545, %v2882
      %v2937 = vadd.f32 %v2546, %v2887
      %v2938 = vadd.f32 %v2547, %v2892
      %v2939 = vadd.f32 %v2548, %v2897
      %v2940 = vadd.f32 %v2549, %v2902
      %v2941 = vadd.f32 %v2550, %v2907
      %v2942 = vld [vmem:[%s2551 + $0x1] sm:$0xff]
      %v2943 = vld [vmem:[%s2551 + $0x9] sm:$0xff]
      %v2944 = vld [vmem:[%s2551 + $0x19] sm:$0xff]
      %v2945 = vld [vmem:[%s2551 + $0x21] sm:$0xff]
      %v2946 = vld [vmem:[%s2551 + $0x31] sm:$0xff]
      %v2947 = vld [vmem:[%s2551 + $0x39] sm:$0xff]
      %v2948 = vld [vmem:[%s2551 + $0x49] sm:$0xff]
      %v2949 = vld [vmem:[%s2551 + $0x51] sm:$0xff]
      %v2950 = vld [vmem:[%s2551 + $0x61] sm:$0xff]
      %v2951 = vld [vmem:[%s2551 + $0x69] sm:$0xff]
      %v2952 = vld [vmem:[%s2551 + $0x79] sm:$0xff]
      %v2953 = vld [vmem:[%s2551 + $0x81] sm:$0xff]
      %v2954 = vld [vmem:[%s2551 + $0x91] sm:$0xff]
      %v2955 = vld [vmem:[%s2551 + $0x99] sm:$0xff]
      %v2956 = vld [vmem:[%s2551 + $0xa9] sm:$0xff]
      %v2957 = vld [vmem:[%s2551 + $0xb1] sm:$0xff]
      %v2958 = vld [vmem:[%s2551 + $0xc1] sm:$0xff]
      %v2959 = vld [vmem:[%s2551 + $0xc9] sm:$0xff]
      %v2960 = vld [vmem:[%s2551 + $0xd9] sm:$0xff]
      %v2961 = vld [vmem:[%s2551 + $0xe1] sm:$0xff]
      %v2962 = vld [vmem:[%s2551 + $0xf1] sm:$0xff]
      %v2963 = vld [vmem:[%s2551 + $0xf9] sm:$0xff]
      %v2964 = vld [vmem:[%s2551 + $0x109] sm:$0xff]
      %v2965 = vld [vmem:[%s2551 + $0x111] sm:$0xff]
      %v2966 = vld [vmem:[%s2551 + $0x121] sm:$0xff]
      %v2967 = vld [vmem:[%s2551 + $0x129] sm:$0xff]
      %v2968 = vld [vmem:[%s2551 + $0x139] sm:$0xff]
      %v2969 = vld [vmem:[%s2551 + $0x141] sm:$0xff]
      %v2970 = vld [vmem:[%s2551 + $0x151] sm:$0xff]
      %v2971 = vld [vmem:[%s2551 + $0x159] sm:$0xff]
      %v2972 = vld [vmem:[%s2551 + $0x169] sm:$0xff]
      %v2973 = vld [vmem:[%s2551 + $0x171] sm:$0xff]
      %s2974 = scalar_lea.vmem %s249, 28
      %v2975 = vld [vmem:[%s2974] sm:$0xf]
      %v2977 = vsel %vm340, %v2942, 0
      %v2980 = vsel %vm340, %v2943, 0
      %v2983 = vsel %vm340, %v2944, 0
      %v2986 = vsel %vm340, %v2945, 0
      %v2989 = vsel %vm340, %v2946, 0
      %v2992 = vsel %vm340, %v2947, 0
      %v2995 = vsel %vm340, %v2948, 0
      %v2998 = vsel %vm340, %v2949, 0
      %v3001 = vsel %vm340, %v2950, 0
      %v3004 = vsel %vm340, %v2951, 0
      %v3007 = vsel %vm340, %v2952, 0
      %v3010 = vsel %vm340, %v2953, 0
      %v3013 = vsel %vm340, %v2954, 0
      %v3016 = vsel %vm340, %v2955, 0
      %v3019 = vsel %vm340, %v2956, 0
      %v3022 = vsel %vm340, %v2957, 0
      %v3025 = vsel %vm340, %v2958, 0
      %v3028 = vsel %vm340, %v2959, 0
      %v3031 = vsel %vm340, %v2960, 0
      %v3034 = vsel %vm340, %v2961, 0
      %v3037 = vsel %vm340, %v2962, 0
      %v3040 = vsel %vm340, %v2963, 0
      %v3043 = vsel %vm340, %v2964, 0
      %v3046 = vsel %vm340, %v2965, 0
      %v3049 = vsel %vm340, %v2966, 0
      %v3052 = vsel %vm340, %v2967, 0
      %v3055 = vsel %vm340, %v2968, 0
      %v3058 = vsel %vm340, %v2969, 0
      %v3061 = vsel %vm340, %v2970, 0
      %v3064 = vsel %vm340, %v2971, 0
      %v3067 = vsel %vm340, %v2972, 0
      %v3070 = vsel %vm340, %v2973, 0
      %v3073 = vsel %vm437, %v2975, 0
      %3075 = vmatprep.subr.mxu0 0.0
      %3076 = vmatpush1.msra.mxu0 %v3073
      %3077 = vmatprep.subr.mxu0 0.0
      %3078 = vmatpush1.msra.mxu0 0.0
      %3079 = vmatprep.subr.mxu0 0.0
      %3080 = vmatpush1.msra.mxu0 0.0
      %3081 = vmatprep.subr.mxu0 0.0
      %3082 = vmatpush1.msra.mxu0 0.0
      %3083 = vmatprep.subr.mxu0 0.0
      %3084 = vmatpush1.msra.mxu0 0.0
      %3085 = vmatprep.subr.mxu0 0.0
      %3086 = vmatpush1.msra.mxu0 0.0
      %3087 = vmatprep.subr.mxu0 0.0
      %3088 = vmatpush1.msra.mxu0 0.0
      %3089 = vmatprep.subr.mxu0 0.0
      %3090 = vmatpush1.msra.mxu0 0.0
      %3091 = vmatprep.subr.mxu0 0.0
      %3092 = vmatpush1.msra.mxu0 0.0
      %3093 = vmatprep.subr.mxu0 0.0
      %3094 = vmatpush1.msra.mxu0 0.0
      %3095 = vmatprep.subr.mxu0 0.0
      %3096 = vmatpush1.msra.mxu0 0.0
      %3097 = vmatprep.subr.mxu0 0.0
      %3098 = vmatpush1.msra.mxu0 0.0
      %3099 = vmatprep.subr.mxu0 0.0
      %3100 = vmatpush1.msra.mxu0 0.0
      %3101 = vmatprep.subr.mxu0 0.0
      %3102 = vmatpush1.msra.mxu0 0.0
      %3103 = vmatprep.subr.mxu0 0.0
      %3104 = vmatpush1.msra.mxu0 0.0
      %3105 = vmatprep.subr.mxu0 0.0
      %3106 = vmatpush1.msra.mxu0 0.0
      %3107 = vmatprep.subr.mxu0 0.0
      %3108 = vmatpush1.msra.mxu0 0.0
      %3109 = vmatprep.subr.mxu0 0.0
      %3110 = vmatpush1.msra.mxu0 0.0
      %3111 = vmatprep.subr.mxu0 0.0
      %3112 = vmatpush1.msra.mxu0 0.0
      %3113 = vmatprep.subr.mxu0 0.0
      %3114 = vmatpush1.msra.mxu0 0.0
      %3115 = vmatprep.subr.mxu0 0.0
      %3116 = vmatpush1.msra.mxu0 0.0
      %3117 = vmatprep.subr.mxu0 0.0
      %3118 = vmatpush1.msra.mxu0 0.0
      %3119 = vmatprep.subr.mxu0 0.0
      %3120 = vmatpush1.msra.mxu0 0.0
      %3121 = vmatprep.subr.mxu0 0.0
      %3122 = vmatpush1.msra.mxu0 0.0
      %3123 = vmatprep.subr.mxu0 0.0
      %3124 = vmatpush1.msra.mxu0 0.0
      %3125 = vmatprep.subr.mxu0 0.0
      %3126 = vmatpush1.msra.mxu0 0.0
      %3127 = vmatprep.subr.mxu0 0.0
      %3128 = vmatpush1.msra.mxu0 0.0
      %3129 = vmatprep.subr.mxu0 0.0
      %3130 = vmatpush1.msra.mxu0 0.0
      %3131 = vmatprep.subr.mxu0 0.0
      %3132 = vmatpush1.msra.mxu0 0.0
      %3133 = vmatprep.subr.mxu0 0.0
      %3134 = vmatpush1.msra.mxu0 0.0
      %3135 = vmatprep.subr.mxu0 0.0
      %3136 = vmatpush1.msra.mxu0 0.0
      %3137 = vmatprep.subr.mxu0 0.0
      %3138 = vmatpush1.msra.mxu0 0.0
      %3139 = vmatprep.mubr.f32.mxu0 0.0
      %3140 = vmatmul.mubr.f32.gmra.mrb[0].mxu0 %v2977
      %v3141 = vpop.f32.mrb[0].mxu0
      %v3142 = vadd.f32 0.0, %v3141
      %v3143 = vpop.f32.mrb[0].mxu0
      %3144 = vmatprep.mubr.f32.mxu0 0.0
      %3145 = vmatmul.mubr.f32.gmra.mrb[0].mxu0 %v2980
      %v3146 = vpop.f32.mrb[0].mxu0
      %v3147 = vadd.f32 0.0, %v3146
      %v3148 = vpop.f32.mrb[0].mxu0
      %3149 = vmatprep.mubr.f32.mxu0 0.0
      %3150 = vmatmul.mubr.f32.gmra.mrb[0].mxu0 %v2983
      %v3151 = vpop.f32.mrb[0].mxu0
      %v3152 = vadd.f32 0.0, %v3151
      %v3153 = vpop.f32.mrb[0].mxu0
      %3154 = vmatprep.mubr.f32.mxu0 0.0
      %3155 = vmatmul.mubr.f32.gmra.mrb[0].mxu0 %v2986
      %v3156 = vpop.f32.mrb[0].mxu0
      %v3157 = vadd.f32 0.0, %v3156
      %v3158 = vpop.f32.mrb[0].mxu0
      %3159 = vmatprep.mubr.f32.mxu0 0.0
      %3160 = vmatmul.mubr.f32.gmra.mrb[0].mxu0 %v2989
      %v3161 = vpop.f32.mrb[0].mxu0
      %v3162 = vadd.f32 0.0, %v3161
      %v3163 = vpop.f32.mrb[0].mxu0
      %3164 = vmatprep.mubr.f32.mxu0 0.0
      %3165 = vmatmul.mubr.f32.gmra.mrb[0].mxu0 %v2992
      %v3166 = vpop.f32.mrb[0].mxu0
      %v3167 = vadd.f32 0.0, %v3166
      %v3168 = vpop.f32.mrb[0].mxu0
      %3169 = vmatprep.mubr.f32.mxu0 0.0
      %3170 = vmatmul.mubr.f32.gmra.mrb[0].mxu0 %v2995
      %v3171 = vpop.f32.mrb[0].mxu0
      %v3172 = vadd.f32 0.0, %v3171
      %v3173 = vpop.f32.mrb[0].mxu0
      %3174 = vmatprep.mubr.f32.mxu0 0.0
      %3175 = vmatmul.mubr.f32.gmra.mrb[0].mxu0 %v2998
      %v3176 = vpop.f32.mrb[0].mxu0
      %v3177 = vadd.f32 0.0, %v3176
      %v3178 = vpop.f32.mrb[0].mxu0
      %3179 = vmatprep.mubr.f32.mxu0 0.0
      %3180 = vmatmul.mubr.f32.gmra.mrb[0].mxu0 %v3001
      %v3181 = vpop.f32.mrb[0].mxu0
      %v3182 = vadd.f32 0.0, %v3181
      %v3183 = vpop.f32.mrb[0].mxu0
      %3184 = vmatprep.mubr.f32.mxu0 0.0
      %3185 = vmatmul.mubr.f32.gmra.mrb[0].mxu0 %v3004
      %v3186 = vpop.f32.mrb[0].mxu0
      %v3187 = vadd.f32 0.0, %v3186
      %v3188 = vpop.f32.mrb[0].mxu0
      %3189 = vmatprep.mubr.f32.mxu0 0.0
      %3190 = vmatmul.mubr.f32.gmra.mrb[0].mxu0 %v3007
      %v3191 = vpop.f32.mrb[0].mxu0
      %v3192 = vadd.f32 0.0, %v3191
      %v3193 = vpop.f32.mrb[0].mxu0
      %3194 = vmatprep.mubr.f32.mxu0 0.0
      %3195 = vmatmul.mubr.f32.gmra.mrb[0].mxu0 %v3010
      %v3196 = vpop.f32.mrb[0].mxu0
      %v3197 = vadd.f32 0.0, %v3196
      %v3198 = vpop.f32.mrb[0].mxu0
      %3199 = vmatprep.mubr.f32.mxu0 0.0
      %3200 = vmatmul.mubr.f32.gmra.mrb[0].mxu0 %v3013
      %v3201 = vpop.f32.mrb[0].mxu0
      %v3202 = vadd.f32 0.0, %v3201
      %v3203 = vpop.f32.mrb[0].mxu0
      %3204 = vmatprep.mubr.f32.mxu0 0.0
      %3205 = vmatmul.mubr.f32.gmra.mrb[0].mxu0 %v3016
      %v3206 = vpop.f32.mrb[0].mxu0
      %v3207 = vadd.f32 0.0, %v3206
      %v3208 = vpop.f32.mrb[0].mxu0
      %3209 = vmatprep.mubr.f32.mxu0 0.0
      %3210 = vmatmul.mubr.f32.gmra.mrb[0].mxu0 %v3019
      %v3211 = vpop.f32.mrb[0].mxu0
      %v3212 = vadd.f32 0.0, %v3211
      %v3213 = vpop.f32.mrb[0].mxu0
      %3214 = vmatprep.mubr.f32.mxu0 0.0
      %3215 = vmatmul.mubr.f32.gmra.mrb[0].mxu0 %v3022
      %v3216 = vpop.f32.mrb[0].mxu0
      %v3217 = vadd.f32 0.0, %v3216
      %v3218 = vpop.f32.mrb[0].mxu0
      %3219 = vmatprep.mubr.f32.mxu0 0.0
      %3220 = vmatmul.mubr.f32.gmra.mrb[0].mxu0 %v3025
      %v3221 = vpop.f32.mrb[0].mxu0
      %v3222 = vadd.f32 0.0, %v3221
      %v3223 = vpop.f32.mrb[0].mxu0
      %3224 = vmatprep.mubr.f32.mxu0 0.0
      %3225 = vmatmul.mubr.f32.gmra.mrb[0].mxu0 %v3028
      %v3226 = vpop.f32.mrb[0].mxu0
      %v3227 = vadd.f32 0.0, %v3226
      %v3228 = vpop.f32.mrb[0].mxu0
      %3229 = vmatprep.mubr.f32.mxu0 0.0
      %3230 = vmatmul.mubr.f32.gmra.mrb[0].mxu0 %v3031
      %v3231 = vpop.f32.mrb[0].mxu0
      %v3232 = vadd.f32 0.0, %v3231
      %v3233 = vpop.f32.mrb[0].mxu0
      %3234 = vmatprep.mubr.f32.mxu0 0.0
      %3235 = vmatmul.mubr.f32.gmra.mrb[0].mxu0 %v3034
      %v3236 = vpop.f32.mrb[0].mxu0
      %v3237 = vadd.f32 0.0, %v3236
      %v3238 = vpop.f32.mrb[0].mxu0
      %3239 = vmatprep.mubr.f32.mxu0 0.0
      %3240 = vmatmul.mubr.f32.gmra.mrb[0].mxu0 %v3037
      %v3241 = vpop.f32.mrb[0].mxu0
      %v3242 = vadd.f32 0.0, %v3241
      %v3243 = vpop.f32.mrb[0].mxu0
      %3244 = vmatprep.mubr.f32.mxu0 0.0
      %3245 = vmatmul.mubr.f32.gmra.mrb[0].mxu0 %v3040
      %v3246 = vpop.f32.mrb[0].mxu0
      %v3247 = vadd.f32 0.0, %v3246
      %v3248 = vpop.f32.mrb[0].mxu0
      %3249 = vmatprep.mubr.f32.mxu0 0.0
      %3250 = vmatmul.mubr.f32.gmra.mrb[0].mxu0 %v3043
      %v3251 = vpop.f32.mrb[0].mxu0
      %v3252 = vadd.f32 0.0, %v3251
      %v3253 = vpop.f32.mrb[0].mxu0
      %3254 = vmatprep.mubr.f32.mxu0 0.0
      %3255 = vmatmul.mubr.f32.gmra.mrb[0].mxu0 %v3046
      %v3256 = vpop.f32.mrb[0].mxu0
      %v3257 = vadd.f32 0.0, %v3256
      %v3258 = vpop.f32.mrb[0].mxu0
      %3259 = vmatprep.mubr.f32.mxu0 0.0
      %3260 = vmatmul.mubr.f32.gmra.mrb[0].mxu0 %v3049
      %v3261 = vpop.f32.mrb[0].mxu0
      %v3262 = vadd.f32 0.0, %v3261
      %v3263 = vpop.f32.mrb[0].mxu0
      %3264 = vmatprep.mubr.f32.mxu0 0.0
      %3265 = vmatmul.mubr.f32.gmra.mrb[0].mxu0 %v3052
      %v3266 = vpop.f32.mrb[0].mxu0
      %v3267 = vadd.f32 0.0, %v3266
      %v3268 = vpop.f32.mrb[0].mxu0
      %3269 = vmatprep.mubr.f32.mxu0 0.0
      %3270 = vmatmul.mubr.f32.gmra.mrb[0].mxu0 %v3055
      %v3271 = vpop.f32.mrb[0].mxu0
      %v3272 = vadd.f32 0.0, %v3271
      %v3273 = vpop.f32.mrb[0].mxu0
      %3274 = vmatprep.mubr.f32.mxu0 0.0
      %3275 = vmatmul.mubr.f32.gmra.mrb[0].mxu0 %v3058
      %v3276 = vpop.f32.mrb[0].mxu0
      %v3277 = vadd.f32 0.0, %v3276
      %v3278 = vpop.f32.mrb[0].mxu0
      %3279 = vmatprep.mubr.f32.mxu0 0.0
      %3280 = vmatmul.mubr.f32.gmra.mrb[0].mxu0 %v3061
      %v3281 = vpop.f32.mrb[0].mxu0
      %v3282 = vadd.f32 0.0, %v3281
      %v3283 = vpop.f32.mrb[0].mxu0
      %3284 = vmatprep.mubr.f32.mxu0 0.0
      %3285 = vmatmul.mubr.f32.gmra.mrb[0].mxu0 %v3064
      %v3286 = vpop.f32.mrb[0].mxu0
      %v3287 = vadd.f32 0.0, %v3286
      %v3288 = vpop.f32.mrb[0].mxu0
      %3289 = vmatprep.mubr.f32.mxu0 0.0
      %3290 = vmatmul.mubr.f32.gmra.mrb[0].mxu0 %v3067
      %v3291 = vpop.f32.mrb[0].mxu0
      %v3292 = vadd.f32 0.0, %v3291
      %v3293 = vpop.f32.mrb[0].mxu0
      %3294 = vmatprep.mubr.f32.mxu0 0.0
      %3295 = vmatmul.mubr.f32.gmra.mrb[0].mxu0 %v3070
      %v3296 = vpop.f32.mrb[0].mxu0
      %v3297 = vadd.f32 0.0, %v3296
      %v3298 = vpop.f32.mrb[0].mxu0
      %3299 = vdwg.mxu0
      %v3300 = vadd.f32 %v2910, %v3142
      %v3301 = vadd.f32 %v2911, %v3147
      %v3302 = vadd.f32 %v2912, %v3152
      %v3303 = vadd.f32 %v2913, %v3157
      %v3304 = vadd.f32 %v2914, %v3162
      %v3305 = vadd.f32 %v2915, %v3167
      %v3306 = vadd.f32 %v2916, %v3172
      %v3307 = vadd.f32 %v2917, %v3177
      %v3308 = vadd.f32 %v2918, %v3182
      %v3309 = vadd.f32 %v2919, %v3187
      %v3310 = vadd.f32 %v2920, %v3192
      %v3311 = vadd.f32 %v2921, %v3197
      %v3312 = vadd.f32 %v2922, %v3202
      %v3313 = vadd.f32 %v2923, %v3207
      %v3314 = vadd.f32 %v2924, %v3212
      %v3315 = vadd.f32 %v2925, %v3217
      %v3316 = vadd.f32 %v2926, %v3222
      %v3317 = vadd.f32 %v2927, %v3227
      %v3318 = vadd.f32 %v2928, %v3232
      %v3319 = vadd.f32 %v2929, %v3237
      %v3320 = vadd.f32 %v2930, %v3242
      %v3321 = vadd.f32 %v2931, %v3247
      %v3322 = vadd.f32 %v2932, %v3252
      %v3323 = vadd.f32 %v2933, %v3257
      %v3324 = vadd.f32 %v2934, %v3262
      %v3325 = vadd.f32 %v2935, %v3267
      %v3326 = vadd.f32 %v2936, %v3272
      %v3327 = vadd.f32 %v2937, %v3277
      %v3328 = vadd.f32 %v2938, %v3282
      %v3329 = vadd.f32 %v2939, %v3287
      %v3330 = vadd.f32 %v2940, %v3292
      %v3331 = vadd.f32 %v2941, %v3297
      %v3332 = vld [vmem:[%s2551 + $0x2] sm:$0xff]
      %v3333 = vld [vmem:[%s2551 + $0xa] sm:$0xff]
      %v3334 = vld [vmem:[%s2551 + $0x1a] sm:$0xff]
      %v3335 = vld [vmem:[%s2551 + $0x22] sm:$0xff]
      %v3336 = vld [vmem:[%s2551 + $0x32] sm:$0xff]
      %v3337 = vld [vmem:[%s2551 + $0x3a] sm:$0xff]
      %v3338 = vld [vmem:[%s2551 + $0x4a] sm:$0xff]
      %v3339 = vld [vmem:[%s2551 + $0x52] sm:$0xff]
      %v3340 = vld [vmem:[%s2551 + $0x62] sm:$0xff]
      %v3341 = vld [vmem:[%s2551 + $0x6a] sm:$0xff]
      %v3342 = vld [vmem:[%s2551 + $0x7a] sm:$0xff]
      %v3343 = vld [vmem:[%s2551 + $0x82] sm:$0xff]
      %v3344 = vld [vmem:[%s2551 + $0x92] sm:$0xff]
      %v3345 = vld [vmem:[%s2551 + $0x9a] sm:$0xff]
      %v3346 = vld [vmem:[%s2551 + $0xaa] sm:$0xff]
      %v3347 = vld [vmem:[%s2551 + $0xb2] sm:$0xff]
      %v3348 = vld [vmem:[%s2551 + $0xc2] sm:$0xff]
      %v3349 = vld [vmem:[%s2551 + $0xca] sm:$0xff]
      %v3350 = vld [vmem:[%s2551 + $0xda] sm:$0xff]
      %v3351 = vld [vmem:[%s2551 + $0xe2] sm:$0xff]
      %v3352 = vld [vmem:[%s2551 + $0xf2] sm:$0xff]
      %v3353 = vld [vmem:[%s2551 + $0xfa] sm:$0xff]
      %v3354 = vld [vmem:[%s2551 + $0x10a] sm:$0xff]
      %v3355 = vld [vmem:[%s2551 + $0x112] sm:$0xff]
      %v3356 = vld [vmem:[%s2551 + $0x122] sm:$0xff]
      %v3357 = vld [vmem:[%s2551 + $0x12a] sm:$0xff]
      %v3358 = vld [vmem:[%s2551 + $0x13a] sm:$0xff]
      %v3359 = vld [vmem:[%s2551 + $0x142] sm:$0xff]
      %v3360 = vld [vmem:[%s2551 + $0x152] sm:$0xff]
      %v3361 = vld [vmem:[%s2551 + $0x15a] sm:$0xff]
      %v3362 = vld [vmem:[%s2551 + $0x16a] sm:$0xff]
      %v3363 = vld [vmem:[%s2551 + $0x172] sm:$0xff]
      %s3364 = scalar_lea.vmem %s249, 32
      %v3365 = vld [vmem:[%s3364] sm:$0xf]
      %v3367 = vsel %vm340, %v3332, 0
      %v3370 = vsel %vm340, %v3333, 0
      %v3373 = vsel %vm340, %v3334, 0
      %v3376 = vsel %vm340, %v3335, 0
      %v3379 = vsel %vm340, %v3336, 0
      %v3382 = vsel %vm340, %v3337, 0
      %v3385 = vsel %vm340, %v3338, 0
      %v3388 = vsel %vm340, %v3339, 0
      %v3391 = vsel %vm340, %v3340, 0
      %v3394 = vsel %vm340, %v3341, 0
      %v3397 = vsel %vm340, %v3342, 0
      %v3400 = vsel %vm340, %v3343, 0
      %v3403 = vsel %vm340, %v3344, 0
      %v3406 = vsel %vm340, %v3345, 0
      %v3409 = vsel %vm340, %v3346, 0
      %v3412 = vsel %vm340, %v3347, 0
      %v3415 = vsel %vm340, %v3348, 0
      %v3418 = vsel %vm340, %v3349, 0
      %v3421 = vsel %vm340, %v3350, 0
      %v3424 = vsel %vm340, %v3351, 0
      %v3427 = vsel %vm340, %v3352, 0
      %v3430 = vsel %vm340, %v3353, 0
      %v3433 = vsel %vm340, %v3354, 0
      %v3436 = vsel %vm340, %v3355, 0
      %v3439 = vsel %vm340, %v3356, 0
      %v3442 = vsel %vm340, %v3357, 0
      %v3445 = vsel %vm340, %v3358, 0
      %v3448 = vsel %vm340, %v3359, 0
      %v3451 = vsel %vm340, %v3360, 0
      %v3454 = vsel %vm340, %v3361, 0
      %v3457 = vsel %vm340, %v3362, 0
      %v3460 = vsel %vm340, %v3363, 0
      %v3463 = vsel %vm437, %v3365, 0
      %3465 = vmatprep.subr.mxu0 0.0
      %3466 = vmatpush1.msra.mxu0 %v3463
      %3467 = vmatprep.subr.mxu0 0.0
      %3468 = vmatpush1.msra.mxu0 0.0
      %3469 = vmatprep.subr.mxu0 0.0
      %3470 = vmatpush1.msra.mxu0 0.0
      %3471 = vmatprep.subr.mxu0 0.0
      %3472 = vmatpush1.msra.mxu0 0.0
      %3473 = vmatprep.subr.mxu0 0.0
      %3474 = vmatpush1.msra.mxu0 0.0
      %3475 = vmatprep.subr.mxu0 0.0
      %3476 = vmatpush1.msra.mxu0 0.0
      %3477 = vmatprep.subr.mxu0 0.0
      %3478 = vmatpush1.msra.mxu0 0.0
      %3479 = vmatprep.subr.mxu0 0.0
      %3480 = vmatpush1.msra.mxu0 0.0
      %3481 = vmatprep.subr.mxu0 0.0
      %3482 = vmatpush1.msra.mxu0 0.0
      %3483 = vmatprep.subr.mxu0 0.0
      %3484 = vmatpush1.msra.mxu0 0.0
      %3485 = vmatprep.subr.mxu0 0.0
      %3486 = vmatpush1.msra.mxu0 0.0
      %3487 = vmatprep.subr.mxu0 0.0
      %3488 = vmatpush1.msra.mxu0 0.0
      %3489 = vmatprep.subr.mxu0 0.0
      %3490 = vmatpush1.msra.mxu0 0.0
      %3491 = vmatprep.subr.mxu0 0.0
      %3492 = vmatpush1.msra.mxu0 0.0
      %3493 = vmatprep.subr.mxu0 0.0
      %3494 = vmatpush1.msra.mxu0 0.0
      %3495 = vmatprep.subr.mxu0 0.0
      %3496 = vmatpush1.msra.mxu0 0.0
      %3497 = vmatprep.subr.mxu0 0.0
      %3498 = vmatpush1.msra.mxu0 0.0
      %3499 = vmatprep.subr.mxu0 0.0
      %3500 = vmatpush1.msra.mxu0 0.0
      %3501 = vmatprep.subr.mxu0 0.0
      %3502 = vmatpush1.msra.mxu0 0.0
      %3503 = vmatprep.subr.mxu0 0.0
      %3504 = vmatpush1.msra.mxu0 0.0
      %3505 = vmatprep.subr.mxu0 0.0
      %3506 = vmatpush1.msra.mxu0 0.0
      %3507 = vmatprep.subr.mxu0 0.0
      %3508 = vmatpush1.msra.mxu0 0.0
      %3509 = vmatprep.subr.mxu0 0.0
      %3510 = vmatpush1.msra.mxu0 0.0
      %3511 = vmatprep.subr.mxu0 0.0
      %3512 = vmatpush1.msra.mxu0 0.0
      %3513 = vmatprep.subr.mxu0 0.0
      %3514 = vmatpush1.msra.mxu0 0.0
      %3515 = vmatprep.subr.mxu0 0.0
      %3516 = vmatpush1.msra.mxu0 0.0
      %3517 = vmatprep.subr.mxu0 0.0
      %3518 = vmatpush1.msra.mxu0 0.0
      %3519 = vmatprep.subr.mxu0 0.0
      %3520 = vmatpush1.msra.mxu0 0.0
      %3521 = vmatprep.subr.mxu0 0.0
      %3522 = vmatpush1.msra.mxu0 0.0
      %3523 = vmatprep.subr.mxu0 0.0
      %3524 = vmatpush1.msra.mxu0 0.0
      %3525 = vmatprep.subr.mxu0 0.0
      %3526 = vmatpush1.msra.mxu0 0.0
      %3527 = vmatprep.subr.mxu0 0.0
      %3528 = vmatpush1.msra.mxu0 0.0
      %3529 = vmatprep.mubr.f32.mxu0 0.0
      %3530 = vmatmul.mubr.f32.gmra.mrb[0].mxu0 %v3367
      %v3531 = vpop.f32.mrb[0].mxu0
      %v3532 = vadd.f32 0.0, %v3531
      %v3533 = vpop.f32.mrb[0].mxu0
      %3534 = vmatprep.mubr.f32.mxu0 0.0
      %3535 = vmatmul.mubr.f32.gmra.mrb[0].mxu0 %v3370
      %v3536 = vpop.f32.mrb[0].mxu0
      %v3537 = vadd.f32 0.0, %v3536
      %v3538 = vpop.f32.mrb[0].mxu0
      %3539 = vmatprep.mubr.f32.mxu0 0.0
      %3540 = vmatmul.mubr.f32.gmra.mrb[0].mxu0 %v3373
      %v3541 = vpop.f32.mrb[0].mxu0
      %v3542 = vadd.f32 0.0, %v3541
      %v3543 = vpop.f32.mrb[0].mxu0
      %3544 = vmatprep.mubr.f32.mxu0 0.0
      %3545 = vmatmul.mubr.f32.gmra.mrb[0].mxu0 %v3376
      %v3546 = vpop.f32.mrb[0].mxu0
      %v3547 = vadd.f32 0.0, %v3546
      %v3548 = vpop.f32.mrb[0].mxu0
      %3549 = vmatprep.mubr.f32.mxu0 0.0
      %3550 = vmatmul.mubr.f32.gmra.mrb[0].mxu0 %v3379
      %v3551 = vpop.f32.mrb[0].mxu0
      %v3552 = vadd.f32 0.0, %v3551
      %v3553 = vpop.f32.mrb[0].mxu0
      %3554 = vmatprep.mubr.f32.mxu0 0.0
      %3555 = vmatmul.mubr.f32.gmra.mrb[0].mxu0 %v3382
      %v3556 = vpop.f32.mrb[0].mxu0
      %v3557 = vadd.f32 0.0, %v3556
      %v3558 = vpop.f32.mrb[0].mxu0
      %3559 = vmatprep.mubr.f32.mxu0 0.0
      %3560 = vmatmul.mubr.f32.gmra.mrb[0].mxu0 %v3385
      %v3561 = vpop.f32.mrb[0].mxu0
      %v3562 = vadd.f32 0.0, %v3561
      %v3563 = vpop.f32.mrb[0].mxu0
      %3564 = vmatprep.mubr.f32.mxu0 0.0
      %3565 = vmatmul.mubr.f32.gmra.mrb[0].mxu0 %v3388
      %v3566 = vpop.f32.mrb[0].mxu0
      %v3567 = vadd.f32 0.0, %v3566
      %v3568 = vpop.f32.mrb[0].mxu0
      %3569 = vmatprep.mubr.f32.mxu0 0.0
      %3570 = vmatmul.mubr.f32.gmra.mrb[0].mxu0 %v3391
      %v3571 = vpop.f32.mrb[0].mxu0
      %v3572 = vadd.f32 0.0, %v3571
      %v3573 = vpop.f32.mrb[0].mxu0
      %3574 = vmatprep.mubr.f32.mxu0 0.0
      %3575 = vmatmul.mubr.f32.gmra.mrb[0].mxu0 %v3394
      %v3576 = vpop.f32.mrb[0].mxu0
      %v3577 = vadd.f32 0.0, %v3576
      %v3578 = vpop.f32.mrb[0].mxu0
      %3579 = vmatprep.mubr.f32.mxu0 0.0
      %3580 = vmatmul.mubr.f32.gmra.mrb[0].mxu0 %v3397
      %v3581 = vpop.f32.mrb[0].mxu0
      %v3582 = vadd.f32 0.0, %v3581
      %v3583 = vpop.f32.mrb[0].mxu0
      %3584 = vmatprep.mubr.f32.mxu0 0.0
      %3585 = vmatmul.mubr.f32.gmra.mrb[0].mxu0 %v3400
      %v3586 = vpop.f32.mrb[0].mxu0
      %v3587 = vadd.f32 0.0, %v3586
      %v3588 = vpop.f32.mrb[0].mxu0
      %3589 = vmatprep.mubr.f32.mxu0 0.0
      %3590 = vmatmul.mubr.f32.gmra.mrb[0].mxu0 %v3403
      %v3591 = vpop.f32.mrb[0].mxu0
      %v3592 = vadd.f32 0.0, %v3591
      %v3593 = vpop.f32.mrb[0].mxu0
      %3594 = vmatprep.mubr.f32.mxu0 0.0
      %3595 = vmatmul.mubr.f32.gmra.mrb[0].mxu0 %v3406
      %v3596 = vpop.f32.mrb[0].mxu0
      %v3597 = vadd.f32 0.0, %v3596
      %v3598 = vpop.f32.mrb[0].mxu0
      %3599 = vmatprep.mubr.f32.mxu0 0.0
      %3600 = vmatmul.mubr.f32.gmra.mrb[0].mxu0 %v3409
      %v3601 = vpop.f32.mrb[0].mxu0
      %v3602 = vadd.f32 0.0, %v3601
      %v3603 = vpop.f32.mrb[0].mxu0
      %3604 = vmatprep.mubr.f32.mxu0 0.0
      %3605 = vmatmul.mubr.f32.gmra.mrb[0].mxu0 %v3412
      %v3606 = vpop.f32.mrb[0].mxu0
      %v3607 = vadd.f32 0.0, %v3606
      %v3608 = vpop.f32.mrb[0].mxu0
      %3609 = vmatprep.mubr.f32.mxu0 0.0
      %3610 = vmatmul.mubr.f32.gmra.mrb[0].mxu0 %v3415
      %v3611 = vpop.f32.mrb[0].mxu0
      %v3612 = vadd.f32 0.0, %v3611
      %v3613 = vpop.f32.mrb[0].mxu0
      %3614 = vmatprep.mubr.f32.mxu0 0.0
      %3615 = vmatmul.mubr.f32.gmra.mrb[0].mxu0 %v3418
      %v3616 = vpop.f32.mrb[0].mxu0
      %v3617 = vadd.f32 0.0, %v3616
      %v3618 = vpop.f32.mrb[0].mxu0
      %3619 = vmatprep.mubr.f32.mxu0 0.0
      %3620 = vmatmul.mubr.f32.gmra.mrb[0].mxu0 %v3421
      %v3621 = vpop.f32.mrb[0].mxu0
      %v3622 = vadd.f32 0.0, %v3621
      %v3623 = vpop.f32.mrb[0].mxu0
      %3624 = vmatprep.mubr.f32.mxu0 0.0
      %3625 = vmatmul.mubr.f32.gmra.mrb[0].mxu0 %v3424
      %v3626 = vpop.f32.mrb[0].mxu0
      %v3627 = vadd.f32 0.0, %v3626
      %v3628 = vpop.f32.mrb[0].mxu0
      %3629 = vmatprep.mubr.f32.mxu0 0.0
      %3630 = vmatmul.mubr.f32.gmra.mrb[0].mxu0 %v3427
      %v3631 = vpop.f32.mrb[0].mxu0
      %v3632 = vadd.f32 0.0, %v3631
      %v3633 = vpop.f32.mrb[0].mxu0
      %3634 = vmatprep.mubr.f32.mxu0 0.0
      %3635 = vmatmul.mubr.f32.gmra.mrb[0].mxu0 %v3430
      %v3636 = vpop.f32.mrb[0].mxu0
      %v3637 = vadd.f32 0.0, %v3636
      %v3638 = vpop.f32.mrb[0].mxu0
      %3639 = vmatprep.mubr.f32.mxu0 0.0
      %3640 = vmatmul.mubr.f32.gmra.mrb[0].mxu0 %v3433
      %v3641 = vpop.f32.mrb[0].mxu0
      %v3642 = vadd.f32 0.0, %v3641
      %v3643 = vpop.f32.mrb[0].mxu0
      %3644 = vmatprep.mubr.f32.mxu0 0.0
      %3645 = vmatmul.mubr.f32.gmra.mrb[0].mxu0 %v3436
      %v3646 = vpop.f32.mrb[0].mxu0
      %v3647 = vadd.f32 0.0, %v3646
      %v3648 = vpop.f32.mrb[0].mxu0
      %3649 = vmatprep.mubr.f32.mxu0 0.0
      %3650 = vmatmul.mubr.f32.gmra.mrb[0].mxu0 %v3439
      %v3651 = vpop.f32.mrb[0].mxu0
      %v3652 = vadd.f32 0.0, %v3651
      %v3653 = vpop.f32.mrb[0].mxu0
      %3654 = vmatprep.mubr.f32.mxu0 0.0
      %3655 = vmatmul.mubr.f32.gmra.mrb[0].mxu0 %v3442
      %v3656 = vpop.f32.mrb[0].mxu0
      %v3657 = vadd.f32 0.0, %v3656
      %v3658 = vpop.f32.mrb[0].mxu0
      %3659 = vmatprep.mubr.f32.mxu0 0.0
      %3660 = vmatmul.mubr.f32.gmra.mrb[0].mxu0 %v3445
      %v3661 = vpop.f32.mrb[0].mxu0
      %v3662 = vadd.f32 0.0, %v3661
      %v3663 = vpop.f32.mrb[0].mxu0
      %3664 = vmatprep.mubr.f32.mxu0 0.0
      %3665 = vmatmul.mubr.f32.gmra.mrb[0].mxu0 %v3448
      %v3666 = vpop.f32.mrb[0].mxu0
      %v3667 = vadd.f32 0.0, %v3666
      %v3668 = vpop.f32.mrb[0].mxu0
      %3669 = vmatprep.mubr.f32.mxu0 0.0
      %3670 = vmatmul.mubr.f32.gmra.mrb[0].mxu0 %v3451
      %v3671 = vpop.f32.mrb[0].mxu0
      %v3672 = vadd.f32 0.0, %v3671
      %v3673 = vpop.f32.mrb[0].mxu0
      %3674 = vmatprep.mubr.f32.mxu0 0.0
      %3675 = vmatmul.mubr.f32.gmra.mrb[0].mxu0 %v3454
      %v3676 = vpop.f32.mrb[0].mxu0
      %v3677 = vadd.f32 0.0, %v3676
      %v3678 = vpop.f32.mrb[0].mxu0
      %3679 = vmatprep.mubr.f32.mxu0 0.0
      %3680 = vmatmul.mubr.f32.gmra.mrb[0].mxu0 %v3457
      %v3681 = vpop.f32.mrb[0].mxu0
      %v3682 = vadd.f32 0.0, %v3681
      %v3683 = vpop.f32.mrb[0].mxu0
      %3684 = vmatprep.mubr.f32.mxu0 0.0
      %3685 = vmatmul.mubr.f32.gmra.mrb[0].mxu0 %v3460
      %v3686 = vpop.f32.mrb[0].mxu0
      %v3687 = vadd.f32 0.0, %v3686
      %v3688 = vpop.f32.mrb[0].mxu0
      %3689 = vdwg.mxu0
      %v3690 = vadd.f32 %v3300, %v3532
      %v3691 = vadd.f32 %v3301, %v3537
      %v3692 = vadd.f32 %v3302, %v3542
      %v3693 = vadd.f32 %v3303, %v3547
      %v3694 = vadd.f32 %v3304, %v3552
      %v3695 = vadd.f32 %v3305, %v3557
      %v3696 = vadd.f32 %v3306, %v3562
      %v3697 = vadd.f32 %v3307, %v3567
      %v3698 = vadd.f32 %v3308, %v3572
      %v3699 = vadd.f32 %v3309, %v3577
      %v3700 = vadd.f32 %v3310, %v3582
      %v3701 = vadd.f32 %v3311, %v3587
      %v3702 = vadd.f32 %v3312, %v3592
      %v3703 = vadd.f32 %v3313, %v3597
      %v3704 = vadd.f32 %v3314, %v3602
      %v3705 = vadd.f32 %v3315, %v3607
      %v3706 = vadd.f32 %v3316, %v3612
      %v3707 = vadd.f32 %v3317, %v3617
      %v3708 = vadd.f32 %v3318, %v3622
      %v3709 = vadd.f32 %v3319, %v3627
      %v3710 = vadd.f32 %v3320, %v3632
      %v3711 = vadd.f32 %v3321, %v3637
      %v3712 = vadd.f32 %v3322, %v3642
      %v3713 = vadd.f32 %v3323, %v3647
      %v3714 = vadd.f32 %v3324, %v3652
      %v3715 = vadd.f32 %v3325, %v3657
      %v3716 = vadd.f32 %v3326, %v3662
      %v3717 = vadd.f32 %v3327, %v3667
      %v3718 = vadd.f32 %v3328, %v3672
      %v3719 = vadd.f32 %v3329, %v3677
      %v3720 = vadd.f32 %v3330, %v3682
      %v3721 = vadd.f32 %v3331, %v3687
      %v3722 = vadd.f32 %v3690, %v3691
      %v3723 = vadd.f32 %v3722, %v3692
      %v3724 = vadd.f32 %v3723, %v3693
      %v3725 = vadd.f32 %v3724, %v3694
      %v3726 = vadd.f32 %v3725, %v3695
      %v3727 = vadd.f32 %v3726, %v3696
      %v3728 = vadd.f32 %v3727, %v3697
      %v3729 = vadd.f32 %v3728, %v3698
      %v3730 = vadd.f32 %v3729, %v3699
      %v3731 = vadd.f32 %v3730, %v3700
      %v3732 = vadd.f32 %v3731, %v3701
      %v3733 = vadd.f32 %v3732, %v3702
      %v3734 = vadd.f32 %v3733, %v3703
      %v3735 = vadd.f32 %v3734, %v3704
      %v3736 = vadd.f32 %v3735, %v3705
      %v3737 = vadd.f32 %v3736, %v3706
      %v3738 = vadd.f32 %v3737, %v3707
      %v3739 = vadd.f32 %v3738, %v3708
      %v3740 = vadd.f32 %v3739, %v3709
      %v3741 = vadd.f32 %v3740, %v3710
      %v3742 = vadd.f32 %v3741, %v3711
      %v3743 = vadd.f32 %v3742, %v3712
      %v3744 = vadd.f32 %v3743, %v3713
      %v3745 = vadd.f32 %v3744, %v3714
      %v3746 = vadd.f32 %v3745, %v3715
      %v3747 = vadd.f32 %v3746, %v3716
      %v3748 = vadd.f32 %v3747, %v3717
      %v3749 = vadd.f32 %v3748, %v3718
      %v3750 = vadd.f32 %v3749, %v3719
      %v3751 = vadd.f32 %v3750, %v3720
      %v3752 = vadd.f32 %v3751, %v3721
      %v3753 = vrot.slane %v3752, 4
      %v3754 = vadd.f32 %v3752, %v3753
      %v3755 = vrot.slane %v3754, 2
      %v3756 = vadd.f32 %v3754, %v3755
      %v3757 = vrot.slane %v3756, 1
      %v3758 = vadd.f32 %v3756, %v3757
      %3759 = vst [vmem:[%s266] sm:$0x1] %v3758
      %v3760 = vmul.f32 %v3690, %v3690
      %v3761 = vmul.f32 %v3691, %v3691
      %v3762 = vmul.f32 %v3692, %v3692
      %v3763 = vmul.f32 %v3693, %v3693
      %v3764 = vmul.f32 %v3694, %v3694
      %v3765 = vmul.f32 %v3695, %v3695
      %v3766 = vmul.f32 %v3696, %v3696
      %v3767 = vmul.f32 %v3697, %v3697
      %v3768 = vmul.f32 %v3698, %v3698
      %v3769 = vmul.f32 %v3699, %v3699
      %v3770 = vmul.f32 %v3700, %v3700
      %v3771 = vmul.f32 %v3701, %v3701
      %v3772 = vmul.f32 %v3702, %v3702
      %v3773 = vmul.f32 %v3703, %v3703
      %v3774 = vmul.f32 %v3704, %v3704
      %v3775 = vmul.f32 %v3705, %v3705
      %v3776 = vmul.f32 %v3706, %v3706
      %v3777 = vmul.f32 %v3707, %v3707
      %v3778 = vmul.f32 %v3708, %v3708
      %v3779 = vmul.f32 %v3709, %v3709
      %v3780 = vmul.f32 %v3710, %v3710
      %v3781 = vmul.f32 %v3711, %v3711
      %v3782 = vmul.f32 %v3712, %v3712
      %v3783 = vmul.f32 %v3713, %v3713
      %v3784 = vmul.f32 %v3714, %v3714
      %v3785 = vmul.f32 %v3715, %v3715
      %v3786 = vmul.f32 %v3716, %v3716
      %v3787 = vmul.f32 %v3717, %v3717
      %v3788 = vmul.f32 %v3718, %v3718
      %v3789 = vmul.f32 %v3719, %v3719
      %v3790 = vmul.f32 %v3720, %v3720
      %v3791 = vmul.f32 %v3721, %v3721
      %v3792 = vadd.f32 %v3760, %v3761
      %v3793 = vadd.f32 %v3792, %v3762
      %v3794 = vadd.f32 %v3793, %v3763
      %v3795 = vadd.f32 %v3794, %v3764
      %v3796 = vadd.f32 %v3795, %v3765
      %v3797 = vadd.f32 %v3796, %v3766
      %v3798 = vadd.f32 %v3797, %v3767
      %v3799 = vadd.f32 %v3798, %v3768
      %v3800 = vadd.f32 %v3799, %v3769
      %v3801 = vadd.f32 %v3800, %v3770
      %v3802 = vadd.f32 %v3801, %v3771
      %v3803 = vadd.f32 %v3802, %v3772
      %v3804 = vadd.f32 %v3803, %v3773
      %v3805 = vadd.f32 %v3804, %v3774
      %v3806 = vadd.f32 %v3805, %v3775
      %v3807 = vadd.f32 %v3806, %v3776
      %v3808 = vadd.f32 %v3807, %v3777
      %v3809 = vadd.f32 %v3808, %v3778
      %v3810 = vadd.f32 %v3809, %v3779
      %v3811 = vadd.f32 %v3810, %v3780
      %v3812 = vadd.f32 %v3811, %v3781
      %v3813 = vadd.f32 %v3812, %v3782
      %v3814 = vadd.f32 %v3813, %v3783
      %v3815 = vadd.f32 %v3814, %v3784
      %v3816 = vadd.f32 %v3815, %v3785
      %v3817 = vadd.f32 %v3816, %v3786
      %v3818 = vadd.f32 %v3817, %v3787
      %v3819 = vadd.f32 %v3818, %v3788
      %v3820 = vadd.f32 %v3819, %v3789
      %v3821 = vadd.f32 %v3820, %v3790
      %v3822 = vadd.f32 %v3821, %v3791
      %v3823 = vrot.slane %v3822, 4
      %v3824 = vadd.f32 %v3822, %v3823
      %v3825 = vrot.slane %v3824, 2
      %v3826 = vadd.f32 %v3824, %v3825
      %v3827 = vrot.slane %v3826, 1
      %v3828 = vadd.f32 %v3826, %v3827
      %3829 = vst [vmem:[%s272] sm:$0x1] %v3828
      %3830 = vxpose.xlu0.b32.start [1/16] %v3690, 128
      %3831 = vxpose.xlu0.b32.cont [2/16] %v3691, 128
      %3832 = vxpose.xlu0.b32.cont [3/16] %v3692, 128
      %3833 = vxpose.xlu0.b32.cont [4/16] %v3693, 128
      %3834 = vxpose.xlu0.b32.cont [5/16] %v3694, 128
      %3835 = vxpose.xlu0.b32.cont [6/16] %v3695, 128
      %3836 = vxpose.xlu0.b32.cont [7/16] %v3696, 128
      %3837 = vxpose.xlu0.b32.cont [8/16] %v3697, 128
      %3838 = vxpose.xlu0.b32.cont [9/16] %v3698, 128
      %3839 = vxpose.xlu0.b32.cont [10/16] %v3699, 128
      %3840 = vxpose.xlu0.b32.cont [11/16] %v3700, 128
      %3841 = vxpose.xlu0.b32.cont [12/16] %v3701, 128
      %3842 = vxpose.xlu0.b32.cont [13/16] %v3702, 128
      %3843 = vxpose.xlu0.b32.cont [14/16] %v3703, 128
      %3844 = vxpose.xlu0.b32.cont [15/16] %v3704, 128
      %3845 = vxpose.xlu0.b32.end [16/16] %v3705, 128
      %v3846 = vpop.trf.xlu0
      %v3847 = vpop.trf.xlu0
      %v3848 = vpop.trf.xlu0
      %v3849 = vpop.trf.xlu0
      %v3850 = vpop.trf.xlu0
      %v3851 = vpop.trf.xlu0
      %v3852 = vpop.trf.xlu0
      %v3853 = vpop.trf.xlu0
      %v3854 = vpop.trf.xlu0
      %v3855 = vpop.trf.xlu0
      %v3856 = vpop.trf.xlu0
      %v3857 = vpop.trf.xlu0
      %v3858 = vpop.trf.xlu0
      %v3859 = vpop.trf.xlu0
      %v3860 = vpop.trf.xlu0
      %v3861 = vpop.trf.xlu0
      %3862 = vxpose.xlu0.b32.start [1/16] %v3706, 128
      %3863 = vxpose.xlu0.b32.cont [2/16] %v3707, 128
      %3864 = vxpose.xlu0.b32.cont [3/16] %v3708, 128
      %3865 = vxpose.xlu0.b32.cont [4/16] %v3709, 128
      %3866 = vxpose.xlu0.b32.cont [5/16] %v3710, 128
      %3867 = vxpose.xlu0.b32.cont [6/16] %v3711, 128
      %3868 = vxpose.xlu0.b32.cont [7/16] %v3712, 128
      %3869 = vxpose.xlu0.b32.cont [8/16] %v3713, 128
      %3870 = vxpose.xlu0.b32.cont [9/16] %v3714, 128
      %3871 = vxpose.xlu0.b32.cont [10/16] %v3715, 128
      %3872 = vxpose.xlu0.b32.cont [11/16] %v3716, 128
      %3873 = vxpose.xlu0.b32.cont [12/16] %v3717, 128
      %3874 = vxpose.xlu0.b32.cont [13/16] %v3718, 128
      %3875 = vxpose.xlu0.b32.cont [14/16] %v3719, 128
      %3876 = vxpose.xlu0.b32.cont [15/16] %v3720, 128
      %3877 = vxpose.xlu0.b32.end [16/16] %v3721, 128
      %v3878 = vpop.trf.xlu0
      %v3879 = vpop.trf.xlu0
      %v3880 = vpop.trf.xlu0
      %v3881 = vpop.trf.xlu0
      %v3882 = vpop.trf.xlu0
      %v3883 = vpop.trf.xlu0
      %v3884 = vpop.trf.xlu0
      %v3885 = vpop.trf.xlu0
      %v3886 = vpop.trf.xlu0
      %v3887 = vpop.trf.xlu0
      %v3888 = vpop.trf.xlu0
      %v3889 = vpop.trf.xlu0
      %v3890 = vpop.trf.xlu0
      %v3891 = vpop.trf.xlu0
      %v3892 = vpop.trf.xlu0
      %v3893 = vpop.trf.xlu0
      %3894 = vst [vmem:[%s259] sm:$0xff] %v3846
      %3895 = vst [vmem:[%s259 + $0x8] sm:$0xff] %v3878
      %3896 = vst [vmem:[%s259 + $0x10] sm:$0xff] %v3847
      %3897 = vst [vmem:[%s259 + $0x18] sm:$0xff] %v3879
      %3898 = vst [vmem:[%s259 + $0x20] sm:$0xff] %v3848
      %3899 = vst [vmem:[%s259 + $0x28] sm:$0xff] %v3880
      %3900 = vst [vmem:[%s259 + $0x30] sm:$0xff] %v3849
      %3901 = vst [vmem:[%s259 + $0x38] sm:$0xff] %v3881
      %3902 = vst [vmem:[%s259 + $0x40] sm:$0xff] %v3850
      %3903 = vst [vmem:[%s259 + $0x48] sm:$0xff] %v3882
      %3904 = vst [vmem:[%s259 + $0x50] sm:$0xff] %v3851
      %3905 = vst [vmem:[%s259 + $0x58] sm:$0xff] %v3883
      %3906 = vst [vmem:[%s259 + $0x60] sm:$0xff] %v3852
      %3907 = vst [vmem:[%s259 + $0x68] sm:$0xff] %v3884
      %3908 = vst [vmem:[%s259 + $0x70] sm:$0xff] %v3853
      %3909 = vst [vmem:[%s259 + $0x78] sm:$0xff] %v3885
      %3910 = vst [vmem:[%s259 + $0x80] sm:$0xff] %v3854
      %3911 = vst [vmem:[%s259 + $0x88] sm:$0xff] %v3886
      %3912 = vst [vmem:[%s259 + $0x90] sm:$0xff] %v3855
      %3913 = vst [vmem:[%s259 + $0x98] sm:$0xff] %v3887
      %3914 = vst [vmem:[%s259 + $0xa0] sm:$0xff] %v3856
      %3915 = vst [vmem:[%s259 + $0xa8] sm:$0xff] %v3888
      %3916 = vst [vmem:[%s259 + $0xb0] sm:$0xff] %v3857
      %3917 = vst [vmem:[%s259 + $0xb8] sm:$0xff] %v3889
      %3918 = vst [vmem:[%s259 + $0xc0] sm:$0xff] %v3858
      %3919 = vst [vmem:[%s259 + $0xc8] sm:$0xff] %v3890
      %3920 = vst [vmem:[%s259 + $0xd0] sm:$0xff] %v3859
      %3921 = vst [vmem:[%s259 + $0xd8] sm:$0xff] %v3891
      %3922 = vst [vmem:[%s259 + $0xe0] sm:$0xff] %v3860
      %3923 = vst [vmem:[%s259 + $0xe8] sm:$0xff] %v3892
      %3924 = vst [vmem:[%s259 + $0xf0] sm:$0xff] %v3861
      %3925 = vst [vmem:[%s259 + $0xf8] sm:$0xff] %v3893
      %s3926 = smul.u32 16, %s21
      %p3927 = scmp.lt.s32.totalorder %s20, 1
      %s3928 = scalar_select %p3927, %s20, 1
      %p3929 = scmp.lt.s32.totalorder %s3926, 15
      %s3930 = scalar_select %p3929, %s3926, 15
      %s3931 = smul.addr %s3930, 2
      %s3932 = smul.addr %s3928, 32
      %s3933 = sadd.s32 %s3931, %s3932
      %s3934 = smul.addr %s3933, 8
      %s3935 = scalar_lea.vmem %s2, %s3934
      %p3936 = scmp.lt.s32.totalorder %s20, 1
      %s3937 = scalar_select %p3936, %s20, 1
      %p3938 = scmp.lt.s32.totalorder %s21, 0
      %s3939 = scalar_select %p3938, %s21, 0
      %s3940 = sadd.s32 %s3939, %s3937
      %s3941 = scalar_lea.vmem %s3, %s3940
      %p3942 = scmp.lt.s32.totalorder %s20, 1
      %s3943 = scalar_select %p3942, %s20, 1
      %p3944 = scmp.lt.s32.totalorder %s21, 0
      %s3945 = scalar_select %p3944, %s21, 0
      %s3946 = sadd.s32 %s3945, %s3943
      %s3947 = scalar_lea.vmem %s4, %s3946
      // Predicated region
      $region29: #{unit_forward.2} parent=27 // pred_check
        %p3948 = pneg %p100
      $region30: #{unit_forward.2} parent=27 // pred_check_branch
        %3950 = sbr.rel (%p3948) target = $region32
      $region31: #{unit_forward.2} parent=27 // pred_region
        %s3951 = smul.u32 16, %s21
      $region32: #{unit_forward.2} parent=27 // pred_fallthru
        _
      // Predicated region
      $region33: #{unit_forward.2} parent=27 // pred_check
        %p3952 = pneg %p128
      $region34: #{unit_forward.2} parent=27 // pred_check_branch
        %3954 = sbr.rel (%p3952) target = $region36
      $region35: #{unit_forward.2} parent=27 // pred_region
        _
      $region36: #{unit_forward.2} parent=27 // pred_fallthru
        _
      // Predicated region
      $region37: #{unit_forward.2} parent=27 // pred_check
        %p3955 = pneg %p156
      $region38: #{unit_forward.2} parent=27 // pred_check_branch
        %3957 = sbr.rel (%p3955) target = $region40
      $region39: #{unit_forward.2} parent=27 // pred_region
        _
      $region40: #{unit_forward.2} parent=27 // pred_fallthru
        _
    $region28: #{unit_forward.2} parent=5 // pred_fallthru
      _
    %p3958 = scmp.le.s32.totalorder 2, %s11
    // Predicated region
    $region41: #{unit_forward.2} parent=5 // pred_check
      %p3959 = pneg %p3958
    $region42: #{unit_forward.2} parent=5 // pred_check_branch
      %3961 = sbr.rel (%p3959) target = $region44
    $region43: #{unit_forward.2} parent=5 // pred_region
      %s3962 = ssub.s32 %s11, 2
      // Predicated region
      $region45: #{unit_forward.2} parent=43 // pred_check
        %p3963 = pneg %p106
      $region46: #{unit_forward.2} parent=43 // pred_check_branch
        %3965 = sbr.rel (%p3963) target = $region48
      $region47: #{unit_forward.2} parent=43 // pred_region
        %s3966 = smul.u32 16, %s23
        %p3967 = scmp.lt.s32.totalorder %s22, 1
        %s3968 = scalar_select %p3967, %s22, 1
        %p3969 = scmp.lt.s32.totalorder %s3966, 15
        %s3970 = scalar_select %p3969, %s3966, 15
        %s3971 = smul.addr %s3970, 2
        %s3972 = smul.addr %s3968, 32
        %s3973 = sadd.s32 %s3971, %s3972
        %s3974 = smul.addr %s3973, 8
        %s3975 = scalar_lea.vmem %s2, %s3974
      $region48: #{unit_forward.2} parent=43 // pred_fallthru
        _
      // Predicated region
      $region49: #{unit_forward.2} parent=43 // pred_check
        %p3976 = pneg %p134
      $region50: #{unit_forward.2} parent=43 // pred_check_branch
        %3978 = sbr.rel (%p3976) target = $region52
      $region51: #{unit_forward.2} parent=43 // pred_region
        %p3979 = scmp.lt.s32.totalorder %s22, 1
        %s3980 = scalar_select %p3979, %s22, 1
        %p3981 = scmp.lt.s32.totalorder %s23, 0
        %s3982 = scalar_select %p3981, %s23, 0
        %s3983 = sadd.s32 %s3982, %s3980
        %s3984 = scalar_lea.vmem %s3, %s3983
      $region52: #{unit_forward.2} parent=43 // pred_fallthru
        _
      // Predicated region
      $region53: #{unit_forward.2} parent=43 // pred_check
        %p3985 = pneg %p162
      $region54: #{unit_forward.2} parent=43 // pred_check_branch
        %3987 = sbr.rel (%p3985) target = $region56
      $region55: #{unit_forward.2} parent=43 // pred_region
        %p3988 = scmp.lt.s32.totalorder %s22, 1
        %s3989 = scalar_select %p3988, %s22, 1
        %p3990 = scmp.lt.s32.totalorder %s23, 0
        %s3991 = scalar_select %p3990, %s23, 0
        %s3992 = sadd.s32 %s3991, %s3989
        %s3993 = scalar_lea.vmem %s4, %s3992
      $region56: #{unit_forward.2} parent=43 // pred_fallthru
        _
    $region44: #{unit_forward.2} parent=5 // pred_fallthru
      _
  $region6: #{unit_forward.2} parent=0 // loop_footer
    %s15 = sadd.s32 1, %s11
  $region7: #{unit_forward.2} parent=0 // loop_footer_branch
    %10 = sbr.rel target = $region3
  $region8: #{unit_forward.2} parent=0 // loop_exit
    _

</llo_original>
